<compile_context>
chip_gen: v7x
topology: tpu7x:2x2x1
jax: 0.10.0
libtpu: 0.0.40
codegen_flags: <defaults>
</compile_context>

<pallas_src>
import jax
import jax.numpy as jnp
from jax.experimental import pallas as pl
from jax.experimental.pallas import tpu as pltpu

# ----------------------------------------------------------------------------
# Real / padded sizes
# ----------------------------------------------------------------------------
K1, C1 = 5 * 5 * 1, 10          # conv1 im2col contraction / out channels
K2, C2 = 5 * 5 * 10, 20         # conv2 im2col contraction / out channels
H1, NOUT = 50, 10               # fc1 hidden / fc2 out
N_POS2 = 16                     # 4x4 pooled positions after conv2

K1_PAD, C1_PAD = 32, 32         # conv1: K 25->32, Cout 10->32 (lane dim of y1)
K2_PAD, C2_PAD = 256, 32        # conv2: K 250->256, Cout 20->32 (in-kernel only)
H1_PAD, OUT_PAD = 128, 128

_VMEM_LIMIT = 32 * 1024 * 1024          # fits v5e/v6e/v7x scoped budgets
_MATMUL_DTYPE = jnp.bfloat16            # MXU-native on all generations


def _round_up(n, m):
    return ((n + m - 1) // m) * m


def _cdiv(a, b):
    return (a + b - 1) // b


def _row_plan(n, max_tile, min_grid=2):
    """Row tiling: (grid, tile, padded rows).

    Tiles are multiples of 16 (dense bf16 sublane packing); prefer at least
    `min_grid` grid steps so dimension_semantics can split work across v7x's
    two TensorCores.
    """
    n16 = _round_up(max(n, 1), 16)
    tile = min(max_tile, n16)
    grid = _cdiv(n16, tile)
    if grid < min_grid and n16 >= min_grid * 16:
        tile = _round_up(_cdiv(n16, min_grid), 16)
        grid = _cdiv(n16, tile)
    return grid, tile, grid * tile


# ----------------------------------------------------------------------------
# Pallas kernels
# ----------------------------------------------------------------------------
def _conv_pool_relu_kernel(p_ref, w_ref, b_ref, o_ref):
    """Fused conv1(5x5, valid) + maxpool(2) + bias + relu for one row tile.

    p_ref: (4, tile, K1_PAD) bf16 im2col patches (one slab per pool quadrant)
    w_ref: (K1_PAD, C1_PAD)  bf16 conv weights (resident)
    b_ref: (1, C1_PAD)       f32 bias
    o_ref: (tile, C1_PAD)    bf16 output (32-lane stores beat 128-wide padding)
    """
    pr = p_ref[...]
    nq, tn, kp = pr.shape
    # One tall matmul instead of 4 tiny ones (merge of outer dim with a
    # 16-aligned sublane dim is layout-trivial).
    z = jnp.dot(pr.reshape(nq * tn, kp), w_ref[...],
                preferred_element_type=jnp.float32)
    z = z.reshape(nq, tn, -1)
    z = jnp.max(z, axis=0) + b_ref[...]          # bias commutes with the max
    o_ref[...] = jnp.maximum(z, 0.0).astype(o_ref.dtype)


def _conv2_head_kernel(p_ref, wc_ref, bc_ref, w1_ref, b1_ref, w2_ref, b2_ref,
                       o_ref):
    """Fused tail: conv2 + maxpool(2) + relu + flatten + fc1 + relu + fc2.

    p_ref : (4, 16, tb, K2_PAD) bf16 conv2 im2col patches, rows (quad, pos, b)
    wc_ref: (K2_PAD, C2_PAD)    bf16 conv2 weights
    bc_ref: (1, C2_PAD)         f32
    w1_ref: (16, C2_PAD, H1_PAD) bf16 fc1 weights with the NCHW-flatten
                                 permutation folded in (one slab per position)
    b1_ref: (1, H1_PAD)         f32
    w2_ref: (H1_PAD, OUT_PAD)   bf16
    b2_ref: (1, OUT_PAD)        f32
    o_ref : (tb, OUT_PAD)       f32
    """
    pr = p_ref[...]
    nq, npos, tb, kp = pr.shape

    # conv2 as one merged matmul over (quadrant, position, batch) rows.
    z = jnp.dot(pr.reshape(nq * npos * tb, kp), wc_ref[...],
                preferred_element_type=jnp.float32)
    z = z.reshape(nq, npos * tb, -1)
    y2 = jnp.maximum(jnp.max(z, axis=0) + bc_ref[...], 0.0)   # (16*tb, 32)
    # TODO(synk): nn.Dropout2d / F.dropout are identity in eval mode; the
    # stochastic training-mode masking is not implemented.

    # fc1: flatten folded into the weights; a single batched contraction over
    # the 16 pooled positions (K = 32 each) plus a leading-axis sum.
    y3 = y2.reshape(npos, tb, -1).astype(w1_ref.dtype)         # (16, tb, 32)
    h = jnp.einsum("ptc,pch->pth", y3, w1_ref[...],
                   preferred_element_type=jnp.float32)         # (16, tb, H1P)
    h = jnp.maximum(jnp.sum(h, axis=0) + b1_ref[...], 0.0)     # (tb, H1P)

    out = jnp.dot(h.astype(w2_ref.dtype), w2_ref[...],
                  preferred_element_type=jnp.float32) + b2_ref[...]
    o_ref[...] = out.astype(o_ref.dtype)


# ----------------------------------------------------------------------------
# pallas_call wrappers
# ----------------------------------------------------------------------------
def conv_pool_relu(patches, w, b):
    """patches: (4, N, K1_PAD) -> (N, C1_PAD). Gridded + pipelined over rows."""
    _, n, kp = patches.shape
    cout = w.shape[1]
    grid, tile, npad = _row_plan(n, max_tile=1024)
    if npad != n:
        patches = jnp.pad(patches, ((0, 0), (0, npad - n), (0, 0)))

    out = pl.pallas_call(
        _conv_pool_relu_kernel,
        out_shape=jax.ShapeDtypeStruct((npad, cout), _MATMUL_DTYPE),
        grid=(grid,),
        in_specs=[
            pl.BlockSpec((4, tile, kp), lambda i: (0, i, 0)),
            pl.BlockSpec((kp, cout), lambda i: (0, 0)),       # resident
            pl.BlockSpec((1, cout), lambda i: (0, 0)),        # resident
        ],
        out_specs=pl.BlockSpec((tile, cout), lambda i: (i, 0)),
        compiler_params=pltpu.CompilerParams(
            dimension_semantics=("parallel",),
            vmem_limit_bytes=_VMEM_LIMIT),
    )(patches, w, b)
    return out[:n]


def conv2_mlp_head(p2, wc2, bc2, w1, b1, w2, b2, tile_b):
    """p2: (4, 16, Bp, K2_PAD) -> (Bp, OUT_PAD). Gridded over the batch."""
    _, npos, bp, kp = p2.shape
    grid = bp // tile_b
    c2, h1, nout = wc2.shape[1], w1.shape[2], w2.shape[1]

    return pl.pallas_call(
        _conv2_head_kernel,
        out_shape=jax.ShapeDtypeStruct((bp, nout), jnp.float32),
        grid=(grid,),
        in_specs=[
            pl.BlockSpec((4, npos, tile_b, kp), lambda i: (0, 0, i, 0)),
            pl.BlockSpec((kp, c2), lambda i: (0, 0)),
            pl.BlockSpec((1, c2), lambda i: (0, 0)),
            pl.BlockSpec((npos, c2, h1), lambda i: (0, 0, 0)),
            pl.BlockSpec((1, h1), lambda i: (0, 0)),
            pl.BlockSpec((h1, nout), lambda i: (0, 0)),
            pl.BlockSpec((1, nout), lambda i: (0, 0)),
        ],
        out_specs=pl.BlockSpec((tile_b, nout), lambda i: (i, 0)),
        compiler_params=pltpu.CompilerParams(
            dimension_semantics=("parallel",),
            vmem_limit_bytes=_VMEM_LIMIT),
    )(p2, wc2, bc2, w1, b1, w2, b2)


# ----------------------------------------------------------------------------
# Plain-JAX glue (layout plumbing only).
# TODO(synk): items 3/10 of the review (in-kernel im2col / one fully fused
# kernel) would eliminate these p1/p2 HBM round trips entirely.
# ----------------------------------------------------------------------------
def _conv1_patches(x_nhwc):
    """im2col for conv1, one patch matrix per 2x2-maxpool quadrant.

    Returns (4, B*Hp*Wp, K1_PAD) bf16, flatten order (ky, kx, cin).
    """
    b, h, w, cin = x_nhwc.shape
    k = 5
    hp, wp = (h - k + 1) // 2, (w - k + 1) // 2
    x = x_nhwc.astype(_MATMUL_DTYPE)
    quads = []
    for p in range(2):
        for q in range(2):
            cols = [x[:, p + ky: p + ky + 2 * hp: 2,
                      q + kx: q + kx + 2 * wp: 2, :]
                    for ky in range(k) for kx in range(k)]
            patch = jnp.stack(cols, axis=3)                # (B,Hp,Wp,25,Cin)
            quads.append(patch.reshape(b * hp * wp, k * k * cin))
    p1 = jnp.stack(quads, axis=0)                          # (4, B*Hp*Wp, 25)
    return jnp.pad(p1, ((0, 0), (0, 0), (0, K1_PAD - k * k * cin)))


def _conv2_patches(y1, bp):
    """im2col for conv2 (uses the 10 real channels of the 32-wide y1).

    Returns (4, 16, Bp, K2_PAD) bf16, rows ordered (position, batch) so the
    fused tail kernel needs no in-kernel transposes.
    """
    b = y1.shape[0]
    k = 5
    hp = wp = (y1.shape[1] - k + 1) // 2
    quads = []
    for p in range(2):
        for q in range(2):
            cols = [y1[:, p + ky: p + ky + 2 * hp: 2,
                       q + kx: q + kx + 2 * wp: 2, :C1]
                    for ky in range(k) for kx in range(k)]
            patch = jnp.stack(cols, axis=3)                # (B,4,4,25,C1)
            quads.append(patch.reshape(b, hp * wp, k * k * C1))
    p2 = jnp.stack(quads, axis=0)                          # (4, B, 16, 250)
    p2 = jnp.transpose(p2, (0, 2, 1, 3))                   # (4, 16, B, 250)
    return jnp.pad(p2, ((0, 0), (0, 0), (0, bp - b), (0, K2_PAD - k * k * C1)))


# ----------------------------------------------------------------------------
# One-time parameter preprocessing (hoisted out of the forward)
# ----------------------------------------------------------------------------
def prepare_params(params):
    dt = _MATMUL_DTYPE

    wc1 = jnp.transpose(params["conv1_w"], (2, 3, 1, 0)).reshape(K1, C1)
    wc1 = jnp.pad(wc1, ((0, K1_PAD - K1), (0, C1_PAD - C1)))
    bc1 = jnp.pad(params["conv1_b"], (0, C1_PAD - C1)).reshape(1, C1_PAD)

    wc2 = jnp.transpose(params["conv2_w"], (2, 3, 1, 0)).reshape(K2, C2)
    wc2 = jnp.pad(wc2, ((0, K2_PAD - K2), (0, C2_PAD - C2)))
    bc2 = jnp.pad(params["conv2_b"], (0, C2_PAD - C2)).reshape(1, C2_PAD)

    # fc1: torch flat index = c*16 + pos (NCHW view). Fold that permutation
    # into the weights: one (C2_PAD, H1_PAD) slab per pooled position.
    wfc1 = params["fc1_w"].reshape(H1, C2, N_POS2)         # (h, c, pos)
    wfc1 = jnp.transpose(wfc1, (2, 1, 0))                  # (pos, c, h)
    wfc1 = jnp.pad(wfc1, ((0, 0), (0, C2_PAD - C2), (0, H1_PAD - H1)))
    bfc1 = jnp.pad(params["fc1_b"], (0, H1_PAD - H1)).reshape(1, H1_PAD)

    wfc2 = jnp.pad(params["fc2_w"].T,
                   ((0, H1_PAD - H1), (0, OUT_PAD - NOUT)))
    bfc2 = jnp.pad(params["fc2_b"], (0, OUT_PAD - NOUT)).reshape(1, OUT_PAD)

    return {
        "wc1": wc1.astype(dt), "bc1": bc1.astype(jnp.float32),
        "wc2": wc2.astype(dt), "bc2": bc2.astype(jnp.float32),
        "wfc1": wfc1.astype(dt), "bfc1": bfc1.astype(jnp.float32),
        "wfc2": wfc2.astype(dt), "bfc2": bfc2.astype(jnp.float32),
    }


# ----------------------------------------------------------------------------
# Forward pass
# ----------------------------------------------------------------------------
def mnist_lenet_forward(x_nchw, p):
    b, c, h, w = x_nchw.shape
    x = x_nchw.astype(jnp.float32)
    if c == 1:
        x = x.reshape(b, h, w, 1)                 # NCHW with C=1: free reshape
    else:
        x = jnp.transpose(x, (0, 2, 3, 1))        # NCHW -> NHWC

    # conv1(1->10, k=5) + maxpool(2) + relu      (out channels padded to 32)
    p1 = _conv1_patches(x)                        # (4, B*144, 32) bf16
    y1 = conv_pool_relu(p1, p["wc1"], p["bc1"])   # (B*144, 32) bf16
    hp1, wp1 = (h - 5 + 1) // 2, (w - 5 + 1) // 2
    y1 = y1.reshape(b, hp1, wp1, C1_PAD)

    # fused tail: conv2 + dropout2d(eval=id) + maxpool(2) + relu
    #             + NCHW-flatten (folded into fc1 weights) + fc1 + relu
    #             + dropout(eval=id) + fc2
    _, tile_b, bp = _row_plan(b, max_tile=128)
    p2 = _conv2_patches(y1, bp)                   # (4, 16, Bp, 256) bf16
    out = conv2_mlp_head(p2, p["wc2"], p["bc2"], p["wfc1"], p["bfc1"],
                         p["wfc2"], p["bfc2"], tile_b)
    return out[:b, :NOUT]


def init_params(key):
    """Deterministic PyTorch-default-style uniform(-1/sqrt(fan_in), +) init."""
    ks = jax.random.split(key, 8)

    def u(k, shape, fan_in):
        bound = 1.0 / (fan_in ** 0.5)
        return jax.random.uniform(k, shape, jnp.float32, -bound, bound)

    return {
        "conv1_w": u(ks[0], (10, 1, 5, 5), 1 * 5 * 5),
        "conv1_b": u(ks[1], (10,), 1 * 5 * 5),
        "conv2_w": u(ks[2], (20, 10, 5, 5), 10 * 5 * 5),
        "conv2_b": u(ks[3], (20,), 10 * 5 * 5),
        "fc1_w": u(ks[4], (50, 320), 320),
        "fc1_b": u(ks[5], (50,), 320),
        "fc2_w": u(ks[6], (10, 50), 50),
        "fc2_b": u(ks[7], (10,), 50),
    }


if __name__ == "__main__":
    key = jax.random.PRNGKey(0)
    pkey, xkey = jax.random.split(key)
    params = init_params(pkey)
    prepped = prepare_params(params)              # one-time weight prep
    # MNIST-shaped input: the hard-coded 320 = 20*4*4 flatten requires 28x28x1.
    x = jax.random.normal(xkey, (2, 1, 28, 28), jnp.float32)   # NCHW like torch
    out = jax.jit(mnist_lenet_forward)(x, prepped)
    jax.block_until_ready(out)
    assert out.shape == (2, 10), out.shape
    print("KERNEL_OK")
</pallas_src>

<mosaic_0001>
module attributes {stable_mosaic.version = 11 : i64} {
  func.func @_conv_pool_relu_kernel(%arg0: i32, %arg1: memref<4x144x32xbf16, #tpu.memory_space<vmem>>, %arg2: memref<32x32xbf16, #tpu.memory_space<vmem>>, %arg3: memref<1x32xf32, #tpu.memory_space<vmem>>, %arg4: memref<144x32xbf16, #tpu.memory_space<vmem>>) attributes {dimension_semantics = [#tpu.dimension_semantics<parallel>], iteration_bounds = array<i64: 2>, scalar_prefetch = 0 : i64, scratch_operands = 0 : i64, tpu.core_type = #tpu.core_type<tc>, window_params = [{transform_indices = @transform_0, window_bounds = array<i64: 4, 144, 32>}, {pipeline_mode = #tpu.pipeline_mode<synchronous>, transform_indices = @transform_1, window_bounds = array<i64: 32, 32>}, {pipeline_mode = #tpu.pipeline_mode<synchronous>, transform_indices = @transform_2, window_bounds = array<i64: 1, 32>}, {transform_indices = @transform_3, window_bounds = array<i64: 144, 32>}]} {
    %c0 = arith.constant 0 : index
    %c0_0 = arith.constant 0 : index
    %c0_1 = arith.constant 0 : index
    %0 = vector.load %arg1[%c0, %c0_0, %c0_1] : memref<4x144x32xbf16, #tpu.memory_space<vmem>>, vector<4x144x32xbf16>
    %1 = vector.shape_cast %0 : vector<4x144x32xbf16> to vector<576x32xbf16>
    %c0_2 = arith.constant 0 : index
    %c0_3 = arith.constant 0 : index
    %2 = vector.load %arg2[%c0_2, %c0_3] : memref<32x32xbf16, #tpu.memory_space<vmem>>, vector<32x32xbf16>
    %cst = arith.constant dense<0.000000e+00> : vector<576x32xf32>
    %3 = tpu.matmul %1, %2, %cst {dimension_numbers = #tpu.dot_dimension_numbers<[1], [0], [0], [1], [0, 0, 1, 1], [], []>} : vector<576x32xbf16>, vector<32x32xbf16>, vector<576x32xf32> -> vector<576x32xf32>
    %4 = vector.shape_cast %3 : vector<576x32xf32> to vector<4x144x32xf32>
    %cst_4 = arith.constant dense<0xFF800000> : vector<144x32xf32>
    %5 = vector.multi_reduction <maximumf>, %4, %cst_4 [0] : vector<4x144x32xf32> to vector<144x32xf32>
    %c0_5 = arith.constant 0 : index
    %c0_6 = arith.constant 0 : index
    %6 = vector.load %arg3[%c0_5, %c0_6] : memref<1x32xf32, #tpu.memory_space<vmem>>, vector<1x32xf32>
    %7 = vector.broadcast %6 : vector<1x32xf32> to vector<144x32xf32>
    %8 = arith.addf %5, %7 : vector<144x32xf32>
    %cst_7 = arith.constant 0.000000e+00 : f32
    %9 = vector.broadcast %cst_7 : f32 to vector<144x32xf32>
    %10 = arith.maximumf %8, %9 : vector<144x32xf32>
    %11 = arith.truncf %10 : vector<144x32xf32> to vector<144x32xbf16>
    %c0_8 = arith.constant 0 : index
    %c0_9 = arith.constant 0 : index
    %12 = vector.load %arg4[%c0_8, %c0_9] : memref<144x32xbf16, #tpu.memory_space<vmem>>, vector<144x32xbf16>
    tpu.vector_store %arg4[%c0_8, %c0_9], %11 {strides = array<i32>} : memref<144x32xbf16, #tpu.memory_space<vmem>>, vector<144x32xbf16>,
    return
  }
  func.func @transform_0(%arg0: i32) -> (i32, i32, i32) {
    %c0_i32 = arith.constant 0 : i32
    %c0_i32_0 = arith.constant 0 : i32
    %c0_i32_1 = arith.constant 0 : i32
    return %c0_i32, %arg0, %c0_i32_0 : i32, i32, i32
  }
  func.func @transform_1(%arg0: i32) -> (i32, i32) {
    %c0_i32 = arith.constant 0 : i32
    %c0_i32_0 = arith.constant 0 : i32
    %c0_i32_1 = arith.constant 0 : i32
    return %c0_i32, %c0_i32_0 : i32, i32
  }
  func.func @transform_2(%arg0: i32) -> (i32, i32) {
    %c0_i32 = arith.constant 0 : i32
    %c0_i32_0 = arith.constant 0 : i32
    %c0_i32_1 = arith.constant 0 : i32
    return %c0_i32, %c0_i32_0 : i32, i32
  }
  func.func @transform_3(%arg0: i32) -> (i32, i32) {
    %c0_i32 = arith.constant 0 : i32
    %c0_i32_0 = arith.constant 0 : i32
    return %arg0, %c0_i32 : i32, i32
  }
}

module attributes {stable_mosaic.version = 11 : i64} {
  func.func @_conv2_head_kernel(%arg0: i32, %arg1: memref<4x16x16x256xbf16, #tpu.memory_space<vmem>>, %arg2: memref<256x32xbf16, #tpu.memory_space<vmem>>, %arg3: memref<1x32xf32, #tpu.memory_space<vmem>>, %arg4: memref<16x32x128xbf16, #tpu.memory_space<vmem>>, %arg5: memref<1x128xf32, #tpu.memory_space<vmem>>, %arg6: memref<128x128xbf16, #tpu.memory_space<vmem>>, %arg7: memref<1x128xf32, #tpu.memory_space<vmem>>, %arg8: memref<16x128xf32, #tpu.memory_space<vmem>>) attributes {dimension_semantics = [#tpu.dimension_semantics<parallel>], iteration_bounds = array<i64: 1>, scalar_prefetch = 0 : i64, scratch_operands = 0 : i64, tpu.core_type = #tpu.core_type<tc>, window_params = [{transform_indices = @transform_0, window_bounds = array<i64: 4, 16, 16, 256>}, {pipeline_mode = #tpu.pipeline_mode<synchronous>, transform_indices = @transform_1, window_bounds = array<i64: 256, 32>}, {pipeline_mode = #tpu.pipeline_mode<synchronous>, transform_indices = @transform_2, window_bounds = array<i64: 1, 32>}, {pipeline_mode = #tpu.pipeline_mode<synchronous>, transform_indices = @transform_3, window_bounds = array<i64: 16, 32, 128>}, {pipeline_mode = #tpu.pipeline_mode<synchronous>, transform_indices = @transform_4, window_bounds = array<i64: 1, 128>}, {pipeline_mode = #tpu.pipeline_mode<synchronous>, transform_indices = @transform_5, window_bounds = array<i64: 128, 128>}, {pipeline_mode = #tpu.pipeline_mode<synchronous>, transform_indices = @transform_6, window_bounds = array<i64: 1, 128>}, {transform_indices = @transform_7, window_bounds = array<i64: 16, 128>}]} {
    %c0 = arith.constant 0 : index
    %c0_0 = arith.constant 0 : index
    %c0_1 = arith.constant 0 : index
    %c0_2 = arith.constant 0 : index
    %0 = vector.load %arg1[%c0, %c0_0, %c0_1, %c0_2] : memref<4x16x16x256xbf16, #tpu.memory_space<vmem>>, vector<4x16x16x256xbf16>
    %1 = vector.shape_cast %0 : vector<4x16x16x256xbf16> to vector<1024x256xbf16>
    %c0_3 = arith.constant 0 : index
    %c0_4 = arith.constant 0 : index
    %2 = vector.load %arg2[%c0_3, %c0_4] : memref<256x32xbf16, #tpu.memory_space<vmem>>, vector<256x32xbf16>
    %cst = arith.constant dense<0.000000e+00> : vector<1024x32xf32>
    %3 = tpu.matmul %1, %2, %cst {dimension_numbers = #tpu.dot_dimension_numbers<[1], [0], [0], [1], [0, 0, 1, 1], [], []>} : vector<1024x256xbf16>, vector<256x32xbf16>, vector<1024x32xf32> -> vector<1024x32xf32>
    %4 = vector.shape_cast %3 : vector<1024x32xf32> to vector<4x256x32xf32>
    %cst_5 = arith.constant dense<0xFF800000> : vector<256x32xf32>
    %5 = vector.multi_reduction <maximumf>, %4, %cst_5 [0] : vector<4x256x32xf32> to vector<256x32xf32>
    %c0_6 = arith.constant 0 : index
    %c0_7 = arith.constant 0 : index
    %6 = vector.load %arg3[%c0_6, %c0_7] : memref<1x32xf32, #tpu.memory_space<vmem>>, vector<1x32xf32>
    %7 = vector.broadcast %6 : vector<1x32xf32> to vector<256x32xf32>
    %8 = arith.addf %5, %7 : vector<256x32xf32>
    %cst_8 = arith.constant 0.000000e+00 : f32
    %9 = vector.broadcast %cst_8 : f32 to vector<256x32xf32>
    %10 = arith.maximumf %8, %9 : vector<256x32xf32>
    %11 = vector.shape_cast %10 : vector<256x32xf32> to vector<16x16x32xf32>
    %12 = arith.truncf %11 : vector<16x16x32xf32> to vector<16x16x32xbf16>
    %c0_9 = arith.constant 0 : index
    %c0_10 = arith.constant 0 : index
    %c0_11 = arith.constant 0 : index
    %13 = vector.load %arg4[%c0_9, %c0_10, %c0_11] : memref<16x32x128xbf16, #tpu.memory_space<vmem>>, vector<16x32x128xbf16>
    "tpu.trace_start"() <{level = 10 : i32, message = "ptc,pch->pth"}> : () -> ()
    %cst_12 = arith.constant dense<0.000000e+00> : vector<16x16x128xf32>
    %14 = tpu.matmul %12, %13, %cst_12 {dimension_numbers = #tpu.dot_dimension_numbers<[2], [1], [1], [2], [0, 0, 0, 1, 1, 2], [0], [0]>} : vector<16x16x32xbf16>, vector<16x32x128xbf16>, vector<16x16x128xf32> -> vector<16x16x128xf32>
    "tpu.trace_stop"() : () -> ()
    %cst_13 = arith.constant dense<0.000000e+00> : vector<16x128xf32>
    %15 = vector.multi_reduction <add>, %14, %cst_13 [0] : vector<16x16x128xf32> to vector<16x128xf32>
    %c0_14 = arith.constant 0 : index
    %c0_15 = arith.constant 0 : index
    %16 = vector.load %arg5[%c0_14, %c0_15] : memref<1x128xf32, #tpu.memory_space<vmem>>, vector<1x128xf32>
    %17 = vector.broadcast %16 : vector<1x128xf32> to vector<16x128xf32>
    %18 = arith.addf %15, %17 : vector<16x128xf32>
    %cst_16 = arith.constant 0.000000e+00 : f32
    %19 = vector.broadcast %cst_16 : f32 to vector<16x128xf32>
    %20 = arith.maximumf %18, %19 : vector<16x128xf32>
    %21 = arith.truncf %20 : vector<16x128xf32> to vector<16x128xbf16>
    %c0_17 = arith.constant 0 : index
    %c0_18 = arith.constant 0 : index
    %22 = vector.load %arg6[%c0_17, %c0_18] : memref<128x128xbf16, #tpu.memory_space<vmem>>, vector<128x128xbf16>
    %cst_19 = arith.constant dense<0.000000e+00> : vector<16x128xf32>
    %23 = tpu.matmul %21, %22, %cst_19 {dimension_numbers = #tpu.dot_dimension_numbers<[1], [0], [0], [1], [0, 0, 1, 1], [], []>} : vector<16x128xbf16>, vector<128x128xbf16>, vector<16x128xf32> -> vector<16x128xf32>
    %c0_20 = arith.constant 0 : index
    %c0_21 = arith.constant 0 : index
    %24 = vector.load %arg7[%c0_20, %c0_21] : memref<1x128xf32, #tpu.memory_space<vmem>>, vector<1x128xf32>
    %25 = vector.broadcast %24 : vector<1x128xf32> to vector<16x128xf32>
    %26 = arith.addf %23, %25 : vector<16x128xf32>
    %c0_22 = arith.constant 0 : index
    %c0_23 = arith.constant 0 : index
    %27 = vector.load %arg8[%c0_22, %c0_23] : memref<16x128xf32, #tpu.memory_space<vmem>>, vector<16x128xf32>
    tpu.vector_store %arg8[%c0_22, %c0_23], %26 {strides = array<i32>} : memref<16x128xf32, #tpu.memory_space<vmem>>, vector<16x128xf32>,
    return
  }
  func.func @transform_0(%arg0: i32) -> (i32, i32, i32, i32) {
    %c0_i32 = arith.constant 0 : i32
    %c0_i32_0 = arith.constant 0 : i32
    %c0_i32_1 = arith.constant 0 : i32
    %c0_i32_2 = arith.constant 0 : i32
    return %c0_i32, %c0_i32_0, %arg0, %c0_i32_1 : i32, i32, i32, i32
  }
  func.func @transform_1(%arg0: i32) -> (i32, i32) {
    %c0_i32 = arith.constant 0 : i32
    %c0_i32_0 = arith.constant 0 : i32
    %c0_i32_1 = arith.constant 0 : i32
    return %c0_i32, %c0_i32_0 : i32, i32
  }
  func.func @transform_2(%arg0: i32) -> (i32, i32) {
    %c0_i32 = arith.constant 0 : i32
    %c0_i32_0 = arith.constant 0 : i32
    %c0_i32_1 = arith.constant 0 : i32
    return %c0_i32, %c0_i32_0 : i32, i32
  }
  func.func @transform_3(%arg0: i32) -> (i32, i32, i32) {
    %c0_i32 = arith.constant 0 : i32
    %c0_i32_0 = arith.constant 0 : i32
    %c0_i32_1 = arith.constant 0 : i32
    %c0_i32_2 = arith.constant 0 : i32
    return %c0_i32, %c0_i32_0, %c0_i32_1 : i32, i32, i32
  }
  func.func @transform_4(%arg0: i32) -> (i32, i32) {
    %c0_i32 = arith.constant 0 : i32
    %c0_i32_0 = arith.constant 0 : i32
    %c0_i32_1 = arith.constant 0 : i32
    return %c0_i32, %c0_i32_0 : i32, i32
  }
  func.func @transform_5(%arg0: i32) -> (i32, i32) {
    %c0_i32 = arith.constant 0 : i32
    %c0_i32_0 = arith.constant 0 : i32
    %c0_i32_1 = arith.constant 0 : i32
    return %c0_i32, %c0_i32_0 : i32, i32
  }
  func.func @transform_6(%arg0: i32) -> (i32, i32) {
    %c0_i32 = arith.constant 0 : i32
    %c0_i32_0 = arith.constant 0 : i32
    %c0_i32_1 = arith.constant 0 : i32
    return %c0_i32, %c0_i32_0 : i32, i32
  }
  func.func @transform_7(%arg0: i32) -> (i32, i32) {
    %c0_i32 = arith.constant 0 : i32
    %c0_i32_0 = arith.constant 0 : i32
    return %arg0, %c0_i32 : i32, i32
  }
}

</mosaic_0001>

<llo_original>
// kernel: mnist_lenet_forward.2
$region0: #{mnist_lenet_forward.2}
  #allocation0 [shape = 'u32[]', space=smem, size = 0x4, offset = 0x4, fixed_abs, tag = 'smem constant byte address 0x4 - core index']
  #allocation1 [shape = 'u32[144,128]{1,0:T(1,128)}', space=vmem, size = 0x12000, scoped, tag = 'internal scratch']
  %s0 = inlined_call_operand.vmem [shape: bf16[4,288,32], index: 0, kind: input, shape index: {}]
  %s1 = inlined_call_operand.vmem [shape: bf16[32,32], index: 1, kind: input, shape index: {}]
  %s2 = inlined_call_operand.vmem [shape: f32[1,32], index: 2, kind: input, shape index: {}]
  %s3 = inlined_call_operand.vmem [shape: bf16[288,32], index: 3, kind: output, shape index: {}]
  %s4 = sld [smem:[#allocation0]]
  $region86: #{mnist_lenet_forward.2} parent=0
    _
  %s6 = ssub.s32 1, %s4
  %s7 = scalar_select 0, %s6, %s4
  $region1: #{mnist_lenet_forward.2} parent=0
    #allocation2 [shape = 'u8[294912]{0}', space=vmem, size = 0x48000, scoped, tag = 'input window, operand 0']
    loop: start=0, step=1, limit=4
    $region2: #{mnist_lenet_forward.2} parent=1 // loop_pre_header
      _
    $region3: #{mnist_lenet_forward.2} parent=1 // loop_header
      %s9 = sphi 0, %s13
      %p10 = scmp.ge.s32.totalorder %s9, 4
      %s19 = sphi 0, %s21
      %s22 = sphi 0, %s19
      %s23 = sphi 0, %s22
      %s39 = sphi 0, %s23
      %s43 = sphi 0, %s43
      %s45 = sphi 0, %s43
      %s46 = sphi 0, %s45
      %s60 = sphi 0, %s46
      %s64 = sphi 0, %s64
      %s66 = sphi 0, %s64
      %s67 = sphi 0, %s66
      %s81 = sphi 0, %s67
      %s87 = sphi 0, %s89
      %s90 = sphi 0, %s87
      %s91 = sphi 0, %s90
      %s107 = sphi 0, %s91
    $region4: #{mnist_lenet_forward.2} parent=1 // loop_header_branch
      %12 = sbr.rel (%p10) target = $region8
    $region5: #{mnist_lenet_forward.2} parent=1 // loop_body
      %s14 = ssub.s32 %s9, 1
      %s15 = ssub.s32 %s9, 2
      %s16 = sadd.s32 %s9, 1
      %s17 = ssub.s32 %s9, %s16
      %p18 = scmp.eq.s32.totalorder %s17, 0
      %s20 = sadd.s32 %s19, 1
      %s21 = scalar_select %p18, %s19, %s20
      %p24 = pneg %p18
      %p25 = scmp.eq.s32.totalorder %s9, 1
      %p26 = por %p24, %p25
      %p27 = scmp.ne.s32.totalorder %s19, %s22
      %p28 = scmp.eq.s32.totalorder %s9, 0
      %p29 = por %p27, %p28
      %p30 = scmp.ne.s32.totalorder %s19, %s22
      %p31 = scmp.eq.s32.totalorder %s14, 1
      %p32 = por %p30, %p31
      %p33 = scmp.ne.s32.totalorder %s22, %s23
      %p34 = scmp.eq.s32.totalorder %s14, 0
      %p35 = por %p33, %p34
      %p36 = scmp.ne.s32.totalorder %s22, %s23
      %p37 = scmp.eq.s32.totalorder %s15, 1
      %p38 = por %p36, %p37
      %p40 = scmp.ne.s32.totalorder %s23, %s39
      %p41 = scmp.eq.s32.totalorder %s15, 0
      %p42 = por %p40, %p41
      %s44 = sadd.s32 %s43, 1
      %p47 = scmp.eq.s32.totalorder %s9, 1
      %p48 = scmp.ne.s32.totalorder %s43, %s45
      %p49 = scmp.eq.s32.totalorder %s9, 0
      %p50 = por %p48, %p49
      %p51 = scmp.ne.s32.totalorder %s43, %s45
      %p52 = scmp.eq.s32.totalorder %s14, 1
      %p53 = por %p51, %p52
      %p54 = scmp.ne.s32.totalorder %s45, %s46
      %p55 = scmp.eq.s32.totalorder %s14, 0
      %p56 = por %p54, %p55
      %p57 = scmp.ne.s32.totalorder %s45, %s46
      %p58 = scmp.eq.s32.totalorder %s15, 1
      %p59 = por %p57, %p58
      %p61 = scmp.ne.s32.totalorder %s46, %s60
      %p62 = scmp.eq.s32.totalorder %s15, 0
      %p63 = por %p61, %p62
      %s65 = sadd.s32 %s64, 1
      %p68 = scmp.eq.s32.totalorder %s9, 1
      %p69 = scmp.ne.s32.totalorder %s64, %s66
      %p70 = scmp.eq.s32.totalorder %s9, 0
      %p71 = por %p69, %p70
      %p72 = scmp.ne.s32.totalorder %s64, %s66
      %p73 = scmp.eq.s32.totalorder %s14, 1
      %p74 = por %p72, %p73
      %p75 = scmp.ne.s32.totalorder %s66, %s67
      %p76 = scmp.eq.s32.totalorder %s14, 0
      %p77 = por %p75, %p76
      %p78 = scmp.ne.s32.totalorder %s66, %s67
      %p79 = scmp.eq.s32.totalorder %s15, 1
      %p80 = por %p78, %p79
      %p82 = scmp.ne.s32.totalorder %s67, %s81
      %p83 = scmp.eq.s32.totalorder %s15, 0
      %p84 = por %p82, %p83
      %s85 = ssub.s32 %s9, %s16
      %p86 = scmp.eq.s32.totalorder %s85, 0
      %s88 = sadd.s32 %s87, 1
      %s89 = scalar_select %p86, %s87, %s88
      %p92 = pneg %p86
      %p93 = scmp.eq.s32.totalorder %s9, 1
      %p94 = por %p92, %p93
      %p95 = scmp.ne.s32.totalorder %s87, %s90
      %p96 = scmp.eq.s32.totalorder %s9, 0
      %p97 = por %p95, %p96
      %p98 = scmp.ne.s32.totalorder %s87, %s90
      %p99 = scmp.eq.s32.totalorder %s14, 1
      %p100 = por %p98, %p99
      %p101 = scmp.ne.s32.totalorder %s90, %s91
      %p102 = scmp.eq.s32.totalorder %s14, 0
      %p103 = por %p101, %p102
      %p104 = scmp.ne.s32.totalorder %s90, %s91
      %p105 = scmp.eq.s32.totalorder %s15, 1
      %p106 = por %p104, %p105
      %p108 = scmp.ne.s32.totalorder %s91, %s107
      %p109 = scmp.eq.s32.totalorder %s15, 0
      %p110 = por %p108, %p109
      %p111 = scmp.le.s32.totalorder 1, %s9
      %p112 = scmp.lt.s32.totalorder %s9, 3
      %p113 = pnand %p111, %p112
      %p114 = pneg %p113
      // Predicated region
      $region9: #{mnist_lenet_forward.2} parent=5 // pred_check
        _
      $region10: #{mnist_lenet_forward.2} parent=5 // pred_check_branch
        %116 = sbr.rel (%p113) target = $region12
      $region11: #{mnist_lenet_forward.2} parent=5 // pred_region
        %s117 = ssub.s32 %s9, 1
        // Predicated region
        $region13: #{mnist_lenet_forward.2} parent=11 // pred_check
          %p118 = pneg %p56
        $region14: #{mnist_lenet_forward.2} parent=11 // pred_check_branch
          %120 = sbr.rel (%p118) target = $region16
        $region15: #{mnist_lenet_forward.2} parent=11 // pred_region
          _
        $region16: #{mnist_lenet_forward.2} parent=11 // pred_fallthru
          _
        // Predicated region
        $region17: #{mnist_lenet_forward.2} parent=11 // pred_check
          %p121 = pneg %p77
        $region18: #{mnist_lenet_forward.2} parent=11 // pred_check_branch
          %123 = sbr.rel (%p121) target = $region20
        $region19: #{mnist_lenet_forward.2} parent=11 // pred_region
          _
        $region20: #{mnist_lenet_forward.2} parent=11 // pred_fallthru
          _
      $region12: #{mnist_lenet_forward.2} parent=5 // pred_fallthru
        _
      %p124 = scmp.lt.s32.totalorder %s9, 2
      // Predicated region
      $region21: #{mnist_lenet_forward.2} parent=5 // pred_check
        %p125 = pneg %p124
      $region22: #{mnist_lenet_forward.2} parent=5 // pred_check_branch
        %127 = sbr.rel (%p125) target = $region24
      $region23: #{mnist_lenet_forward.2} parent=5 // pred_region
        // Predicated region
        $region25: #{mnist_lenet_forward.2} parent=23 // pred_check
          %p128 = pneg %p29
        $region26: #{mnist_lenet_forward.2} parent=23 // pred_check_branch
          %130 = sbr.rel (%p128) target = $region28
        $region27: #{mnist_lenet_forward.2} parent=23 // pred_region
          %s131 = sand.u32 %s19, 1
          %s132 = sand.u32 %s19, 1
          %s133 = smul.addr %s132, 288
          %s134 = scalar_lea.vmem [#allocation2], %s133
          %s135 = smul.u32 18, %s9
          %s136 = smul.addr %s135, 4
          %s137 = scalar_lea.vmem %s0, %s136
          // Predicated region
          $region29: #{mnist_lenet_forward.2} parent=27 // pred_check
            _
          $region30: #{mnist_lenet_forward.2} parent=27 // pred_check_branch
            %139 = sbr.rel (0) target = $region32
          $region31: #{mnist_lenet_forward.2} parent=27 // pred_region
            // Predicated region
            $region33: #{mnist_lenet_forward.2} parent=31 // pred_check
              _
            $region34: #{mnist_lenet_forward.2} parent=31 // pred_check_branch
              %141 = sbr.rel target = $region36
            $region35: #{mnist_lenet_forward.2} parent=31 // pred_region
              // Predicated region
              $region48: #{mnist_lenet_forward.2} parent=35 // pred_check
                _
              $region49: #{mnist_lenet_forward.2} parent=35 // pred_check_branch
                %298 = sbr.rel (0) target = $region51
              $region50: #{mnist_lenet_forward.2} parent=35 // pred_region
                loop: start=0, step=1, limit=1
                $region52: #{mnist_lenet_forward.2} parent=50 // loop_pre_header
                  _
                $region53: #{mnist_lenet_forward.2} parent=50 // loop_header
                  %s300 = sphi 0, %s304
                  %p301 = scmp.ge.s32.totalorder %s300, 1
                  %s305 = sphi %s137, %s137
                  %s306 = sphi %s134, %s134
                $region54: #{mnist_lenet_forward.2} parent=50 // loop_header_branch
                  %303 = sbr.rel (%p301) target = $region58
                $region55: #{mnist_lenet_forward.2} parent=50 // loop_body
                  _
                $region56: #{mnist_lenet_forward.2} parent=50 // loop_footer
                  %s304 = sadd.s32 1, %s300
                $region57: #{mnist_lenet_forward.2} parent=50 // loop_footer_branch
                  %299 = sbr.rel target = $region53
                $region58: #{mnist_lenet_forward.2} parent=50 // loop_exit
                  _
                loop: start=0, step=1, limit=1
                $region59: #{mnist_lenet_forward.2} parent=50 // loop_pre_header
                  _
                $region60: #{mnist_lenet_forward.2} parent=50 // loop_header
                  %s309 = sphi 0, %s313
                  %p310 = scmp.ge.s32.totalorder %s309, 1
                  %s314 = sphi %s137, %s137
                  %s315 = sphi %s134, %s134
                $region61: #{mnist_lenet_forward.2} parent=50 // loop_header_branch
                  %312 = sbr.rel (%p310) target = $region65
                $region62: #{mnist_lenet_forward.2} parent=50 // loop_body
                  %v316 = vld [vmem:[%s314] sm:$0xf]
                  %317 = vst [vmem:[%s315] sm:$0xf] %v316
                  %v318 = vld [vmem:[%s314 + $0x4] sm:$0xf]
                  %319 = vst [vmem:[%s315 + $0x4] sm:$0xf] %v318
                  %v320 = vld [vmem:[%s314 + $0x8] sm:$0xf]
                  %321 = vst [vmem:[%s315 + $0x8] sm:$0xf] %v320
                  %v322 = vld [vmem:[%s314 + $0xc] sm:$0xf]
                  %323 = vst [vmem:[%s315 + $0xc] sm:$0xf] %v322
                  %v324 = vld [vmem:[%s314 + $0x10] sm:$0xf]
                  %325 = vst [vmem:[%s315 + $0x10] sm:$0xf] %v324
                  %v326 = vld [vmem:[%s314 + $0x14] sm:$0xf]
                  %327 = vst [vmem:[%s315 + $0x14] sm:$0xf] %v326
                  %v328 = vld [vmem:[%s314 + $0x18] sm:$0xf]
                  %329 = vst [vmem:[%s315 + $0x18] sm:$0xf] %v328
                  %v330 = vld [vmem:[%s314 + $0x1c] sm:$0xf]
                  %331 = vst [vmem:[%s315 + $0x1c] sm:$0xf] %v330
                  %v332 = vld [vmem:[%s314 + $0x20] sm:$0xf]
                  %333 = vst [vmem:[%s315 + $0x20] sm:$0xf] %v332
                  %v334 = vld [vmem:[%s314 + $0x24] sm:$0xf]
                  %335 = vst [vmem:[%s315 + $0x24] sm:$0xf] %v334
                  %v336 = vld [vmem:[%s314 + $0x28] sm:$0xf]
                  %337 = vst [vmem:[%s315 + $0x28] sm:$0xf] %v336
                  %v338 = vld [vmem:[%s314 + $0x2c] sm:$0xf]
                  %339 = vst [vmem:[%s315 + $0x2c] sm:$0xf] %v338
                  %v340 = vld [vmem:[%s314 + $0x30] sm:$0xf]
                  %341 = vst [vmem:[%s315 + $0x30] sm:$0xf] %v340
                  %v342 = vld [vmem:[%s314 + $0x34] sm:$0xf]
                  %343 = vst [vmem:[%s315 + $0x34] sm:$0xf] %v342
                  %v344 = vld [vmem:[%s314 + $0x38] sm:$0xf]
                  %345 = vst [vmem:[%s315 + $0x38] sm:$0xf] %v344
                  %v346 = vld [vmem:[%s314 + $0x3c] sm:$0xf]
                  %347 = vst [vmem:[%s315 + $0x3c] sm:$0xf] %v346
                  %v348 = vld [vmem:[%s314 + $0x40] sm:$0xf]
                  %349 = vst [vmem:[%s315 + $0x40] sm:$0xf] %v348
                  %v350 = vld [vmem:[%s314 + $0x44] sm:$0xf]
                  %351 = vst [vmem:[%s315 + $0x44] sm:$0xf] %v350
                  %v352 = vld [vmem:[%s314 + $0x90] sm:$0xf]
                  %353 = vst [vmem:[%s315 + $0x48] sm:$0xf] %v352
                  %v354 = vld [vmem:[%s314 + $0x94] sm:$0xf]
                  %355 = vst [vmem:[%s315 + $0x4c] sm:$0xf] %v354
                  %v356 = vld [vmem:[%s314 + $0x98] sm:$0xf]
                  %357 = vst [vmem:[%s315 + $0x50] sm:$0xf] %v356
                  %v358 = vld [vmem:[%s314 + $0x9c] sm:$0xf]
                  %359 = vst [vmem:[%s315 + $0x54] sm:$0xf] %v358
                  %v360 = vld [vmem:[%s314 + $0xa0] sm:$0xf]
                  %361 = vst [vmem:[%s315 + $0x58] sm:$0xf] %v360
                  %v362 = vld [vmem:[%s314 + $0xa4] sm:$0xf]
                  %363 = vst [vmem:[%s315 + $0x5c] sm:$0xf] %v362
                  %v364 = vld [vmem:[%s314 + $0xa8] sm:$0xf]
                  %365 = vst [vmem:[%s315 + $0x60] sm:$0xf] %v364
                  %v366 = vld [vmem:[%s314 + $0xac] sm:$0xf]
                  %367 = vst [vmem:[%s315 + $0x64] sm:$0xf] %v366
                  %v368 = vld [vmem:[%s314 + $0xb0] sm:$0xf]
                  %369 = vst [vmem:[%s315 + $0x68] sm:$0xf] %v368
                  %v370 = vld [vmem:[%s314 + $0xb4] sm:$0xf]
                  %371 = vst [vmem:[%s315 + $0x6c] sm:$0xf] %v370
                  %v372 = vld [vmem:[%s314 + $0xb8] sm:$0xf]
                  %373 = vst [vmem:[%s315 + $0x70] sm:$0xf] %v372
                  %v374 = vld [vmem:[%s314 + $0xbc] sm:$0xf]
                  %375 = vst [vmem:[%s315 + $0x74] sm:$0xf] %v374
                  %v376 = vld [vmem:[%s314 + $0xc0] sm:$0xf]
                  %377 = vst [vmem:[%s315 + $0x78] sm:$0xf] %v376
                  %v378 = vld [vmem:[%s314 + $0xc4] sm:$0xf]
                  %379 = vst [vmem:[%s315 + $0x7c] sm:$0xf] %v378
                  %v380 = vld [vmem:[%s314 + $0xc8] sm:$0xf]
                  %381 = vst [vmem:[%s315 + $0x80] sm:$0xf] %v380
                  %v382 = vld [vmem:[%s314 + $0xcc] sm:$0xf]
                  %383 = vst [vmem:[%s315 + $0x84] sm:$0xf] %v382
                  %v384 = vld [vmem:[%s314 + $0xd0] sm:$0xf]
                  %385 = vst [vmem:[%s315 + $0x88] sm:$0xf] %v384
                  %v386 = vld [vmem:[%s314 + $0xd4] sm:$0xf]
                  %387 = vst [vmem:[%s315 + $0x8c] sm:$0xf] %v386
                  %v388 = vld [vmem:[%s314 + $0x120] sm:$0xf]
                  %389 = vst [vmem:[%s315 + $0x90] sm:$0xf] %v388
                  %v390 = vld [vmem:[%s314 + $0x124] sm:$0xf]
                  %391 = vst [vmem:[%s315 + $0x94] sm:$0xf] %v390
                  %v392 = vld [vmem:[%s314 + $0x128] sm:$0xf]
                  %393 = vst [vmem:[%s315 + $0x98] sm:$0xf] %v392
                  %v394 = vld [vmem:[%s314 + $0x12c] sm:$0xf]
                  %395 = vst [vmem:[%s315 + $0x9c] sm:$0xf] %v394
                  %v396 = vld [vmem:[%s314 + $0x130] sm:$0xf]
                  %397 = vst [vmem:[%s315 + $0xa0] sm:$0xf] %v396
                  %v398 = vld [vmem:[%s314 + $0x134] sm:$0xf]
                  %399 = vst [vmem:[%s315 + $0xa4] sm:$0xf] %v398
                  %v400 = vld [vmem:[%s314 + $0x138] sm:$0xf]
                  %401 = vst [vmem:[%s315 + $0xa8] sm:$0xf] %v400
                  %v402 = vld [vmem:[%s314 + $0x13c] sm:$0xf]
                  %403 = vst [vmem:[%s315 + $0xac] sm:$0xf] %v402
                  %v404 = vld [vmem:[%s314 + $0x140] sm:$0xf]
                  %405 = vst [vmem:[%s315 + $0xb0] sm:$0xf] %v404
                  %v406 = vld [vmem:[%s314 + $0x144] sm:$0xf]
                  %407 = vst [vmem:[%s315 + $0xb4] sm:$0xf] %v406
                  %v408 = vld [vmem:[%s314 + $0x148] sm:$0xf]
                  %409 = vst [vmem:[%s315 + $0xb8] sm:$0xf] %v408
                  %v410 = vld [vmem:[%s314 + $0x14c] sm:$0xf]
                  %411 = vst [vmem:[%s315 + $0xbc] sm:$0xf] %v410
                  %v412 = vld [vmem:[%s314 + $0x150] sm:$0xf]
                  %413 = vst [vmem:[%s315 + $0xc0] sm:$0xf] %v412
                  %v414 = vld [vmem:[%s314 + $0x154] sm:$0xf]
                  %415 = vst [vmem:[%s315 + $0xc4] sm:$0xf] %v414
                  %v416 = vld [vmem:[%s314 + $0x158] sm:$0xf]
                  %417 = vst [vmem:[%s315 + $0xc8] sm:$0xf] %v416
                  %v418 = vld [vmem:[%s314 + $0x15c] sm:$0xf]
                  %419 = vst [vmem:[%s315 + $0xcc] sm:$0xf] %v418
                  %v420 = vld [vmem:[%s314 + $0x160] sm:$0xf]
                  %421 = vst [vmem:[%s315 + $0xd0] sm:$0xf] %v420
                  %v422 = vld [vmem:[%s314 + $0x164] sm:$0xf]
                  %423 = vst [vmem:[%s315 + $0xd4] sm:$0xf] %v422
                  %v424 = vld [vmem:[%s314 + $0x1b0] sm:$0xf]
                  %425 = vst [vmem:[%s315 + $0xd8] sm:$0xf] %v424
                  %v426 = vld [vmem:[%s314 + $0x1b4] sm:$0xf]
                  %427 = vst [vmem:[%s315 + $0xdc] sm:$0xf] %v426
                  %v428 = vld [vmem:[%s314 + $0x1b8] sm:$0xf]
                  %429 = vst [vmem:[%s315 + $0xe0] sm:$0xf] %v428
                  %v430 = vld [vmem:[%s314 + $0x1bc] sm:$0xf]
                  %431 = vst [vmem:[%s315 + $0xe4] sm:$0xf] %v430
                  %v432 = vld [vmem:[%s314 + $0x1c0] sm:$0xf]
                  %433 = vst [vmem:[%s315 + $0xe8] sm:$0xf] %v432
                  %v434 = vld [vmem:[%s314 + $0x1c4] sm:$0xf]
                  %435 = vst [vmem:[%s315 + $0xec] sm:$0xf] %v434
                  %v436 = vld [vmem:[%s314 + $0x1c8] sm:$0xf]
                  %437 = vst [vmem:[%s315 + $0xf0] sm:$0xf] %v436
                  %v438 = vld [vmem:[%s314 + $0x1cc] sm:$0xf]
                  %439 = vst [vmem:[%s315 + $0xf4] sm:$0xf] %v438
                  %v440 = vld [vmem:[%s314 + $0x1d0] sm:$0xf]
                  %441 = vst [vmem:[%s315 + $0xf8] sm:$0xf] %v440
                  %v442 = vld [vmem:[%s314 + $0x1d4] sm:$0xf]
                  %443 = vst [vmem:[%s315 + $0xfc] sm:$0xf] %v442
                  %v444 = vld [vmem:[%s314 + $0x1d8] sm:$0xf]
                  %445 = vst [vmem:[%s315 + $0x100] sm:$0xf] %v444
                  %v446 = vld [vmem:[%s314 + $0x1dc] sm:$0xf]
                  %447 = vst [vmem:[%s315 + $0x104] sm:$0xf] %v446
                  %v448 = vld [vmem:[%s314 + $0x1e0] sm:$0xf]
                  %449 = vst [vmem:[%s315 + $0x108] sm:$0xf] %v448
                  %v450 = vld [vmem:[%s314 + $0x1e4] sm:$0xf]
                  %451 = vst [vmem:[%s315 + $0x10c] sm:$0xf] %v450
                  %v452 = vld [vmem:[%s314 + $0x1e8] sm:$0xf]
                  %453 = vst [vmem:[%s315 + $0x110] sm:$0xf] %v452
                  %v454 = vld [vmem:[%s314 + $0x1ec] sm:$0xf]
                  %455 = vst [vmem:[%s315 + $0x114] sm:$0xf] %v454
                  %v456 = vld [vmem:[%s314 + $0x1f0] sm:$0xf]
                  %457 = vst [vmem:[%s315 + $0x118] sm:$0xf] %v456
                  %v458 = vld [vmem:[%s314 + $0x1f4] sm:$0xf]
                  %459 = vst [vmem:[%s315 + $0x11c] sm:$0xf] %v458
                $region63: #{mnist_lenet_forward.2} parent=50 // loop_footer
                  %s313 = sadd.s32 1, %s309
                $region64: #{mnist_lenet_forward.2} parent=50 // loop_footer_branch
                  %308 = sbr.rel target = $region60
                $region65: #{mnist_lenet_forward.2} parent=50 // loop_exit
                  _
              $region51: #{mnist_lenet_forward.2} parent=35 // pred_fallthru
                _
            $region36: #{mnist_lenet_forward.2} parent=31 // pred_fallthru
              _
            // Predicated region
            $region37: #{mnist_lenet_forward.2} parent=31 // pred_check
              _
            $region38: #{mnist_lenet_forward.2} parent=31 // pred_check_branch
              %143 = sbr.rel (0) target = $region40
            $region39: #{mnist_lenet_forward.2} parent=31 // pred_region
              loop: start=0, step=1, limit=1
              $region41: #{mnist_lenet_forward.2} parent=39 // loop_pre_header
                _
              $region42: #{mnist_lenet_forward.2} parent=39 // loop_header
                %s146 = sphi 0, %s150
                %p147 = scmp.ge.s32.totalorder %s146, 1
                %s151 = sphi %s137, %s137
                %s152 = sphi %s134, %s134
              $region43: #{mnist_lenet_forward.2} parent=39 // loop_header_branch
                %149 = sbr.rel (%p147) target = $region47
              $region44: #{mnist_lenet_forward.2} parent=39 // loop_body
                %v153 = vld [vmem:[%s151] sm:$0xf]
                %154 = vst [vmem:[%s152] sm:$0xf] %v153
                %v155 = vld [vmem:[%s151 + $0x4] sm:$0xf]
                %156 = vst [vmem:[%s152 + $0x4] sm:$0xf] %v155
                %v157 = vld [vmem:[%s151 + $0x8] sm:$0xf]
                %158 = vst [vmem:[%s152 + $0x8] sm:$0xf] %v157
                %v159 = vld [vmem:[%s151 + $0xc] sm:$0xf]
                %160 = vst [vmem:[%s152 + $0xc] sm:$0xf] %v159
                %v161 = vld [vmem:[%s151 + $0x10] sm:$0xf]
                %162 = vst [vmem:[%s152 + $0x10] sm:$0xf] %v161
                %v163 = vld [vmem:[%s151 + $0x14] sm:$0xf]
                %164 = vst [vmem:[%s152 + $0x14] sm:$0xf] %v163
                %v165 = vld [vmem:[%s151 + $0x18] sm:$0xf]
                %166 = vst [vmem:[%s152 + $0x18] sm:$0xf] %v165
                %v167 = vld [vmem:[%s151 + $0x1c] sm:$0xf]
                %168 = vst [vmem:[%s152 + $0x1c] sm:$0xf] %v167
                %v169 = vld [vmem:[%s151 + $0x20] sm:$0xf]
                %170 = vst [vmem:[%s152 + $0x20] sm:$0xf] %v169
                %v171 = vld [vmem:[%s151 + $0x24] sm:$0xf]
                %172 = vst [vmem:[%s152 + $0x24] sm:$0xf] %v171
                %v173 = vld [vmem:[%s151 + $0x28] sm:$0xf]
                %174 = vst [vmem:[%s152 + $0x28] sm:$0xf] %v173
                %v175 = vld [vmem:[%s151 + $0x2c] sm:$0xf]
                %176 = vst [vmem:[%s152 + $0x2c] sm:$0xf] %v175
                %v177 = vld [vmem:[%s151 + $0x30] sm:$0xf]
                %178 = vst [vmem:[%s152 + $0x30] sm:$0xf] %v177
                %v179 = vld [vmem:[%s151 + $0x34] sm:$0xf]
                %180 = vst [vmem:[%s152 + $0x34] sm:$0xf] %v179
                %v181 = vld [vmem:[%s151 + $0x38] sm:$0xf]
                %182 = vst [vmem:[%s152 + $0x38] sm:$0xf] %v181
                %v183 = vld [vmem:[%s151 + $0x3c] sm:$0xf]
                %184 = vst [vmem:[%s152 + $0x3c] sm:$0xf] %v183
                %v185 = vld [vmem:[%s151 + $0x40] sm:$0xf]
                %186 = vst [vmem:[%s152 + $0x40] sm:$0xf] %v185
                %v187 = vld [vmem:[%s151 + $0x44] sm:$0xf]
                %188 = vst [vmem:[%s152 + $0x44] sm:$0xf] %v187
                %v189 = vld [vmem:[%s151 + $0x90] sm:$0xf]
                %190 = vst [vmem:[%s152 + $0x48] sm:$0xf] %v189
                %v191 = vld [vmem:[%s151 + $0x94] sm:$0xf]
                %192 = vst [vmem:[%s152 + $0x4c] sm:$0xf] %v191
                %v193 = vld [vmem:[%s151 + $0x98] sm:$0xf]
                %194 = vst [vmem:[%s152 + $0x50] sm:$0xf] %v193
                %v195 = vld [vmem:[%s151 + $0x9c] sm:$0xf]
                %196 = vst [vmem:[%s152 + $0x54] sm:$0xf] %v195
                %v197 = vld [vmem:[%s151 + $0xa0] sm:$0xf]
                %198 = vst [vmem:[%s152 + $0x58] sm:$0xf] %v197
                %v199 = vld [vmem:[%s151 + $0xa4] sm:$0xf]
                %200 = vst [vmem:[%s152 + $0x5c] sm:$0xf] %v199
                %v201 = vld [vmem:[%s151 + $0xa8] sm:$0xf]
                %202 = vst [vmem:[%s152 + $0x60] sm:$0xf] %v201
                %v203 = vld [vmem:[%s151 + $0xac] sm:$0xf]
                %204 = vst [vmem:[%s152 + $0x64] sm:$0xf] %v203
                %v205 = vld [vmem:[%s151 + $0xb0] sm:$0xf]
                %206 = vst [vmem:[%s152 + $0x68] sm:$0xf] %v205
                %v207 = vld [vmem:[%s151 + $0xb4] sm:$0xf]
                %208 = vst [vmem:[%s152 + $0x6c] sm:$0xf] %v207
                %v209 = vld [vmem:[%s151 + $0xb8] sm:$0xf]
                %210 = vst [vmem:[%s152 + $0x70] sm:$0xf] %v209
                %v211 = vld [vmem:[%s151 + $0xbc] sm:$0xf]
                %212 = vst [vmem:[%s152 + $0x74] sm:$0xf] %v211
                %v213 = vld [vmem:[%s151 + $0xc0] sm:$0xf]
                %214 = vst [vmem:[%s152 + $0x78] sm:$0xf] %v213
                %v215 = vld [vmem:[%s151 + $0xc4] sm:$0xf]
                %216 = vst [vmem:[%s152 + $0x7c] sm:$0xf] %v215
                %v217 = vld [vmem:[%s151 + $0xc8] sm:$0xf]
                %218 = vst [vmem:[%s152 + $0x80] sm:$0xf] %v217
                %v219 = vld [vmem:[%s151 + $0xcc] sm:$0xf]
                %220 = vst [vmem:[%s152 + $0x84] sm:$0xf] %v219
                %v221 = vld [vmem:[%s151 + $0xd0] sm:$0xf]
                %222 = vst [vmem:[%s152 + $0x88] sm:$0xf] %v221
                %v223 = vld [vmem:[%s151 + $0xd4] sm:$0xf]
                %224 = vst [vmem:[%s152 + $0x8c] sm:$0xf] %v223
                %v225 = vld [vmem:[%s151 + $0x120] sm:$0xf]
                %226 = vst [vmem:[%s152 + $0x90] sm:$0xf] %v225
                %v227 = vld [vmem:[%s151 + $0x124] sm:$0xf]
                %228 = vst [vmem:[%s152 + $0x94] sm:$0xf] %v227
                %v229 = vld [vmem:[%s151 + $0x128] sm:$0xf]
                %230 = vst [vmem:[%s152 + $0x98] sm:$0xf] %v229
                %v231 = vld [vmem:[%s151 + $0x12c] sm:$0xf]
                %232 = vst [vmem:[%s152 + $0x9c] sm:$0xf] %v231
                %v233 = vld [vmem:[%s151 + $0x130] sm:$0xf]
                %234 = vst [vmem:[%s152 + $0xa0] sm:$0xf] %v233
                %v235 = vld [vmem:[%s151 + $0x134] sm:$0xf]
                %236 = vst [vmem:[%s152 + $0xa4] sm:$0xf] %v235
                %v237 = vld [vmem:[%s151 + $0x138] sm:$0xf]
                %238 = vst [vmem:[%s152 + $0xa8] sm:$0xf] %v237
                %v239 = vld [vmem:[%s151 + $0x13c] sm:$0xf]
                %240 = vst [vmem:[%s152 + $0xac] sm:$0xf] %v239
                %v241 = vld [vmem:[%s151 + $0x140] sm:$0xf]
                %242 = vst [vmem:[%s152 + $0xb0] sm:$0xf] %v241
                %v243 = vld [vmem:[%s151 + $0x144] sm:$0xf]
                %244 = vst [vmem:[%s152 + $0xb4] sm:$0xf] %v243
                %v245 = vld [vmem:[%s151 + $0x148] sm:$0xf]
                %246 = vst [vmem:[%s152 + $0xb8] sm:$0xf] %v245
                %v247 = vld [vmem:[%s151 + $0x14c] sm:$0xf]
                %248 = vst [vmem:[%s152 + $0xbc] sm:$0xf] %v247
                %v249 = vld [vmem:[%s151 + $0x150] sm:$0xf]
                %250 = vst [vmem:[%s152 + $0xc0] sm:$0xf] %v249
                %v251 = vld [vmem:[%s151 + $0x154] sm:$0xf]
                %252 = vst [vmem:[%s152 + $0xc4] sm:$0xf] %v251
                %v253 = vld [vmem:[%s151 + $0x158] sm:$0xf]
                %254 = vst [vmem:[%s152 + $0xc8] sm:$0xf] %v253
                %v255 = vld [vmem:[%s151 + $0x15c] sm:$0xf]
                %256 = vst [vmem:[%s152 + $0xcc] sm:$0xf] %v255
                %v257 = vld [vmem:[%s151 + $0x160] sm:$0xf]
                %258 = vst [vmem:[%s152 + $0xd0] sm:$0xf] %v257
                %v259 = vld [vmem:[%s151 + $0x164] sm:$0xf]
                %260 = vst [vmem:[%s152 + $0xd4] sm:$0xf] %v259
                %v261 = vld [vmem:[%s151 + $0x1b0] sm:$0xf]
                %262 = vst [vmem:[%s152 + $0xd8] sm:$0xf] %v261
                %v263 = vld [vmem:[%s151 + $0x1b4] sm:$0xf]
                %264 = vst [vmem:[%s152 + $0xdc] sm:$0xf] %v263
                %v265 = vld [vmem:[%s151 + $0x1b8] sm:$0xf]
                %266 = vst [vmem:[%s152 + $0xe0] sm:$0xf] %v265
                %v267 = vld [vmem:[%s151 + $0x1bc] sm:$0xf]
                %268 = vst [vmem:[%s152 + $0xe4] sm:$0xf] %v267
                %v269 = vld [vmem:[%s151 + $0x1c0] sm:$0xf]
                %270 = vst [vmem:[%s152 + $0xe8] sm:$0xf] %v269
                %v271 = vld [vmem:[%s151 + $0x1c4] sm:$0xf]
                %272 = vst [vmem:[%s152 + $0xec] sm:$0xf] %v271
                %v273 = vld [vmem:[%s151 + $0x1c8] sm:$0xf]
                %274 = vst [vmem:[%s152 + $0xf0] sm:$0xf] %v273
                %v275 = vld [vmem:[%s151 + $0x1cc] sm:$0xf]
                %276 = vst [vmem:[%s152 + $0xf4] sm:$0xf] %v275
                %v277 = vld [vmem:[%s151 + $0x1d0] sm:$0xf]
                %278 = vst [vmem:[%s152 + $0xf8] sm:$0xf] %v277
                %v279 = vld [vmem:[%s151 + $0x1d4] sm:$0xf]
                %280 = vst [vmem:[%s152 + $0xfc] sm:$0xf] %v279
                %v281 = vld [vmem:[%s151 + $0x1d8] sm:$0xf]
                %282 = vst [vmem:[%s152 + $0x100] sm:$0xf] %v281
                %v283 = vld [vmem:[%s151 + $0x1dc] sm:$0xf]
                %284 = vst [vmem:[%s152 + $0x104] sm:$0xf] %v283
                %v285 = vld [vmem:[%s151 + $0x1e0] sm:$0xf]
                %286 = vst [vmem:[%s152 + $0x108] sm:$0xf] %v285
                %v287 = vld [vmem:[%s151 + $0x1e4] sm:$0xf]
                %288 = vst [vmem:[%s152 + $0x10c] sm:$0xf] %v287
                %v289 = vld [vmem:[%s151 + $0x1e8] sm:$0xf]
                %290 = vst [vmem:[%s152 + $0x110] sm:$0xf] %v289
                %v291 = vld [vmem:[%s151 + $0x1ec] sm:$0xf]
                %292 = vst [vmem:[%s152 + $0x114] sm:$0xf] %v291
                %v293 = vld [vmem:[%s151 + $0x1f0] sm:$0xf]
                %294 = vst [vmem:[%s152 + $0x118] sm:$0xf] %v293
                %v295 = vld [vmem:[%s151 + $0x1f4] sm:$0xf]
                %296 = vst [vmem:[%s152 + $0x11c] sm:$0xf] %v295
              $region45: #{mnist_lenet_forward.2} parent=39 // loop_footer
                %s150 = sadd.s32 1, %s146
              $region46: #{mnist_lenet_forward.2} parent=39 // loop_footer_branch
                %145 = sbr.rel target = $region42
              $region47: #{mnist_lenet_forward.2} parent=39 // loop_exit
                _
            $region40: #{mnist_lenet_forward.2} parent=31 // pred_fallthru
              _
          $region32: #{mnist_lenet_forward.2} parent=27 // pred_fallthru
            _
          %460 = vnop
        $region28: #{mnist_lenet_forward.2} parent=23 // pred_fallthru
          _
      $region24: #{mnist_lenet_forward.2} parent=5 // pred_fallthru
        _
      %p461 = scmp.le.s32.totalorder 1, %s9
      %p462 = scmp.lt.s32.totalorder %s9, 3
      %p463 = pnand %p461, %p462
      %p464 = pneg %p463
      // Predicated region
      $region66: #{mnist_lenet_forward.2} parent=5 // pred_check
        _
      $region67: #{mnist_lenet_forward.2} parent=5 // pred_check_branch
        %466 = sbr.rel (%p463) target = $region69
      $region68: #{mnist_lenet_forward.2} parent=5 // pred_region
        %s467 = ssub.s32 %s9, 1
        %s468 = sand.u32 %s22, 1
        %s469 = sand.u32 %s22, 1
        %s470 = smul.addr %s469, 288
        %s471 = scalar_lea.vmem [#allocation2], %s470
        // Predicated region
        $region70: #{mnist_lenet_forward.2} parent=68 // pred_check
          %p472 = pneg %p35
        $region71: #{mnist_lenet_forward.2} parent=68 // pred_check_branch
          %474 = sbr.rel (%p472) target = $region73
        $region72: #{mnist_lenet_forward.2} parent=68 // pred_region
          _
        $region73: #{mnist_lenet_forward.2} parent=68 // pred_fallthru
          _
        %s475 = sand.u32 %s22, 1
        %s476 = sand.u32 %s22, 1
        %s477 = smul.addr %s476, 288
        %s478 = scalar_lea.vmem [#allocation2], %s477
        %p479 = pneg %p35
        %p480 = pneg %p32
        %p481 = pneg %p56
        %p482 = pneg %p53
        %p483 = pneg %p77
        %p484 = pneg %p74
        %p485 = pneg %p103
        %p486 = pneg %p100
        %s487 = smul.u32 18, %s14
        %p488 = scmp.lt.s32.totalorder %s487, 35
        %s489 = scalar_select %p488, %s487, 35
        %s490 = smul.addr %s489, 4
        %s491 = scalar_lea.vmem %s3, %s490
        %s492 = smul.u32 18, %s14
        %s493 = smul.u32 18, %s14
        %p494 = scmp.lt.s32.totalorder %s493, 35
        %s495 = scalar_select %p494, %s493, 35
        %s496 = smul.addr %s495, 4
        %s497 = scalar_lea.vmem %s3, %s496
        %s498 = smul.u32 18, %s14
        %v500 = vld [vmem:[%s471] sm:$0xf]
        %v501 = vld [vmem:[%s471 + $0x4] sm:$0xf]
        %v502 = vld [vmem:[%s471 + $0x8] sm:$0xf]
        %v503 = vld [vmem:[%s471 + $0xc] sm:$0xf]
        %v504 = vld [vmem:[%s471 + $0x10] sm:$0xf]
        %v505 = vld [vmem:[%s471 + $0x14] sm:$0xf]
        %v506 = vld [vmem:[%s471 + $0x18] sm:$0xf]
        %v507 = vld [vmem:[%s471 + $0x1c] sm:$0xf]
        %v508 = vld [vmem:[%s471 + $0x20] sm:$0xf]
        %v509 = vld [vmem:[%s471 + $0x24] sm:$0xf]
        %v510 = vld [vmem:[%s471 + $0x28] sm:$0xf]
        %v511 = vld [vmem:[%s471 + $0x2c] sm:$0xf]
        %v512 = vld [vmem:[%s471 + $0x30] sm:$0xf]
        %v513 = vld [vmem:[%s471 + $0x34] sm:$0xf]
        %v514 = vld [vmem:[%s471 + $0x38] sm:$0xf]
        %v515 = vld [vmem:[%s471 + $0x3c] sm:$0xf]
        %v516 = vld [vmem:[%s471 + $0x40] sm:$0xf]
        %v517 = vld [vmem:[%s471 + $0x44] sm:$0xf]
        %v518 = vld [vmem:[%s471 + $0x48] sm:$0xf]
        %v519 = vld [vmem:[%s471 + $0x4c] sm:$0xf]
        %v520 = vld [vmem:[%s471 + $0x50] sm:$0xf]
        %v521 = vld [vmem:[%s471 + $0x54] sm:$0xf]
        %v522 = vld [vmem:[%s471 + $0x58] sm:$0xf]
        %v523 = vld [vmem:[%s471 + $0x5c] sm:$0xf]
        %v524 = vld [vmem:[%s471 + $0x60] sm:$0xf]
        %v525 = vld [vmem:[%s471 + $0x64] sm:$0xf]
        %v526 = vld [vmem:[%s471 + $0x68] sm:$0xf]
        %v527 = vld [vmem:[%s471 + $0x6c] sm:$0xf]
        %v528 = vld [vmem:[%s471 + $0x70] sm:$0xf]
        %v529 = vld [vmem:[%s471 + $0x74] sm:$0xf]
        %v530 = vld [vmem:[%s471 + $0x78] sm:$0xf]
        %v531 = vld [vmem:[%s471 + $0x7c] sm:$0xf]
        %v532 = vld [vmem:[%s471 + $0x80] sm:$0xf]
        %v533 = vld [vmem:[%s471 + $0x84] sm:$0xf]
        %v534 = vld [vmem:[%s471 + $0x88] sm:$0xf]
        %v535 = vld [vmem:[%s471 + $0x8c] sm:$0xf]
        %v536 = vld [vmem:[%s471 + $0x90] sm:$0xf]
        %v537 = vld [vmem:[%s471 + $0x94] sm:$0xf]
        %v538 = vld [vmem:[%s471 + $0x98] sm:$0xf]
        %v539 = vld [vmem:[%s471 + $0x9c] sm:$0xf]
        %v540 = vld [vmem:[%s471 + $0xa0] sm:$0xf]
        %v541 = vld [vmem:[%s471 + $0xa4] sm:$0xf]
        %v542 = vld [vmem:[%s471 + $0xa8] sm:$0xf]
        %v543 = vld [vmem:[%s471 + $0xac] sm:$0xf]
        %v544 = vld [vmem:[%s471 + $0xb0] sm:$0xf]
        %v545 = vld [vmem:[%s471 + $0xb4] sm:$0xf]
        %v546 = vld [vmem:[%s471 + $0xb8] sm:$0xf]
        %v547 = vld [vmem:[%s471 + $0xbc] sm:$0xf]
        %v548 = vld [vmem:[%s471 + $0xc0] sm:$0xf]
        %v549 = vld [vmem:[%s471 + $0xc4] sm:$0xf]
        %v550 = vld [vmem:[%s471 + $0xc8] sm:$0xf]
        %v551 = vld [vmem:[%s471 + $0xcc] sm:$0xf]
        %v552 = vld [vmem:[%s471 + $0xd0] sm:$0xf]
        %v553 = vld [vmem:[%s471 + $0xd4] sm:$0xf]
        %v554 = vld [vmem:[%s471 + $0xd8] sm:$0xf]
        %v555 = vld [vmem:[%s471 + $0xdc] sm:$0xf]
        %v556 = vld [vmem:[%s471 + $0xe0] sm:$0xf]
        %v557 = vld [vmem:[%s471 + $0xe4] sm:$0xf]
        %v558 = vld [vmem:[%s471 + $0xe8] sm:$0xf]
        %v559 = vld [vmem:[%s471 + $0xec] sm:$0xf]
        %v560 = vld [vmem:[%s471 + $0xf0] sm:$0xf]
        %v561 = vld [vmem:[%s471 + $0xf4] sm:$0xf]
        %v562 = vld [vmem:[%s471 + $0xf8] sm:$0xf]
        %v563 = vld [vmem:[%s471 + $0xfc] sm:$0xf]
        %v564 = vld [vmem:[%s471 + $0x100] sm:$0xf]
        %v565 = vld [vmem:[%s471 + $0x104] sm:$0xf]
        %v566 = vld [vmem:[%s471 + $0x108] sm:$0xf]
        %v567 = vld [vmem:[%s471 + $0x10c] sm:$0xf]
        %v568 = vld [vmem:[%s471 + $0x110] sm:$0xf]
        %v569 = vld [vmem:[%s471 + $0x114] sm:$0xf]
        %v570 = vld [vmem:[%s471 + $0x118] sm:$0xf]
        %v571 = vld [vmem:[%s471 + $0x11c] sm:$0xf]
        %v572 = vld [vmem:[%s1] sm:$0xf]
        %v573 = vld [vmem:[%s1 + $0x4] sm:$0xf]
        %v574 = vld [vmem:[%s1 + $0x8] sm:$0xf]
        %v575 = vld [vmem:[%s1 + $0xc] sm:$0xf]
        %v648 = vunpack.c.l.b16 %v500
        %v649 = vunpack.c.l.b16 %v501
        %v650 = vunpack.c.l.b16 %v502
        %v651 = vunpack.c.l.b16 %v503
        %v652 = vunpack.c.l.b16 %v504
        %v653 = vunpack.c.l.b16 %v505
        %v654 = vunpack.c.l.b16 %v506
        %v655 = vunpack.c.l.b16 %v507
        %v656 = vunpack.c.l.b16 %v508
        %v657 = vunpack.c.l.b16 %v509
        %v658 = vunpack.c.l.b16 %v510
        %v659 = vunpack.c.l.b16 %v511
        %v660 = vunpack.c.l.b16 %v512
        %v661 = vunpack.c.l.b16 %v513
        %v662 = vunpack.c.l.b16 %v514
        %v663 = vunpack.c.l.b16 %v515
        %v664 = vunpack.c.l.b16 %v516
        %v665 = vunpack.c.l.b16 %v517
        %v666 = vunpack.c.l.b16 %v518
        %v667 = vunpack.c.l.b16 %v519
        %v668 = vunpack.c.l.b16 %v520
        %v669 = vunpack.c.l.b16 %v521
        %v670 = vunpack.c.l.b16 %v522
        %v671 = vunpack.c.l.b16 %v523
        %v672 = vunpack.c.l.b16 %v524
        %v673 = vunpack.c.l.b16 %v525
        %v674 = vunpack.c.l.b16 %v526
        %v675 = vunpack.c.l.b16 %v527
        %v676 = vunpack.c.l.b16 %v528
        %v677 = vunpack.c.l.b16 %v529
        %v678 = vunpack.c.l.b16 %v530
        %v679 = vunpack.c.l.b16 %v531
        %v680 = vunpack.c.l.b16 %v532
        %v681 = vunpack.c.l.b16 %v533
        %v682 = vunpack.c.l.b16 %v534
        %v683 = vunpack.c.l.b16 %v535
        %v684 = vunpack.c.l.b16 %v536
        %v685 = vunpack.c.l.b16 %v537
        %v686 = vunpack.c.l.b16 %v538
        %v687 = vunpack.c.l.b16 %v539
        %v688 = vunpack.c.l.b16 %v540
        %v689 = vunpack.c.l.b16 %v541
        %v690 = vunpack.c.l.b16 %v542
        %v691 = vunpack.c.l.b16 %v543
        %v692 = vunpack.c.l.b16 %v544
        %v693 = vunpack.c.l.b16 %v545
        %v694 = vunpack.c.l.b16 %v546
        %v695 = vunpack.c.l.b16 %v547
        %v696 = vunpack.c.l.b16 %v548
        %v697 = vunpack.c.l.b16 %v549
        %v698 = vunpack.c.l.b16 %v550
        %v699 = vunpack.c.l.b16 %v551
        %v700 = vunpack.c.l.b16 %v552
        %v701 = vunpack.c.l.b16 %v553
        %v702 = vunpack.c.l.b16 %v554
        %v703 = vunpack.c.l.b16 %v555
        %v704 = vunpack.c.l.b16 %v556
        %v705 = vunpack.c.l.b16 %v557
        %v706 = vunpack.c.l.b16 %v558
        %v707 = vunpack.c.l.b16 %v559
        %v708 = vunpack.c.l.b16 %v560
        %v709 = vunpack.c.l.b16 %v561
        %v710 = vunpack.c.l.b16 %v562
        %v711 = vunpack.c.l.b16 %v563
        %v712 = vunpack.c.l.b16 %v564
        %v713 = vunpack.c.l.b16 %v565
        %v714 = vunpack.c.l.b16 %v566
        %v715 = vunpack.c.l.b16 %v567
        %v716 = vunpack.c.l.b16 %v568
        %v717 = vunpack.c.l.b16 %v569
        %v718 = vunpack.c.l.b16 %v570
        %v719 = vunpack.c.l.b16 %v571
        %v720 = vpack.c.b16 %v649, %v648
        %v721 = vpack.c.b16 %v651, %v650
        %v722 = vpack.c.b16 %v653, %v652
        %v723 = vpack.c.b16 %v655, %v654
        %v724 = vpack.c.b16 %v657, %v656
        %v725 = vpack.c.b16 %v659, %v658
        %v726 = vpack.c.b16 %v661, %v660
        %v727 = vpack.c.b16 %v663, %v662
        %v728 = vpack.c.b16 %v665, %v664
        %v729 = vpack.c.b16 %v667, %v666
        %v730 = vpack.c.b16 %v669, %v668
        %v731 = vpack.c.b16 %v671, %v670
        %v732 = vpack.c.b16 %v673, %v672
        %v733 = vpack.c.b16 %v675, %v674
        %v734 = vpack.c.b16 %v677, %v676
        %v735 = vpack.c.b16 %v679, %v678
        %v736 = vpack.c.b16 %v681, %v680
        %v737 = vpack.c.b16 %v683, %v682
        %v738 = vpack.c.b16 %v685, %v684
        %v739 = vpack.c.b16 %v687, %v686
        %v740 = vpack.c.b16 %v689, %v688
        %v741 = vpack.c.b16 %v691, %v690
        %v742 = vpack.c.b16 %v693, %v692
        %v743 = vpack.c.b16 %v695, %v694
        %v744 = vpack.c.b16 %v697, %v696
        %v745 = vpack.c.b16 %v699, %v698
        %v746 = vpack.c.b16 %v701, %v700
        %v747 = vpack.c.b16 %v703, %v702
        %v748 = vpack.c.b16 %v705, %v704
        %v749 = vpack.c.b16 %v707, %v706
        %v750 = vpack.c.b16 %v709, %v708
        %v751 = vpack.c.b16 %v711, %v710
        %v752 = vpack.c.b16 %v713, %v712
        %v753 = vpack.c.b16 %v715, %v714
        %v754 = vpack.c.b16 %v717, %v716
        %v755 = vpack.c.b16 %v719, %v718
        %v760 = vunpack.c.l.b16 %v572
        %v761 = vunpack.c.l.b16 %v573
        %v762 = vunpack.c.l.b16 %v574
        %v763 = vunpack.c.l.b16 %v575
        %v764 = vpack.c.b16 %v761, %v760
        %v765 = vpack.c.b16 %v763, %v762
        %vm768 = vcmask 261120
        %v770 = vsel %vm768, %v720, 0
        %v773 = vsel %vm768, %v721, 0
        %v776 = vsel %vm768, %v722, 0
        %v779 = vsel %vm768, %v723, 0
        %v782 = vsel %vm768, %v724, 0
        %v785 = vsel %vm768, %v725, 0
        %v788 = vsel %vm768, %v726, 0
        %v791 = vsel %vm768, %v727, 0
        %v794 = vsel %vm768, %v728, 0
        %v797 = vsel %vm768, %v729, 0
        %v800 = vsel %vm768, %v730, 0
        %v803 = vsel %vm768, %v731, 0
        %v806 = vsel %vm768, %v732, 0
        %v809 = vsel %vm768, %v733, 0
        %v812 = vsel %vm768, %v734, 0
        %v815 = vsel %vm768, %v735, 0
        %v818 = vsel %vm768, %v736, 0
        %v821 = vsel %vm768, %v737, 0
        %v824 = vsel %vm768, %v738, 0
        %v827 = vsel %vm768, %v739, 0
        %v830 = vsel %vm768, %v740, 0
        %v833 = vsel %vm768, %v741, 0
        %v836 = vsel %vm768, %v742, 0
        %v839 = vsel %vm768, %v743, 0
        %v842 = vsel %vm768, %v744, 0
        %v845 = vsel %vm768, %v745, 0
        %v848 = vsel %vm768, %v746, 0
        %v851 = vsel %vm768, %v747, 0
        %v854 = vsel %vm768, %v748, 0
        %v857 = vsel %vm768, %v749, 0
        %v860 = vsel %vm768, %v750, 0
        %v863 = vsel %vm768, %v751, 0
        %v866 = vsel %vm768, %v752, 0
        %v869 = vsel %vm768, %v753, 0
        %v872 = vsel %vm768, %v754, 0
        %v875 = vsel %vm768, %v755, 0
        %877 = vmatprep.subr.bf16.mxu0 0
        %878 = vmatpush1.bf16.msra.mxu0 %v764
        %879 = vmatprep.subr.bf16.mxu0 0
        %880 = vmatpush1.bf16.msra.mxu0 %v765
        %881 = vmatprep.subr.bf16.mxu0 0
        %882 = vmatpush1.bf16.msra.mxu0 0
        %883 = vmatprep.subr.bf16.mxu0 0
        %884 = vmatpush1.bf16.msra.mxu0 0
        %885 = vmatprep.subr.bf16.mxu0 0
        %886 = vmatpush1.bf16.msra.mxu0 0
        %887 = vmatprep.subr.bf16.mxu0 0
        %888 = vmatpush1.bf16.msra.mxu0 0
        %889 = vmatprep.subr.bf16.mxu0 0
        %890 = vmatpush1.bf16.msra.mxu0 0
        %891 = vmatprep.subr.bf16.mxu0 0
        %892 = vmatpush1.bf16.msra.mxu0 0
        %893 = vmatprep.subr.bf16.mxu0 0
        %894 = vmatpush1.bf16.msra.mxu0 0
        %895 = vmatprep.subr.bf16.mxu0 0
        %896 = vmatpush1.bf16.msra.mxu0 0
        %897 = vmatprep.subr.bf16.mxu0 0
        %898 = vmatpush1.bf16.msra.mxu0 0
        %899 = vmatprep.subr.bf16.mxu0 0
        %900 = vmatpush1.bf16.msra.mxu0 0
        %901 = vmatprep.subr.bf16.mxu0 0
        %902 = vmatpush1.bf16.msra.mxu0 0
        %903 = vmatprep.subr.bf16.mxu0 0
        %904 = vmatpush1.bf16.msra.mxu0 0
        %905 = vmatprep.subr.bf16.mxu0 0
        %906 = vmatpush1.bf16.msra.mxu0 0
        %907 = vmatprep.subr.bf16.mxu0 0
        %908 = vmatpush1.bf16.msra.mxu0 0
        %909 = vmatprep.mubr.bf16.mxu0 0
        %910 = vmatmul.mubr.bf16.gmra.mrb[0].mxu0 %v770
        %v911 = vpop.f32.mrb[0].mxu0
        %v912 = vadd.f32 0.0, %v911
        %v913 = vpop.f32.mrb[0].mxu0
        %v914 = vpop.f32.mrb[0].mxu0
        %v915 = vadd.f32 0.0, %v914
        %v916 = vpop.f32.mrb[0].mxu0
        %917 = vmatprep.mubr.bf16.mxu0 0
        %918 = vmatmul.mubr.bf16.gmra.mrb[0].mxu0 %v773
        %v919 = vpop.f32.mrb[0].mxu0
        %v920 = vadd.f32 0.0, %v919
        %v921 = vpop.f32.mrb[0].mxu0
        %v922 = vpop.f32.mrb[0].mxu0
        %v923 = vadd.f32 0.0, %v922
        %v924 = vpop.f32.mrb[0].mxu0
        %925 = vmatprep.mubr.bf16.mxu0 0
        %926 = vmatmul.mubr.bf16.gmra.mrb[0].mxu0 %v776
        %v927 = vpop.f32.mrb[0].mxu0
        %v928 = vadd.f32 0.0, %v927
        %v929 = vpop.f32.mrb[0].mxu0
        %v930 = vpop.f32.mrb[0].mxu0
        %v931 = vadd.f32 0.0, %v930
        %v932 = vpop.f32.mrb[0].mxu0
        %933 = vmatprep.mubr.bf16.mxu0 0
        %934 = vmatmul.mubr.bf16.gmra.mrb[0].mxu0 %v779
        %v935 = vpop.f32.mrb[0].mxu0
        %v936 = vadd.f32 0.0, %v935
        %v937 = vpop.f32.mrb[0].mxu0
        %v938 = vpop.f32.mrb[0].mxu0
        %v939 = vadd.f32 0.0, %v938
        %v940 = vpop.f32.mrb[0].mxu0
        %941 = vmatprep.mubr.bf16.mxu0 0
        %942 = vmatmul.mubr.bf16.gmra.mrb[0].mxu0 %v782
        %v943 = vpop.f32.mrb[0].mxu0
        %v944 = vadd.f32 0.0, %v943
        %v945 = vpop.f32.mrb[0].mxu0
        %v946 = vpop.f32.mrb[0].mxu0
        %v947 = vadd.f32 0.0, %v946
        %v948 = vpop.f32.mrb[0].mxu0
        %949 = vmatprep.mubr.bf16.mxu0 0
        %950 = vmatmul.mubr.bf16.gmra.mrb[0].mxu0 %v785
        %v951 = vpop.f32.mrb[0].mxu0
        %v952 = vadd.f32 0.0, %v951
        %v953 = vpop.f32.mrb[0].mxu0
        %v954 = vpop.f32.mrb[0].mxu0
        %v955 = vadd.f32 0.0, %v954
        %v956 = vpop.f32.mrb[0].mxu0
        %957 = vmatprep.mubr.bf16.mxu0 0
        %958 = vmatmul.mubr.bf16.gmra.mrb[0].mxu0 %v788
        %v959 = vpop.f32.mrb[0].mxu0
        %v960 = vadd.f32 0.0, %v959
        %v961 = vpop.f32.mrb[0].mxu0
        %v962 = vpop.f32.mrb[0].mxu0
        %v963 = vadd.f32 0.0, %v962
        %v964 = vpop.f32.mrb[0].mxu0
        %965 = vmatprep.mubr.bf16.mxu0 0
        %966 = vmatmul.mubr.bf16.gmra.mrb[0].mxu0 %v791
        %v967 = vpop.f32.mrb[0].mxu0
        %v968 = vadd.f32 0.0, %v967
        %v969 = vpop.f32.mrb[0].mxu0
        %v970 = vpop.f32.mrb[0].mxu0
        %v971 = vadd.f32 0.0, %v970
        %v972 = vpop.f32.mrb[0].mxu0
        %973 = vmatprep.mubr.bf16.mxu0 0
        %974 = vmatmul.mubr.bf16.gmra.mrb[0].mxu0 %v794
        %v975 = vpop.f32.mrb[0].mxu0
        %v976 = vadd.f32 0.0, %v975
        %v977 = vpop.f32.mrb[0].mxu0
        %v978 = vpop.f32.mrb[0].mxu0
        %v979 = vadd.f32 0.0, %v978
        %v980 = vpop.f32.mrb[0].mxu0
        %981 = vmatprep.mubr.bf16.mxu0 0
        %982 = vmatmul.mubr.bf16.gmra.mrb[0].mxu0 %v797
        %v983 = vpop.f32.mrb[0].mxu0
        %v984 = vadd.f32 0.0, %v983
        %v985 = vpop.f32.mrb[0].mxu0
        %v986 = vpop.f32.mrb[0].mxu0
        %v987 = vadd.f32 0.0, %v986
        %v988 = vpop.f32.mrb[0].mxu0
        %989 = vmatprep.mubr.bf16.mxu0 0
        %990 = vmatmul.mubr.bf16.gmra.mrb[0].mxu0 %v800
        %v991 = vpop.f32.mrb[0].mxu0
        %v992 = vadd.f32 0.0, %v991
        %v993 = vpop.f32.mrb[0].mxu0
        %v994 = vpop.f32.mrb[0].mxu0
        %v995 = vadd.f32 0.0, %v994
        %v996 = vpop.f32.mrb[0].mxu0
        %997 = vmatprep.mubr.bf16.mxu0 0
        %998 = vmatmul.mubr.bf16.gmra.mrb[0].mxu0 %v803
        %v999 = vpop.f32.mrb[0].mxu0
        %v1000 = vadd.f32 0.0, %v999
        %v1001 = vpop.f32.mrb[0].mxu0
        %v1002 = vpop.f32.mrb[0].mxu0
        %v1003 = vadd.f32 0.0, %v1002
        %v1004 = vpop.f32.mrb[0].mxu0
        %1005 = vmatprep.mubr.bf16.mxu0 0
        %1006 = vmatmul.mubr.bf16.gmra.mrb[0].mxu0 %v806
        %v1007 = vpop.f32.mrb[0].mxu0
        %v1008 = vadd.f32 0.0, %v1007
        %v1009 = vpop.f32.mrb[0].mxu0
        %v1010 = vpop.f32.mrb[0].mxu0
        %v1011 = vadd.f32 0.0, %v1010
        %v1012 = vpop.f32.mrb[0].mxu0
        %1013 = vmatprep.mubr.bf16.mxu0 0
        %1014 = vmatmul.mubr.bf16.gmra.mrb[0].mxu0 %v809
        %v1015 = vpop.f32.mrb[0].mxu0
        %v1016 = vadd.f32 0.0, %v1015
        %v1017 = vpop.f32.mrb[0].mxu0
        %v1018 = vpop.f32.mrb[0].mxu0
        %v1019 = vadd.f32 0.0, %v1018
        %v1020 = vpop.f32.mrb[0].mxu0
        %1021 = vmatprep.mubr.bf16.mxu0 0
        %1022 = vmatmul.mubr.bf16.gmra.mrb[0].mxu0 %v812
        %v1023 = vpop.f32.mrb[0].mxu0
        %v1024 = vadd.f32 0.0, %v1023
        %v1025 = vpop.f32.mrb[0].mxu0
        %v1026 = vpop.f32.mrb[0].mxu0
        %v1027 = vadd.f32 0.0, %v1026
        %v1028 = vpop.f32.mrb[0].mxu0
        %1029 = vmatprep.mubr.bf16.mxu0 0
        %1030 = vmatmul.mubr.bf16.gmra.mrb[0].mxu0 %v815
        %v1031 = vpop.f32.mrb[0].mxu0
        %v1032 = vadd.f32 0.0, %v1031
        %v1033 = vpop.f32.mrb[0].mxu0
        %v1034 = vpop.f32.mrb[0].mxu0
        %v1035 = vadd.f32 0.0, %v1034
        %v1036 = vpop.f32.mrb[0].mxu0
        %1037 = vmatprep.mubr.bf16.mxu0 0
        %1038 = vmatmul.mubr.bf16.gmra.mrb[0].mxu0 %v818
        %v1039 = vpop.f32.mrb[0].mxu0
        %v1040 = vadd.f32 0.0, %v1039
        %v1041 = vpop.f32.mrb[0].mxu0
        %v1042 = vpop.f32.mrb[0].mxu0
        %v1043 = vadd.f32 0.0, %v1042
        %v1044 = vpop.f32.mrb[0].mxu0
        %1045 = vmatprep.mubr.bf16.mxu0 0
        %1046 = vmatmul.mubr.bf16.gmra.mrb[0].mxu0 %v821
        %v1047 = vpop.f32.mrb[0].mxu0
        %v1048 = vadd.f32 0.0, %v1047
        %v1049 = vpop.f32.mrb[0].mxu0
        %v1050 = vpop.f32.mrb[0].mxu0
        %v1051 = vadd.f32 0.0, %v1050
        %v1052 = vpop.f32.mrb[0].mxu0
        %1053 = vmatprep.mubr.bf16.mxu0 0
        %1054 = vmatmul.mubr.bf16.gmra.mrb[0].mxu0 %v824
        %v1055 = vpop.f32.mrb[0].mxu0
        %v1056 = vadd.f32 0.0, %v1055
        %v1057 = vpop.f32.mrb[0].mxu0
        %v1058 = vpop.f32.mrb[0].mxu0
        %v1059 = vadd.f32 0.0, %v1058
        %v1060 = vpop.f32.mrb[0].mxu0
        %1061 = vmatprep.mubr.bf16.mxu0 0
        %1062 = vmatmul.mubr.bf16.gmra.mrb[0].mxu0 %v827
        %v1063 = vpop.f32.mrb[0].mxu0
        %v1064 = vadd.f32 0.0, %v1063
        %v1065 = vpop.f32.mrb[0].mxu0
        %v1066 = vpop.f32.mrb[0].mxu0
        %v1067 = vadd.f32 0.0, %v1066
        %v1068 = vpop.f32.mrb[0].mxu0
        %1069 = vmatprep.mubr.bf16.mxu0 0
        %1070 = vmatmul.mubr.bf16.gmra.mrb[0].mxu0 %v830
        %v1071 = vpop.f32.mrb[0].mxu0
        %v1072 = vadd.f32 0.0, %v1071
        %v1073 = vpop.f32.mrb[0].mxu0
        %v1074 = vpop.f32.mrb[0].mxu0
        %v1075 = vadd.f32 0.0, %v1074
        %v1076 = vpop.f32.mrb[0].mxu0
        %1077 = vmatprep.mubr.bf16.mxu0 0
        %1078 = vmatmul.mubr.bf16.gmra.mrb[0].mxu0 %v833
        %v1079 = vpop.f32.mrb[0].mxu0
        %v1080 = vadd.f32 0.0, %v1079
        %v1081 = vpop.f32.mrb[0].mxu0
        %v1082 = vpop.f32.mrb[0].mxu0
        %v1083 = vadd.f32 0.0, %v1082
        %v1084 = vpop.f32.mrb[0].mxu0
        %1085 = vmatprep.mubr.bf16.mxu0 0
        %1086 = vmatmul.mubr.bf16.gmra.mrb[0].mxu0 %v836
        %v1087 = vpop.f32.mrb[0].mxu0
        %v1088 = vadd.f32 0.0, %v1087
        %v1089 = vpop.f32.mrb[0].mxu0
        %v1090 = vpop.f32.mrb[0].mxu0
        %v1091 = vadd.f32 0.0, %v1090
        %v1092 = vpop.f32.mrb[0].mxu0
        %1093 = vmatprep.mubr.bf16.mxu0 0
        %1094 = vmatmul.mubr.bf16.gmra.mrb[0].mxu0 %v839
        %v1095 = vpop.f32.mrb[0].mxu0
        %v1096 = vadd.f32 0.0, %v1095
        %v1097 = vpop.f32.mrb[0].mxu0
        %v1098 = vpop.f32.mrb[0].mxu0
        %v1099 = vadd.f32 0.0, %v1098
        %v1100 = vpop.f32.mrb[0].mxu0
        %1101 = vmatprep.mubr.bf16.mxu0 0
        %1102 = vmatmul.mubr.bf16.gmra.mrb[0].mxu0 %v842
        %v1103 = vpop.f32.mrb[0].mxu0
        %v1104 = vadd.f32 0.0, %v1103
        %v1105 = vpop.f32.mrb[0].mxu0
        %v1106 = vpop.f32.mrb[0].mxu0
        %v1107 = vadd.f32 0.0, %v1106
        %v1108 = vpop.f32.mrb[0].mxu0
        %1109 = vmatprep.mubr.bf16.mxu0 0
        %1110 = vmatmul.mubr.bf16.gmra.mrb[0].mxu0 %v845
        %v1111 = vpop.f32.mrb[0].mxu0
        %v1112 = vadd.f32 0.0, %v1111
        %v1113 = vpop.f32.mrb[0].mxu0
        %v1114 = vpop.f32.mrb[0].mxu0
        %v1115 = vadd.f32 0.0, %v1114
        %v1116 = vpop.f32.mrb[0].mxu0
        %1117 = vmatprep.mubr.bf16.mxu0 0
        %1118 = vmatmul.mubr.bf16.gmra.mrb[0].mxu0 %v848
        %v1119 = vpop.f32.mrb[0].mxu0
        %v1120 = vadd.f32 0.0, %v1119
        %v1121 = vpop.f32.mrb[0].mxu0
        %v1122 = vpop.f32.mrb[0].mxu0
        %v1123 = vadd.f32 0.0, %v1122
        %v1124 = vpop.f32.mrb[0].mxu0
        %1125 = vmatprep.mubr.bf16.mxu0 0
        %1126 = vmatmul.mubr.bf16.gmra.mrb[0].mxu0 %v851
        %v1127 = vpop.f32.mrb[0].mxu0
        %v1128 = vadd.f32 0.0, %v1127
        %v1129 = vpop.f32.mrb[0].mxu0
        %v1130 = vpop.f32.mrb[0].mxu0
        %v1131 = vadd.f32 0.0, %v1130
        %v1132 = vpop.f32.mrb[0].mxu0
        %1133 = vmatprep.mubr.bf16.mxu0 0
        %1134 = vmatmul.mubr.bf16.gmra.mrb[0].mxu0 %v854
        %v1135 = vpop.f32.mrb[0].mxu0
        %v1136 = vadd.f32 0.0, %v1135
        %v1137 = vpop.f32.mrb[0].mxu0
        %v1138 = vpop.f32.mrb[0].mxu0
        %v1139 = vadd.f32 0.0, %v1138
        %v1140 = vpop.f32.mrb[0].mxu0
        %1141 = vmatprep.mubr.bf16.mxu0 0
        %1142 = vmatmul.mubr.bf16.gmra.mrb[0].mxu0 %v857
        %v1143 = vpop.f32.mrb[0].mxu0
        %v1144 = vadd.f32 0.0, %v1143
        %v1145 = vpop.f32.mrb[0].mxu0
        %v1146 = vpop.f32.mrb[0].mxu0
        %v1147 = vadd.f32 0.0, %v1146
        %v1148 = vpop.f32.mrb[0].mxu0
        %1149 = vmatprep.mubr.bf16.mxu0 0
        %1150 = vmatmul.mubr.bf16.gmra.mrb[0].mxu0 %v860
        %v1151 = vpop.f32.mrb[0].mxu0
        %v1152 = vadd.f32 0.0, %v1151
        %v1153 = vpop.f32.mrb[0].mxu0
        %v1154 = vpop.f32.mrb[0].mxu0
        %v1155 = vadd.f32 0.0, %v1154
        %v1156 = vpop.f32.mrb[0].mxu0
        %1157 = vmatprep.mubr.bf16.mxu0 0
        %1158 = vmatmul.mubr.bf16.gmra.mrb[0].mxu0 %v863
        %v1159 = vpop.f32.mrb[0].mxu0
        %v1160 = vadd.f32 0.0, %v1159
        %v1161 = vpop.f32.mrb[0].mxu0
        %v1162 = vpop.f32.mrb[0].mxu0
        %v1163 = vadd.f32 0.0, %v1162
        %v1164 = vpop.f32.mrb[0].mxu0
        %1165 = vmatprep.mubr.bf16.mxu0 0
        %1166 = vmatmul.mubr.bf16.gmra.mrb[0].mxu0 %v866
        %v1167 = vpop.f32.mrb[0].mxu0
        %v1168 = vadd.f32 0.0, %v1167
        %v1169 = vpop.f32.mrb[0].mxu0
        %v1170 = vpop.f32.mrb[0].mxu0
        %v1171 = vadd.f32 0.0, %v1170
        %v1172 = vpop.f32.mrb[0].mxu0
        %1173 = vmatprep.mubr.bf16.mxu0 0
        %1174 = vmatmul.mubr.bf16.gmra.mrb[0].mxu0 %v869
        %v1175 = vpop.f32.mrb[0].mxu0
        %v1176 = vadd.f32 0.0, %v1175
        %v1177 = vpop.f32.mrb[0].mxu0
        %v1178 = vpop.f32.mrb[0].mxu0
        %v1179 = vadd.f32 0.0, %v1178
        %v1180 = vpop.f32.mrb[0].mxu0
        %1181 = vmatprep.mubr.bf16.mxu0 0
        %1182 = vmatmul.mubr.bf16.gmra.mrb[0].mxu0 %v872
        %v1183 = vpop.f32.mrb[0].mxu0
        %v1184 = vadd.f32 0.0, %v1183
        %v1185 = vpop.f32.mrb[0].mxu0
        %v1186 = vpop.f32.mrb[0].mxu0
        %v1187 = vadd.f32 0.0, %v1186
        %v1188 = vpop.f32.mrb[0].mxu0
        %1189 = vmatprep.mubr.bf16.mxu0 0
        %1190 = vmatmul.mubr.bf16.gmra.mrb[0].mxu0 %v875
        %v1191 = vpop.f32.mrb[0].mxu0
        %v1192 = vadd.f32 0.0, %v1191
        %v1193 = vpop.f32.mrb[0].mxu0
        %v1194 = vpop.f32.mrb[0].mxu0
        %v1195 = vadd.f32 0.0, %v1194
        %v1196 = vpop.f32.mrb[0].mxu0
        %1197 = vdwg.mxu0
        %v1198 = vsel %vm768, %v912, -inf
        %v1199 = vsel %vm768, %v984, -inf
        %v1200 = vmax.f32 %v1198, %v1199
        %v1201 = vsel %vm768, %v1056, -inf
        %v1202 = vmax.f32 %v1200, %v1201
        %v1203 = vsel %vm768, %v1128, -inf
        %v1204 = vmax.f32 %v1202, %v1203
        %v1205 = vsel %vm768, %v915, -inf
        %v1206 = vsel %vm768, %v987, -inf
        %v1207 = vmax.f32 %v1205, %v1206
        %v1208 = vsel %vm768, %v1059, -inf
        %v1209 = vmax.f32 %v1207, %v1208
        %v1210 = vsel %vm768, %v1131, -inf
        %v1211 = vmax.f32 %v1209, %v1210
        %v1212 = vsel %vm768, %v920, -inf
        %v1213 = vsel %vm768, %v992, -inf
        %v1214 = vmax.f32 %v1212, %v1213
        %v1215 = vsel %vm768, %v1064, -inf
        %v1216 = vmax.f32 %v1214, %v1215
        %v1217 = vsel %vm768, %v1136, -inf
        %v1218 = vmax.f32 %v1216, %v1217
        %v1219 = vsel %vm768, %v923, -inf
        %v1220 = vsel %vm768, %v995, -inf
        %v1221 = vmax.f32 %v1219, %v1220
        %v1222 = vsel %vm768, %v1067, -inf
        %v1223 = vmax.f32 %v1221, %v1222
        %v1224 = vsel %vm768, %v1139, -inf
        %v1225 = vmax.f32 %v1223, %v1224
        %v1226 = vsel %vm768, %v928, -inf
        %v1227 = vsel %vm768, %v1000, -inf
        %v1228 = vmax.f32 %v1226, %v1227
        %v1229 = vsel %vm768, %v1072, -inf
        %v1230 = vmax.f32 %v1228, %v1229
        %v1231 = vsel %vm768, %v1144, -inf
        %v1232 = vmax.f32 %v1230, %v1231
        %v1233 = vsel %vm768, %v931, -inf
        %v1234 = vsel %vm768, %v1003, -inf
        %v1235 = vmax.f32 %v1233, %v1234
        %v1236 = vsel %vm768, %v1075, -inf
        %v1237 = vmax.f32 %v1235, %v1236
        %v1238 = vsel %vm768, %v1147, -inf
        %v1239 = vmax.f32 %v1237, %v1238
        %v1240 = vsel %vm768, %v936, -inf
        %v1241 = vsel %vm768, %v1008, -inf
        %v1242 = vmax.f32 %v1240, %v1241
        %v1243 = vsel %vm768, %v1080, -inf
        %v1244 = vmax.f32 %v1242, %v1243
        %v1245 = vsel %vm768, %v1152, -inf
        %v1246 = vmax.f32 %v1244, %v1245
        %v1247 = vsel %vm768, %v939, -inf
        %v1248 = vsel %vm768, %v1011, -inf
        %v1249 = vmax.f32 %v1247, %v1248
        %v1250 = vsel %vm768, %v1083, -inf
        %v1251 = vmax.f32 %v1249, %v1250
        %v1252 = vsel %vm768, %v1155, -inf
        %v1253 = vmax.f32 %v1251, %v1252
        %v1254 = vsel %vm768, %v944, -inf
        %v1255 = vsel %vm768, %v1016, -inf
        %v1256 = vmax.f32 %v1254, %v1255
        %v1257 = vsel %vm768, %v1088, -inf
        %v1258 = vmax.f32 %v1256, %v1257
        %v1259 = vsel %vm768, %v1160, -inf
        %v1260 = vmax.f32 %v1258, %v1259
        %v1261 = vsel %vm768, %v947, -inf
        %v1262 = vsel %vm768, %v1019, -inf
        %v1263 = vmax.f32 %v1261, %v1262
        %v1264 = vsel %vm768, %v1091, -inf
        %v1265 = vmax.f32 %v1263, %v1264
        %v1266 = vsel %vm768, %v1163, -inf
        %v1267 = vmax.f32 %v1265, %v1266
        %v1268 = vsel %vm768, %v952, -inf
        %v1269 = vsel %vm768, %v1024, -inf
        %v1270 = vmax.f32 %v1268, %v1269
        %v1271 = vsel %vm768, %v1096, -inf
        %v1272 = vmax.f32 %v1270, %v1271
        %v1273 = vsel %vm768, %v1168, -inf
        %v1274 = vmax.f32 %v1272, %v1273
        %v1275 = vsel %vm768, %v955, -inf
        %v1276 = vsel %vm768, %v1027, -inf
        %v1277 = vmax.f32 %v1275, %v1276
        %v1278 = vsel %vm768, %v1099, -inf
        %v1279 = vmax.f32 %v1277, %v1278
        %v1280 = vsel %vm768, %v1171, -inf
        %v1281 = vmax.f32 %v1279, %v1280
        %v1282 = vsel %vm768, %v960, -inf
        %v1283 = vsel %vm768, %v1032, -inf
        %v1284 = vmax.f32 %v1282, %v1283
        %v1285 = vsel %vm768, %v1104, -inf
        %v1286 = vmax.f32 %v1284, %v1285
        %v1287 = vsel %vm768, %v1176, -inf
        %v1288 = vmax.f32 %v1286, %v1287
        %v1289 = vsel %vm768, %v963, -inf
        %v1290 = vsel %vm768, %v1035, -inf
        %v1291 = vmax.f32 %v1289, %v1290
        %v1292 = vsel %vm768, %v1107, -inf
        %v1293 = vmax.f32 %v1291, %v1292
        %v1294 = vsel %vm768, %v1179, -inf
        %v1295 = vmax.f32 %v1293, %v1294
        %v1296 = vsel %vm768, %v968, -inf
        %v1297 = vsel %vm768, %v1040, -inf
        %v1298 = vmax.f32 %v1296, %v1297
        %v1299 = vsel %vm768, %v1112, -inf
        %v1300 = vmax.f32 %v1298, %v1299
        %v1301 = vsel %vm768, %v1184, -inf
        %v1302 = vmax.f32 %v1300, %v1301
        %v1303 = vsel %vm768, %v971, -inf
        %v1304 = vsel %vm768, %v1043, -inf
        %v1305 = vmax.f32 %v1303, %v1304
        %v1306 = vsel %vm768, %v1115, -inf
        %v1307 = vmax.f32 %v1305, %v1306
        %v1308 = vsel %vm768, %v1187, -inf
        %v1309 = vmax.f32 %v1307, %v1308
        %v1310 = vsel %vm768, %v976, -inf
        %v1311 = vsel %vm768, %v1048, -inf
        %v1312 = vmax.f32 %v1310, %v1311
        %v1313 = vsel %vm768, %v1120, -inf
        %v1314 = vmax.f32 %v1312, %v1313
        %v1315 = vsel %vm768, %v1192, -inf
        %v1316 = vmax.f32 %v1314, %v1315
        %v1317 = vsel %vm768, %v979, -inf
        %v1318 = vsel %vm768, %v1051, -inf
        %v1319 = vmax.f32 %v1317, %v1318
        %v1320 = vsel %vm768, %v1123, -inf
        %v1321 = vmax.f32 %v1319, %v1320
        %v1322 = vsel %vm768, %v1195, -inf
        %v1323 = vmax.f32 %v1321, %v1322
        %v1324 = vld [vmem:[%s2] sm:$0x1]
        %v1326 = vlaneseq
        %v1327 = vshrl.u32 %v1326, 7
        %v1328 = vsub.s32 0, %v1327
        %v1329 = vrot.slane %v1324, %v1328
        %v1331 = vadd.f32 %v1204, %v1329
        %v1332 = vadd.f32 %v1211, %v1329
        %v1333 = vadd.f32 %v1218, %v1329
        %v1334 = vadd.f32 %v1225, %v1329
        %v1335 = vadd.f32 %v1232, %v1329
        %v1336 = vadd.f32 %v1239, %v1329
        %v1337 = vadd.f32 %v1246, %v1329
        %v1338 = vadd.f32 %v1253, %v1329
        %v1339 = vadd.f32 %v1260, %v1329
        %v1340 = vadd.f32 %v1267, %v1329
        %v1341 = vadd.f32 %v1274, %v1329
        %v1342 = vadd.f32 %v1281, %v1329
        %v1343 = vadd.f32 %v1288, %v1329
        %v1344 = vadd.f32 %v1295, %v1329
        %v1345 = vadd.f32 %v1302, %v1329
        %v1346 = vadd.f32 %v1309, %v1329
        %v1347 = vadd.f32 %v1316, %v1329
        %v1348 = vadd.f32 %v1323, %v1329
        %v1349 = vmax.f32 %v1331, 0.0
        %v1350 = vmax.f32 %v1332, 0.0
        %v1351 = vmax.f32 %v1333, 0.0
        %v1352 = vmax.f32 %v1334, 0.0
        %v1353 = vmax.f32 %v1335, 0.0
        %v1354 = vmax.f32 %v1336, 0.0
        %v1355 = vmax.f32 %v1337, 0.0
        %v1356 = vmax.f32 %v1338, 0.0
        %v1357 = vmax.f32 %v1339, 0.0
        %v1358 = vmax.f32 %v1340, 0.0
        %v1359 = vmax.f32 %v1341, 0.0
        %v1360 = vmax.f32 %v1342, 0.0
        %v1361 = vmax.f32 %v1343, 0.0
        %v1362 = vmax.f32 %v1344, 0.0
        %v1363 = vmax.f32 %v1345, 0.0
        %v1364 = vmax.f32 %v1346, 0.0
        %v1365 = vmax.f32 %v1347, 0.0
        %v1366 = vmax.f32 %v1348, 0.0
        %v1367 = vpack.c.bf16 %v1350, %v1349
        %v1368 = vpack.c.bf16 %v1352, %v1351
        %v1369 = vpack.c.bf16 %v1354, %v1353
        %v1370 = vpack.c.bf16 %v1356, %v1355
        %v1371 = vpack.c.bf16 %v1358, %v1357
        %v1372 = vpack.c.bf16 %v1360, %v1359
        %v1373 = vpack.c.bf16 %v1362, %v1361
        %v1374 = vpack.c.bf16 %v1364, %v1363
        %v1375 = vpack.c.bf16 %v1366, %v1365
        %v1385 = vunpack.c.l.b16 %v1367
        %v1386 = vunpack.c.h.b16 %v1367
        %v1387 = vunpack.c.l.b16 %v1368
        %v1388 = vunpack.c.h.b16 %v1368
        %v1389 = vunpack.c.l.b16 %v1369
        %v1390 = vunpack.c.h.b16 %v1369
        %v1391 = vunpack.c.l.b16 %v1370
        %v1392 = vunpack.c.h.b16 %v1370
        %v1393 = vunpack.c.l.b16 %v1371
        %v1394 = vunpack.c.h.b16 %v1371
        %v1395 = vunpack.c.l.b16 %v1372
        %v1396 = vunpack.c.h.b16 %v1372
        %v1397 = vunpack.c.l.b16 %v1373
        %v1398 = vunpack.c.h.b16 %v1373
        %v1399 = vunpack.c.l.b16 %v1374
        %v1400 = vunpack.c.h.b16 %v1374
        %v1401 = vunpack.c.l.b16 %v1375
        %v1402 = vunpack.c.h.b16 %v1375
        %v1403 = vpack.c.b16 %v1385, %v1385
        %v1404 = vpack.c.b16 %v1386, %v1386
        %v1405 = vpack.c.b16 %v1387, %v1387
        %v1406 = vpack.c.b16 %v1388, %v1388
        %v1407 = vpack.c.b16 %v1389, %v1389
        %v1408 = vpack.c.b16 %v1390, %v1390
        %v1409 = vpack.c.b16 %v1391, %v1391
        %v1410 = vpack.c.b16 %v1392, %v1392
        %v1411 = vpack.c.b16 %v1393, %v1393
        %v1412 = vpack.c.b16 %v1394, %v1394
        %v1413 = vpack.c.b16 %v1395, %v1395
        %v1414 = vpack.c.b16 %v1396, %v1396
        %v1415 = vpack.c.b16 %v1397, %v1397
        %v1416 = vpack.c.b16 %v1398, %v1398
        %v1417 = vpack.c.b16 %v1399, %v1399
        %v1418 = vpack.c.b16 %v1400, %v1400
        %v1419 = vpack.c.b16 %v1401, %v1401
        %v1420 = vpack.c.b16 %v1402, %v1402
        %vm1439 = vcmask 257024
        %1440 = vst.msk [vmem:[%s497] sm:$0xf] %vm1439, %v1403
        %1441 = vst.msk [vmem:[%s497 + $0x4] sm:$0xf] %vm1439, %v1404
        %1442 = vst.msk [vmem:[%s497 + $0x8] sm:$0xf] %vm1439, %v1405
        %1443 = vst.msk [vmem:[%s497 + $0xc] sm:$0xf] %vm1439, %v1406
        %1444 = vst.msk [vmem:[%s497 + $0x10] sm:$0xf] %vm1439, %v1407
        %1445 = vst.msk [vmem:[%s497 + $0x14] sm:$0xf] %vm1439, %v1408
        %1446 = vst.msk [vmem:[%s497 + $0x18] sm:$0xf] %vm1439, %v1409
        %1447 = vst.msk [vmem:[%s497 + $0x1c] sm:$0xf] %vm1439, %v1410
        %1448 = vst.msk [vmem:[%s497 + $0x20] sm:$0xf] %vm1439, %v1411
        %1449 = vst.msk [vmem:[%s497 + $0x24] sm:$0xf] %vm1439, %v1412
        %1450 = vst.msk [vmem:[%s497 + $0x28] sm:$0xf] %vm1439, %v1413
        %1451 = vst.msk [vmem:[%s497 + $0x2c] sm:$0xf] %vm1439, %v1414
        %1452 = vst.msk [vmem:[%s497 + $0x30] sm:$0xf] %vm1439, %v1415
        %1453 = vst.msk [vmem:[%s497 + $0x34] sm:$0xf] %vm1439, %v1416
        %1454 = vst.msk [vmem:[%s497 + $0x38] sm:$0xf] %vm1439, %v1417
        %1455 = vst.msk [vmem:[%s497 + $0x3c] sm:$0xf] %vm1439, %v1418
        %1456 = vst.msk [vmem:[%s497 + $0x40] sm:$0xf] %vm1439, %v1419
        %1457 = vst.msk [vmem:[%s497 + $0x44] sm:$0xf] %vm1439, %v1420
        %s1458 = smul.u32 18, %s14
        %p1459 = scmp.lt.s32.totalorder %s1458, 35
        %s1460 = scalar_select %p1459, %s1458, 35
        %s1461 = smul.addr %s1460, 4
        %s1462 = scalar_lea.vmem %s3, %s1461
        // Predicated region
        $region74: #{mnist_lenet_forward.2} parent=68 // pred_check
          %p1463 = pneg %p100
        $region75: #{mnist_lenet_forward.2} parent=68 // pred_check_branch
          %1465 = sbr.rel (%p1463) target = $region77
        $region76: #{mnist_lenet_forward.2} parent=68 // pred_region
          %s1466 = smul.u32 18, %s14
        $region77: #{mnist_lenet_forward.2} parent=68 // pred_fallthru
          _
      $region69: #{mnist_lenet_forward.2} parent=5 // pred_fallthru
        _
      %p1467 = scmp.le.s32.totalorder 2, %s9
      // Predicated region
      $region78: #{mnist_lenet_forward.2} parent=5 // pred_check
        %p1468 = pneg %p1467
      $region79: #{mnist_lenet_forward.2} parent=5 // pred_check_branch
        %1470 = sbr.rel (%p1468) target = $region81
      $region80: #{mnist_lenet_forward.2} parent=5 // pred_region
        %s1471 = ssub.s32 %s9, 2
        // Predicated region
        $region82: #{mnist_lenet_forward.2} parent=80 // pred_check
          %p1472 = pneg %p106
        $region83: #{mnist_lenet_forward.2} parent=80 // pred_check_branch
          %1474 = sbr.rel (%p1472) target = $region85
        $region84: #{mnist_lenet_forward.2} parent=80 // pred_region
          %s1475 = smul.u32 18, %s15
          %p1476 = scmp.lt.s32.totalorder %s1475, 35
          %s1477 = scalar_select %p1476, %s1475, 35
          %s1478 = smul.addr %s1477, 4
          %s1479 = scalar_lea.vmem %s3, %s1478
        $region85: #{mnist_lenet_forward.2} parent=80 // pred_fallthru
          _
      $region81: #{mnist_lenet_forward.2} parent=5 // pred_fallthru
        _
    $region6: #{mnist_lenet_forward.2} parent=1 // loop_footer
      %s13 = sadd.s32 1, %s9
    $region7: #{mnist_lenet_forward.2} parent=1 // loop_footer_branch
      %8 = sbr.rel target = $region3
    $region8: #{mnist_lenet_forward.2} parent=1 // loop_exit
      _

// kernel: mnist_lenet_forward.3
$region0: #{mnist_lenet_forward.3}
  #allocation0 [shape = 'u32[]', space=smem, size = 0x4, offset = 0x4, fixed_abs, tag = 'smem constant byte address 0x4 - core index']
  #allocation1 [shape = 'u32[144,128]{1,0:T(1,128)}', space=vmem, size = 0x12000, scoped, tag = 'internal scratch']
  %s0 = inlined_call_operand.vmem [shape: bf16[4,16,16,256], index: 0, kind: input, shape index: {}]
  %s1 = inlined_call_operand.vmem [shape: bf16[256,32], index: 1, kind: input, shape index: {}]
  %s2 = inlined_call_operand.vmem [shape: f32[1,32], index: 2, kind: input, shape index: {}]
  %s3 = inlined_call_operand.vmem [shape: bf16[16,32,128], index: 3, kind: input, shape index: {}]
  %s4 = inlined_call_operand.vmem [shape: f32[1,128], index: 4, kind: input, shape index: {}]
  %s5 = inlined_call_operand.vmem [shape: bf16[128,128], index: 5, kind: input, shape index: {}]
  %s6 = inlined_call_operand.vmem [shape: f32[1,128], index: 6, kind: input, shape index: {}]
  %s7 = inlined_call_operand.vmem [shape: f32[16,128], index: 7, kind: output, shape index: {}]
  %s8 = sld [smem:[#allocation0]]
  $region38: #{mnist_lenet_forward.3} parent=0
    _
  %s10 = ssub.s32 1, %s8
  %s11 = scalar_select 0, %s10, %s8
  // Predicated region
  $region2: #{mnist_lenet_forward.3} parent=0 // pred_check
    _
  $region3: #{mnist_lenet_forward.3} parent=0 // pred_check_branch
    %13 = sbr.rel (0) target = $region5
  $region4: #{mnist_lenet_forward.3} parent=0 // pred_region
    _
  $region5: #{mnist_lenet_forward.3} parent=0 // pred_fallthru
    _
  // Predicated region
  $region6: #{mnist_lenet_forward.3} parent=0 // pred_check
    _
  $region7: #{mnist_lenet_forward.3} parent=0 // pred_check_branch
    %15 = sbr.rel (0) target = $region9
  $region8: #{mnist_lenet_forward.3} parent=0 // pred_region
    _
  $region9: #{mnist_lenet_forward.3} parent=0 // pred_fallthru
    _
  // Predicated region
  $region10: #{mnist_lenet_forward.3} parent=0 // pred_check
    _
  $region11: #{mnist_lenet_forward.3} parent=0 // pred_check_branch
    %17 = sbr.rel (0) target = $region13
  $region12: #{mnist_lenet_forward.3} parent=0 // pred_region
    _
  $region13: #{mnist_lenet_forward.3} parent=0 // pred_fallthru
    _
  // Predicated region
  $region14: #{mnist_lenet_forward.3} parent=0 // pred_check
    _
  $region15: #{mnist_lenet_forward.3} parent=0 // pred_check_branch
    %19 = sbr.rel (0) target = $region17
  $region16: #{mnist_lenet_forward.3} parent=0 // pred_region
    _
  $region17: #{mnist_lenet_forward.3} parent=0 // pred_fallthru
    _
  // Predicated region
  $region18: #{mnist_lenet_forward.3} parent=0 // pred_check
    _
  $region19: #{mnist_lenet_forward.3} parent=0 // pred_check_branch
    %21 = sbr.rel (0) target = $region21
  $region20: #{mnist_lenet_forward.3} parent=0 // pred_region
    _
  $region21: #{mnist_lenet_forward.3} parent=0 // pred_fallthru
    _
  // Predicated region
  $region22: #{mnist_lenet_forward.3} parent=0 // pred_check
    _
  $region23: #{mnist_lenet_forward.3} parent=0 // pred_check_branch
    %23 = sbr.rel (0) target = $region25
  $region24: #{mnist_lenet_forward.3} parent=0 // pred_region
    _
  $region25: #{mnist_lenet_forward.3} parent=0 // pred_fallthru
    _
  // Predicated region
  $region26: #{mnist_lenet_forward.3} parent=0 // pred_check
    _
  $region27: #{mnist_lenet_forward.3} parent=0 // pred_check_branch
    %25 = sbr.rel (0) target = $region29
  $region28: #{mnist_lenet_forward.3} parent=0 // pred_region
    _
  $region29: #{mnist_lenet_forward.3} parent=0 // pred_fallthru
    _
  %v27 = vld [vmem:[%s0] sm:$0xff]
  %v28 = vld [vmem:[%s0 + $0x8] sm:$0xff]
  %v29 = vld [vmem:[%s0 + $0x10] sm:$0xff]
  %v30 = vld [vmem:[%s0 + $0x18] sm:$0xff]
  %v31 = vld [vmem:[%s0 + $0x20] sm:$0xff]
  %v32 = vld [vmem:[%s0 + $0x28] sm:$0xff]
  %v33 = vld [vmem:[%s0 + $0x30] sm:$0xff]
  %v34 = vld [vmem:[%s0 + $0x38] sm:$0xff]
  %v35 = vld [vmem:[%s0 + $0x40] sm:$0xff]
  %v36 = vld [vmem:[%s0 + $0x48] sm:$0xff]
  %v37 = vld [vmem:[%s0 + $0x50] sm:$0xff]
  %v38 = vld [vmem:[%s0 + $0x58] sm:$0xff]
  %v39 = vld [vmem:[%s0 + $0x60] sm:$0xff]
  %v40 = vld [vmem:[%s0 + $0x68] sm:$0xff]
  %v41 = vld [vmem:[%s0 + $0x70] sm:$0xff]
  %v42 = vld [vmem:[%s0 + $0x78] sm:$0xff]
  %v43 = vld [vmem:[%s0 + $0x80] sm:$0xff]
  %v44 = vld [vmem:[%s0 + $0x88] sm:$0xff]
  %v45 = vld [vmem:[%s0 + $0x90] sm:$0xff]
  %v46 = vld [vmem:[%s0 + $0x98] sm:$0xff]
  %v47 = vld [vmem:[%s0 + $0xa0] sm:$0xff]
  %v48 = vld [vmem:[%s0 + $0xa8] sm:$0xff]
  %v49 = vld [vmem:[%s0 + $0xb0] sm:$0xff]
  %v50 = vld [vmem:[%s0 + $0xb8] sm:$0xff]
  %v51 = vld [vmem:[%s0 + $0xc0] sm:$0xff]
  %v52 = vld [vmem:[%s0 + $0xc8] sm:$0xff]
  %v53 = vld [vmem:[%s0 + $0xd0] sm:$0xff]
  %v54 = vld [vmem:[%s0 + $0xd8] sm:$0xff]
  %v55 = vld [vmem:[%s0 + $0xe0] sm:$0xff]
  %v56 = vld [vmem:[%s0 + $0xe8] sm:$0xff]
  %v57 = vld [vmem:[%s0 + $0xf0] sm:$0xff]
  %v58 = vld [vmem:[%s0 + $0xf8] sm:$0xff]
  %v59 = vld [vmem:[%s0 + $0x100] sm:$0xff]
  %v60 = vld [vmem:[%s0 + $0x108] sm:$0xff]
  %v61 = vld [vmem:[%s0 + $0x110] sm:$0xff]
  %v62 = vld [vmem:[%s0 + $0x118] sm:$0xff]
  %v63 = vld [vmem:[%s0 + $0x120] sm:$0xff]
  %v64 = vld [vmem:[%s0 + $0x128] sm:$0xff]
  %v65 = vld [vmem:[%s0 + $0x130] sm:$0xff]
  %v66 = vld [vmem:[%s0 + $0x138] sm:$0xff]
  %v67 = vld [vmem:[%s0 + $0x140] sm:$0xff]
  %v68 = vld [vmem:[%s0 + $0x148] sm:$0xff]
  %v69 = vld [vmem:[%s0 + $0x150] sm:$0xff]
  %v70 = vld [vmem:[%s0 + $0x158] sm:$0xff]
  %v71 = vld [vmem:[%s0 + $0x160] sm:$0xff]
  %v72 = vld [vmem:[%s0 + $0x168] sm:$0xff]
  %v73 = vld [vmem:[%s0 + $0x170] sm:$0xff]
  %v74 = vld [vmem:[%s0 + $0x178] sm:$0xff]
  %v75 = vld [vmem:[%s0 + $0x180] sm:$0xff]
  %v76 = vld [vmem:[%s0 + $0x188] sm:$0xff]
  %v77 = vld [vmem:[%s0 + $0x190] sm:$0xff]
  %v78 = vld [vmem:[%s0 + $0x198] sm:$0xff]
  %v79 = vld [vmem:[%s0 + $0x1a0] sm:$0xff]
  %v80 = vld [vmem:[%s0 + $0x1a8] sm:$0xff]
  %v81 = vld [vmem:[%s0 + $0x1b0] sm:$0xff]
  %v82 = vld [vmem:[%s0 + $0x1b8] sm:$0xff]
  %v83 = vld [vmem:[%s0 + $0x1c0] sm:$0xff]
  %v84 = vld [vmem:[%s0 + $0x1c8] sm:$0xff]
  %v85 = vld [vmem:[%s0 + $0x1d0] sm:$0xff]
  %v86 = vld [vmem:[%s0 + $0x1d8] sm:$0xff]
  %v87 = vld [vmem:[%s0 + $0x1e0] sm:$0xff]
  %v88 = vld [vmem:[%s0 + $0x1e8] sm:$0xff]
  %v89 = vld [vmem:[%s0 + $0x1f0] sm:$0xff]
  %v90 = vld [vmem:[%s0 + $0x1f8] sm:$0xff]
  %v91 = vld [vmem:[%s0 + $0x200] sm:$0xff]
  %v92 = vld [vmem:[%s0 + $0x208] sm:$0xff]
  %v93 = vld [vmem:[%s0 + $0x210] sm:$0xff]
  %v94 = vld [vmem:[%s0 + $0x218] sm:$0xff]
  %v95 = vld [vmem:[%s0 + $0x220] sm:$0xff]
  %v96 = vld [vmem:[%s0 + $0x228] sm:$0xff]
  %v97 = vld [vmem:[%s0 + $0x230] sm:$0xff]
  %v98 = vld [vmem:[%s0 + $0x238] sm:$0xff]
  %v99 = vld [vmem:[%s0 + $0x240] sm:$0xff]
  %v100 = vld [vmem:[%s0 + $0x248] sm:$0xff]
  %v101 = vld [vmem:[%s0 + $0x250] sm:$0xff]
  %v102 = vld [vmem:[%s0 + $0x258] sm:$0xff]
  %v103 = vld [vmem:[%s0 + $0x260] sm:$0xff]
  %v104 = vld [vmem:[%s0 + $0x268] sm:$0xff]
  %v105 = vld [vmem:[%s0 + $0x270] sm:$0xff]
  %v106 = vld [vmem:[%s0 + $0x278] sm:$0xff]
  %v107 = vld [vmem:[%s0 + $0x280] sm:$0xff]
  %v108 = vld [vmem:[%s0 + $0x288] sm:$0xff]
  %v109 = vld [vmem:[%s0 + $0x290] sm:$0xff]
  %v110 = vld [vmem:[%s0 + $0x298] sm:$0xff]
  %v111 = vld [vmem:[%s0 + $0x2a0] sm:$0xff]
  %v112 = vld [vmem:[%s0 + $0x2a8] sm:$0xff]
  %v113 = vld [vmem:[%s0 + $0x2b0] sm:$0xff]
  %v114 = vld [vmem:[%s0 + $0x2b8] sm:$0xff]
  %v115 = vld [vmem:[%s0 + $0x2c0] sm:$0xff]
  %v116 = vld [vmem:[%s0 + $0x2c8] sm:$0xff]
  %v117 = vld [vmem:[%s0 + $0x2d0] sm:$0xff]
  %v118 = vld [vmem:[%s0 + $0x2d8] sm:$0xff]
  %v119 = vld [vmem:[%s0 + $0x2e0] sm:$0xff]
  %v120 = vld [vmem:[%s0 + $0x2e8] sm:$0xff]
  %v121 = vld [vmem:[%s0 + $0x2f0] sm:$0xff]
  %v122 = vld [vmem:[%s0 + $0x2f8] sm:$0xff]
  %v123 = vld [vmem:[%s0 + $0x300] sm:$0xff]
  %v124 = vld [vmem:[%s0 + $0x308] sm:$0xff]
  %v125 = vld [vmem:[%s0 + $0x310] sm:$0xff]
  %v126 = vld [vmem:[%s0 + $0x318] sm:$0xff]
  %v127 = vld [vmem:[%s0 + $0x320] sm:$0xff]
  %v128 = vld [vmem:[%s0 + $0x328] sm:$0xff]
  %v129 = vld [vmem:[%s0 + $0x330] sm:$0xff]
  %v130 = vld [vmem:[%s0 + $0x338] sm:$0xff]
  %v131 = vld [vmem:[%s0 + $0x340] sm:$0xff]
  %v132 = vld [vmem:[%s0 + $0x348] sm:$0xff]
  %v133 = vld [vmem:[%s0 + $0x350] sm:$0xff]
  %v134 = vld [vmem:[%s0 + $0x358] sm:$0xff]
  %v135 = vld [vmem:[%s0 + $0x360] sm:$0xff]
  %v136 = vld [vmem:[%s0 + $0x368] sm:$0xff]
  %v137 = vld [vmem:[%s0 + $0x370] sm:$0xff]
  %v138 = vld [vmem:[%s0 + $0x378] sm:$0xff]
  %v139 = vld [vmem:[%s0 + $0x380] sm:$0xff]
  %v140 = vld [vmem:[%s0 + $0x388] sm:$0xff]
  %v141 = vld [vmem:[%s0 + $0x390] sm:$0xff]
  %v142 = vld [vmem:[%s0 + $0x398] sm:$0xff]
  %v143 = vld [vmem:[%s0 + $0x3a0] sm:$0xff]
  %v144 = vld [vmem:[%s0 + $0x3a8] sm:$0xff]
  %v145 = vld [vmem:[%s0 + $0x3b0] sm:$0xff]
  %v146 = vld [vmem:[%s0 + $0x3b8] sm:$0xff]
  %v147 = vld [vmem:[%s0 + $0x3c0] sm:$0xff]
  %v148 = vld [vmem:[%s0 + $0x3c8] sm:$0xff]
  %v149 = vld [vmem:[%s0 + $0x3d0] sm:$0xff]
  %v150 = vld [vmem:[%s0 + $0x3d8] sm:$0xff]
  %v151 = vld [vmem:[%s0 + $0x3e0] sm:$0xff]
  %v152 = vld [vmem:[%s0 + $0x3e8] sm:$0xff]
  %v153 = vld [vmem:[%s0 + $0x3f0] sm:$0xff]
  %v154 = vld [vmem:[%s0 + $0x3f8] sm:$0xff]
  %v155 = vld [vmem:[%s1] sm:$0xf]
  %v156 = vld [vmem:[%s1 + $0x4] sm:$0xf]
  %v157 = vld [vmem:[%s1 + $0x8] sm:$0xf]
  %v158 = vld [vmem:[%s1 + $0xc] sm:$0xf]
  %v159 = vld [vmem:[%s1 + $0x10] sm:$0xf]
  %v160 = vld [vmem:[%s1 + $0x14] sm:$0xf]
  %v161 = vld [vmem:[%s1 + $0x18] sm:$0xf]
  %v162 = vld [vmem:[%s1 + $0x1c] sm:$0xf]
  %v163 = vld [vmem:[%s1 + $0x20] sm:$0xf]
  %v164 = vld [vmem:[%s1 + $0x24] sm:$0xf]
  %v165 = vld [vmem:[%s1 + $0x28] sm:$0xf]
  %v166 = vld [vmem:[%s1 + $0x2c] sm:$0xf]
  %v167 = vld [vmem:[%s1 + $0x30] sm:$0xf]
  %v168 = vld [vmem:[%s1 + $0x34] sm:$0xf]
  %v169 = vld [vmem:[%s1 + $0x38] sm:$0xf]
  %v170 = vld [vmem:[%s1 + $0x3c] sm:$0xf]
  %v171 = vld [vmem:[%s1 + $0x40] sm:$0xf]
  %v172 = vld [vmem:[%s1 + $0x44] sm:$0xf]
  %v173 = vld [vmem:[%s1 + $0x48] sm:$0xf]
  %v174 = vld [vmem:[%s1 + $0x4c] sm:$0xf]
  %v175 = vld [vmem:[%s1 + $0x50] sm:$0xf]
  %v176 = vld [vmem:[%s1 + $0x54] sm:$0xf]
  %v177 = vld [vmem:[%s1 + $0x58] sm:$0xf]
  %v178 = vld [vmem:[%s1 + $0x5c] sm:$0xf]
  %v179 = vld [vmem:[%s1 + $0x60] sm:$0xf]
  %v180 = vld [vmem:[%s1 + $0x64] sm:$0xf]
  %v181 = vld [vmem:[%s1 + $0x68] sm:$0xf]
  %v182 = vld [vmem:[%s1 + $0x6c] sm:$0xf]
  %v183 = vld [vmem:[%s1 + $0x70] sm:$0xf]
  %v184 = vld [vmem:[%s1 + $0x74] sm:$0xf]
  %v185 = vld [vmem:[%s1 + $0x78] sm:$0xf]
  %v186 = vld [vmem:[%s1 + $0x7c] sm:$0xf]
  %v315 = vunpack.c.l.b16 %v27
  %v316 = vunpack.c.h.b16 %v27
  %v317 = vunpack.c.l.b16 %v28
  %v318 = vunpack.c.h.b16 %v28
  %v319 = vunpack.c.l.b16 %v29
  %v320 = vunpack.c.h.b16 %v29
  %v321 = vunpack.c.l.b16 %v30
  %v322 = vunpack.c.h.b16 %v30
  %v323 = vunpack.c.l.b16 %v31
  %v324 = vunpack.c.h.b16 %v31
  %v325 = vunpack.c.l.b16 %v32
  %v326 = vunpack.c.h.b16 %v32
  %v327 = vunpack.c.l.b16 %v33
  %v328 = vunpack.c.h.b16 %v33
  %v329 = vunpack.c.l.b16 %v34
  %v330 = vunpack.c.h.b16 %v34
  %v331 = vunpack.c.l.b16 %v35
  %v332 = vunpack.c.h.b16 %v35
  %v333 = vunpack.c.l.b16 %v36
  %v334 = vunpack.c.h.b16 %v36
  %v335 = vunpack.c.l.b16 %v37
  %v336 = vunpack.c.h.b16 %v37
  %v337 = vunpack.c.l.b16 %v38
  %v338 = vunpack.c.h.b16 %v38
  %v339 = vunpack.c.l.b16 %v39
  %v340 = vunpack.c.h.b16 %v39
  %v341 = vunpack.c.l.b16 %v40
  %v342 = vunpack.c.h.b16 %v40
  %v343 = vunpack.c.l.b16 %v41
  %v344 = vunpack.c.h.b16 %v41
  %v345 = vunpack.c.l.b16 %v42
  %v346 = vunpack.c.h.b16 %v42
  %v347 = vunpack.c.l.b16 %v43
  %v348 = vunpack.c.h.b16 %v43
  %v349 = vunpack.c.l.b16 %v44
  %v350 = vunpack.c.h.b16 %v44
  %v351 = vunpack.c.l.b16 %v45
  %v352 = vunpack.c.h.b16 %v45
  %v353 = vunpack.c.l.b16 %v46
  %v354 = vunpack.c.h.b16 %v46
  %v355 = vunpack.c.l.b16 %v47
  %v356 = vunpack.c.h.b16 %v47
  %v357 = vunpack.c.l.b16 %v48
  %v358 = vunpack.c.h.b16 %v48
  %v359 = vunpack.c.l.b16 %v49
  %v360 = vunpack.c.h.b16 %v49
  %v361 = vunpack.c.l.b16 %v50
  %v362 = vunpack.c.h.b16 %v50
  %v363 = vunpack.c.l.b16 %v51
  %v364 = vunpack.c.h.b16 %v51
  %v365 = vunpack.c.l.b16 %v52
  %v366 = vunpack.c.h.b16 %v52
  %v367 = vunpack.c.l.b16 %v53
  %v368 = vunpack.c.h.b16 %v53
  %v369 = vunpack.c.l.b16 %v54
  %v370 = vunpack.c.h.b16 %v54
  %v371 = vunpack.c.l.b16 %v55
  %v372 = vunpack.c.h.b16 %v55
  %v373 = vunpack.c.l.b16 %v56
  %v374 = vunpack.c.h.b16 %v56
  %v375 = vunpack.c.l.b16 %v57
  %v376 = vunpack.c.h.b16 %v57
  %v377 = vunpack.c.l.b16 %v58
  %v378 = vunpack.c.h.b16 %v58
  %v379 = vunpack.c.l.b16 %v59
  %v380 = vunpack.c.h.b16 %v59
  %v381 = vunpack.c.l.b16 %v60
  %v382 = vunpack.c.h.b16 %v60
  %v383 = vunpack.c.l.b16 %v61
  %v384 = vunpack.c.h.b16 %v61
  %v385 = vunpack.c.l.b16 %v62
  %v386 = vunpack.c.h.b16 %v62
  %v387 = vunpack.c.l.b16 %v63
  %v388 = vunpack.c.h.b16 %v63
  %v389 = vunpack.c.l.b16 %v64
  %v390 = vunpack.c.h.b16 %v64
  %v391 = vunpack.c.l.b16 %v65
  %v392 = vunpack.c.h.b16 %v65
  %v393 = vunpack.c.l.b16 %v66
  %v394 = vunpack.c.h.b16 %v66
  %v395 = vunpack.c.l.b16 %v67
  %v396 = vunpack.c.h.b16 %v67
  %v397 = vunpack.c.l.b16 %v68
  %v398 = vunpack.c.h.b16 %v68
  %v399 = vunpack.c.l.b16 %v69
  %v400 = vunpack.c.h.b16 %v69
  %v401 = vunpack.c.l.b16 %v70
  %v402 = vunpack.c.h.b16 %v70
  %v403 = vunpack.c.l.b16 %v71
  %v404 = vunpack.c.h.b16 %v71
  %v405 = vunpack.c.l.b16 %v72
  %v406 = vunpack.c.h.b16 %v72
  %v407 = vunpack.c.l.b16 %v73
  %v408 = vunpack.c.h.b16 %v73
  %v409 = vunpack.c.l.b16 %v74
  %v410 = vunpack.c.h.b16 %v74
  %v411 = vunpack.c.l.b16 %v75
  %v412 = vunpack.c.h.b16 %v75
  %v413 = vunpack.c.l.b16 %v76
  %v414 = vunpack.c.h.b16 %v76
  %v415 = vunpack.c.l.b16 %v77
  %v416 = vunpack.c.h.b16 %v77
  %v417 = vunpack.c.l.b16 %v78
  %v418 = vunpack.c.h.b16 %v78
  %v419 = vunpack.c.l.b16 %v79
  %v420 = vunpack.c.h.b16 %v79
  %v421 = vunpack.c.l.b16 %v80
  %v422 = vunpack.c.h.b16 %v80
  %v423 = vunpack.c.l.b16 %v81
  %v424 = vunpack.c.h.b16 %v81
  %v425 = vunpack.c.l.b16 %v82
  %v426 = vunpack.c.h.b16 %v82
  %v427 = vunpack.c.l.b16 %v83
  %v428 = vunpack.c.h.b16 %v83
  %v429 = vunpack.c.l.b16 %v84
  %v430 = vunpack.c.h.b16 %v84
  %v431 = vunpack.c.l.b16 %v85
  %v432 = vunpack.c.h.b16 %v85
  %v433 = vunpack.c.l.b16 %v86
  %v434 = vunpack.c.h.b16 %v86
  %v435 = vunpack.c.l.b16 %v87
  %v436 = vunpack.c.h.b16 %v87
  %v437 = vunpack.c.l.b16 %v88
  %v438 = vunpack.c.h.b16 %v88
  %v439 = vunpack.c.l.b16 %v89
  %v440 = vunpack.c.h.b16 %v89
  %v441 = vunpack.c.l.b16 %v90
  %v442 = vunpack.c.h.b16 %v90
  %v443 = vunpack.c.l.b16 %v91
  %v444 = vunpack.c.h.b16 %v91
  %v445 = vunpack.c.l.b16 %v92
  %v446 = vunpack.c.h.b16 %v92
  %v447 = vunpack.c.l.b16 %v93
  %v448 = vunpack.c.h.b16 %v93
  %v449 = vunpack.c.l.b16 %v94
  %v450 = vunpack.c.h.b16 %v94
  %v451 = vunpack.c.l.b16 %v95
  %v452 = vunpack.c.h.b16 %v95
  %v453 = vunpack.c.l.b16 %v96
  %v454 = vunpack.c.h.b16 %v96
  %v455 = vunpack.c.l.b16 %v97
  %v456 = vunpack.c.h.b16 %v97
  %v457 = vunpack.c.l.b16 %v98
  %v458 = vunpack.c.h.b16 %v98
  %v459 = vunpack.c.l.b16 %v99
  %v460 = vunpack.c.h.b16 %v99
  %v461 = vunpack.c.l.b16 %v100
  %v462 = vunpack.c.h.b16 %v100
  %v463 = vunpack.c.l.b16 %v101
  %v464 = vunpack.c.h.b16 %v101
  %v465 = vunpack.c.l.b16 %v102
  %v466 = vunpack.c.h.b16 %v102
  %v467 = vunpack.c.l.b16 %v103
  %v468 = vunpack.c.h.b16 %v103
  %v469 = vunpack.c.l.b16 %v104
  %v470 = vunpack.c.h.b16 %v104
  %v471 = vunpack.c.l.b16 %v105
  %v472 = vunpack.c.h.b16 %v105
  %v473 = vunpack.c.l.b16 %v106
  %v474 = vunpack.c.h.b16 %v106
  %v475 = vunpack.c.l.b16 %v107
  %v476 = vunpack.c.h.b16 %v107
  %v477 = vunpack.c.l.b16 %v108
  %v478 = vunpack.c.h.b16 %v108
  %v479 = vunpack.c.l.b16 %v109
  %v480 = vunpack.c.h.b16 %v109
  %v481 = vunpack.c.l.b16 %v110
  %v482 = vunpack.c.h.b16 %v110
  %v483 = vunpack.c.l.b16 %v111
  %v484 = vunpack.c.h.b16 %v111
  %v485 = vunpack.c.l.b16 %v112
  %v486 = vunpack.c.h.b16 %v112
  %v487 = vunpack.c.l.b16 %v113
  %v488 = vunpack.c.h.b16 %v113
  %v489 = vunpack.c.l.b16 %v114
  %v490 = vunpack.c.h.b16 %v114
  %v491 = vunpack.c.l.b16 %v115
  %v492 = vunpack.c.h.b16 %v115
  %v493 = vunpack.c.l.b16 %v116
  %v494 = vunpack.c.h.b16 %v116
  %v495 = vunpack.c.l.b16 %v117
  %v496 = vunpack.c.h.b16 %v117
  %v497 = vunpack.c.l.b16 %v118
  %v498 = vunpack.c.h.b16 %v118
  %v499 = vunpack.c.l.b16 %v119
  %v500 = vunpack.c.h.b16 %v119
  %v501 = vunpack.c.l.b16 %v120
  %v502 = vunpack.c.h.b16 %v120
  %v503 = vunpack.c.l.b16 %v121
  %v504 = vunpack.c.h.b16 %v121
  %v505 = vunpack.c.l.b16 %v122
  %v506 = vunpack.c.h.b16 %v122
  %v507 = vunpack.c.l.b16 %v123
  %v508 = vunpack.c.h.b16 %v123
  %v509 = vunpack.c.l.b16 %v124
  %v510 = vunpack.c.h.b16 %v124
  %v511 = vunpack.c.l.b16 %v125
  %v512 = vunpack.c.h.b16 %v125
  %v513 = vunpack.c.l.b16 %v126
  %v514 = vunpack.c.h.b16 %v126
  %v515 = vunpack.c.l.b16 %v127
  %v516 = vunpack.c.h.b16 %v127
  %v517 = vunpack.c.l.b16 %v128
  %v518 = vunpack.c.h.b16 %v128
  %v519 = vunpack.c.l.b16 %v129
  %v520 = vunpack.c.h.b16 %v129
  %v521 = vunpack.c.l.b16 %v130
  %v522 = vunpack.c.h.b16 %v130
  %v523 = vunpack.c.l.b16 %v131
  %v524 = vunpack.c.h.b16 %v131
  %v525 = vunpack.c.l.b16 %v132
  %v526 = vunpack.c.h.b16 %v132
  %v527 = vunpack.c.l.b16 %v133
  %v528 = vunpack.c.h.b16 %v133
  %v529 = vunpack.c.l.b16 %v134
  %v530 = vunpack.c.h.b16 %v134
  %v531 = vunpack.c.l.b16 %v135
  %v532 = vunpack.c.h.b16 %v135
  %v533 = vunpack.c.l.b16 %v136
  %v534 = vunpack.c.h.b16 %v136
  %v535 = vunpack.c.l.b16 %v137
  %v536 = vunpack.c.h.b16 %v137
  %v537 = vunpack.c.l.b16 %v138
  %v538 = vunpack.c.h.b16 %v138
  %v539 = vunpack.c.l.b16 %v139
  %v540 = vunpack.c.h.b16 %v139
  %v541 = vunpack.c.l.b16 %v140
  %v542 = vunpack.c.h.b16 %v140
  %v543 = vunpack.c.l.b16 %v141
  %v544 = vunpack.c.h.b16 %v141
  %v545 = vunpack.c.l.b16 %v142
  %v546 = vunpack.c.h.b16 %v142
  %v547 = vunpack.c.l.b16 %v143
  %v548 = vunpack.c.h.b16 %v143
  %v549 = vunpack.c.l.b16 %v144
  %v550 = vunpack.c.h.b16 %v144
  %v551 = vunpack.c.l.b16 %v145
  %v552 = vunpack.c.h.b16 %v145
  %v553 = vunpack.c.l.b16 %v146
  %v554 = vunpack.c.h.b16 %v146
  %v555 = vunpack.c.l.b16 %v147
  %v556 = vunpack.c.h.b16 %v147
  %v557 = vunpack.c.l.b16 %v148
  %v558 = vunpack.c.h.b16 %v148
  %v559 = vunpack.c.l.b16 %v149
  %v560 = vunpack.c.h.b16 %v149
  %v561 = vunpack.c.l.b16 %v150
  %v562 = vunpack.c.h.b16 %v150
  %v563 = vunpack.c.l.b16 %v151
  %v564 = vunpack.c.h.b16 %v151
  %v565 = vunpack.c.l.b16 %v152
  %v566 = vunpack.c.h.b16 %v152
  %v567 = vunpack.c.l.b16 %v153
  %v568 = vunpack.c.h.b16 %v153
  %v569 = vunpack.c.l.b16 %v154
  %v570 = vunpack.c.h.b16 %v154
  %v571 = vpack.c.b16 %v317, %v315
  %v572 = vpack.c.b16 %v318, %v316
  %v573 = vpack.c.b16 %v321, %v319
  %v574 = vpack.c.b16 %v322, %v320
  %v575 = vpack.c.b16 %v325, %v323
  %v576 = vpack.c.b16 %v326, %v324
  %v577 = vpack.c.b16 %v329, %v327
  %v578 = vpack.c.b16 %v330, %v328
  %v579 = vpack.c.b16 %v333, %v331
  %v580 = vpack.c.b16 %v334, %v332
  %v581 = vpack.c.b16 %v337, %v335
  %v582 = vpack.c.b16 %v338, %v336
  %v583 = vpack.c.b16 %v341, %v339
  %v584 = vpack.c.b16 %v342, %v340
  %v585 = vpack.c.b16 %v345, %v343
  %v586 = vpack.c.b16 %v346, %v344
  %v587 = vpack.c.b16 %v349, %v347
  %v588 = vpack.c.b16 %v350, %v348
  %v589 = vpack.c.b16 %v353, %v351
  %v590 = vpack.c.b16 %v354, %v352
  %v591 = vpack.c.b16 %v357, %v355
  %v592 = vpack.c.b16 %v358, %v356
  %v593 = vpack.c.b16 %v361, %v359
  %v594 = vpack.c.b16 %v362, %v360
  %v595 = vpack.c.b16 %v365, %v363
  %v596 = vpack.c.b16 %v366, %v364
  %v597 = vpack.c.b16 %v369, %v367
  %v598 = vpack.c.b16 %v370, %v368
  %v599 = vpack.c.b16 %v373, %v371
  %v600 = vpack.c.b16 %v374, %v372
  %v601 = vpack.c.b16 %v377, %v375
  %v602 = vpack.c.b16 %v378, %v376
  %v603 = vpack.c.b16 %v381, %v379
  %v604 = vpack.c.b16 %v382, %v380
  %v605 = vpack.c.b16 %v385, %v383
  %v606 = vpack.c.b16 %v386, %v384
  %v607 = vpack.c.b16 %v389, %v387
  %v608 = vpack.c.b16 %v390, %v388
  %v609 = vpack.c.b16 %v393, %v391
  %v610 = vpack.c.b16 %v394, %v392
  %v611 = vpack.c.b16 %v397, %v395
  %v612 = vpack.c.b16 %v398, %v396
  %v613 = vpack.c.b16 %v401, %v399
  %v614 = vpack.c.b16 %v402, %v400
  %v615 = vpack.c.b16 %v405, %v403
  %v616 = vpack.c.b16 %v406, %v404
  %v617 = vpack.c.b16 %v409, %v407
  %v618 = vpack.c.b16 %v410, %v408
  %v619 = vpack.c.b16 %v413, %v411
  %v620 = vpack.c.b16 %v414, %v412
  %v621 = vpack.c.b16 %v417, %v415
  %v622 = vpack.c.b16 %v418, %v416
  %v623 = vpack.c.b16 %v421, %v419
  %v624 = vpack.c.b16 %v422, %v420
  %v625 = vpack.c.b16 %v425, %v423
  %v626 = vpack.c.b16 %v426, %v424
  %v627 = vpack.c.b16 %v429, %v427
  %v628 = vpack.c.b16 %v430, %v428
  %v629 = vpack.c.b16 %v433, %v431
  %v630 = vpack.c.b16 %v434, %v432
  %v631 = vpack.c.b16 %v437, %v435
  %v632 = vpack.c.b16 %v438, %v436
  %v633 = vpack.c.b16 %v441, %v439
  %v634 = vpack.c.b16 %v442, %v440
  %v635 = vpack.c.b16 %v445, %v443
  %v636 = vpack.c.b16 %v446, %v444
  %v637 = vpack.c.b16 %v449, %v447
  %v638 = vpack.c.b16 %v450, %v448
  %v639 = vpack.c.b16 %v453, %v451
  %v640 = vpack.c.b16 %v454, %v452
  %v641 = vpack.c.b16 %v457, %v455
  %v642 = vpack.c.b16 %v458, %v456
  %v643 = vpack.c.b16 %v461, %v459
  %v644 = vpack.c.b16 %v462, %v460
  %v645 = vpack.c.b16 %v465, %v463
  %v646 = vpack.c.b16 %v466, %v464
  %v647 = vpack.c.b16 %v469, %v467
  %v648 = vpack.c.b16 %v470, %v468
  %v649 = vpack.c.b16 %v473, %v471
  %v650 = vpack.c.b16 %v474, %v472
  %v651 = vpack.c.b16 %v477, %v475
  %v652 = vpack.c.b16 %v478, %v476
  %v653 = vpack.c.b16 %v481, %v479
  %v654 = vpack.c.b16 %v482, %v480
  %v655 = vpack.c.b16 %v485, %v483
  %v656 = vpack.c.b16 %v486, %v484
  %v657 = vpack.c.b16 %v489, %v487
  %v658 = vpack.c.b16 %v490, %v488
  %v659 = vpack.c.b16 %v493, %v491
  %v660 = vpack.c.b16 %v494, %v492
  %v661 = vpack.c.b16 %v497, %v495
  %v662 = vpack.c.b16 %v498, %v496
  %v663 = vpack.c.b16 %v501, %v499
  %v664 = vpack.c.b16 %v502, %v500
  %v665 = vpack.c.b16 %v505, %v503
  %v666 = vpack.c.b16 %v506, %v504
  %v667 = vpack.c.b16 %v509, %v507
  %v668 = vpack.c.b16 %v510, %v508
  %v669 = vpack.c.b16 %v513, %v511
  %v670 = vpack.c.b16 %v514, %v512
  %v671 = vpack.c.b16 %v517, %v515
  %v672 = vpack.c.b16 %v518, %v516
  %v673 = vpack.c.b16 %v521, %v519
  %v674 = vpack.c.b16 %v522, %v520
  %v675 = vpack.c.b16 %v525, %v523
  %v676 = vpack.c.b16 %v526, %v524
  %v677 = vpack.c.b16 %v529, %v527
  %v678 = vpack.c.b16 %v530, %v528
  %v679 = vpack.c.b16 %v533, %v531
  %v680 = vpack.c.b16 %v534, %v532
  %v681 = vpack.c.b16 %v537, %v535
  %v682 = vpack.c.b16 %v538, %v536
  %v683 = vpack.c.b16 %v541, %v539
  %v684 = vpack.c.b16 %v542, %v540
  %v685 = vpack.c.b16 %v545, %v543
  %v686 = vpack.c.b16 %v546, %v544
  %v687 = vpack.c.b16 %v549, %v547
  %v688 = vpack.c.b16 %v550, %v548
  %v689 = vpack.c.b16 %v553, %v551
  %v690 = vpack.c.b16 %v554, %v552
  %v691 = vpack.c.b16 %v557, %v555
  %v692 = vpack.c.b16 %v558, %v556
  %v693 = vpack.c.b16 %v561, %v559
  %v694 = vpack.c.b16 %v562, %v560
  %v695 = vpack.c.b16 %v565, %v563
  %v696 = vpack.c.b16 %v566, %v564
  %v697 = vpack.c.b16 %v569, %v567
  %v698 = vpack.c.b16 %v570, %v568
  %v859 = vunpack.c.l.b16 %v155
  %v860 = vunpack.c.l.b16 %v156
  %v861 = vunpack.c.l.b16 %v157
  %v862 = vunpack.c.l.b16 %v158
  %v863 = vunpack.c.l.b16 %v159
  %v864 = vunpack.c.l.b16 %v160
  %v865 = vunpack.c.l.b16 %v161
  %v866 = vunpack.c.l.b16 %v162
  %v867 = vunpack.c.l.b16 %v163
  %v868 = vunpack.c.l.b16 %v164
  %v869 = vunpack.c.l.b16 %v165
  %v870 = vunpack.c.l.b16 %v166
  %v871 = vunpack.c.l.b16 %v167
  %v872 = vunpack.c.l.b16 %v168
  %v873 = vunpack.c.l.b16 %v169
  %v874 = vunpack.c.l.b16 %v170
  %v875 = vunpack.c.l.b16 %v171
  %v876 = vunpack.c.l.b16 %v172
  %v877 = vunpack.c.l.b16 %v173
  %v878 = vunpack.c.l.b16 %v174
  %v879 = vunpack.c.l.b16 %v175
  %v880 = vunpack.c.l.b16 %v176
  %v881 = vunpack.c.l.b16 %v177
  %v882 = vunpack.c.l.b16 %v178
  %v883 = vunpack.c.l.b16 %v179
  %v884 = vunpack.c.l.b16 %v180
  %v885 = vunpack.c.l.b16 %v181
  %v886 = vunpack.c.l.b16 %v182
  %v887 = vunpack.c.l.b16 %v183
  %v888 = vunpack.c.l.b16 %v184
  %v889 = vunpack.c.l.b16 %v185
  %v890 = vunpack.c.l.b16 %v186
  %v891 = vpack.c.b16 %v860, %v859
  %v892 = vpack.c.b16 %v862, %v861
  %v893 = vpack.c.b16 %v864, %v863
  %v894 = vpack.c.b16 %v866, %v865
  %v895 = vpack.c.b16 %v868, %v867
  %v896 = vpack.c.b16 %v870, %v869
  %v897 = vpack.c.b16 %v872, %v871
  %v898 = vpack.c.b16 %v874, %v873
  %v899 = vpack.c.b16 %v876, %v875
  %v900 = vpack.c.b16 %v878, %v877
  %v901 = vpack.c.b16 %v880, %v879
  %v902 = vpack.c.b16 %v882, %v881
  %v903 = vpack.c.b16 %v884, %v883
  %v904 = vpack.c.b16 %v886, %v885
  %v905 = vpack.c.b16 %v888, %v887
  %v906 = vpack.c.b16 %v890, %v889
  %923 = vmatprep.subr.bf16.mxu0 0
  %924 = vmatpush1.bf16.msra.mxu0 %v891
  %925 = vmatprep.subr.bf16.mxu0 0
  %926 = vmatpush1.bf16.msra.mxu0 %v892
  %927 = vmatprep.subr.bf16.mxu0 0
  %928 = vmatpush1.bf16.msra.mxu0 %v893
  %929 = vmatprep.subr.bf16.mxu0 0
  %930 = vmatpush1.bf16.msra.mxu0 %v894
  %931 = vmatprep.subr.bf16.mxu0 0
  %932 = vmatpush1.bf16.msra.mxu0 %v895
  %933 = vmatprep.subr.bf16.mxu0 0
  %934 = vmatpush1.bf16.msra.mxu0 %v896
  %935 = vmatprep.subr.bf16.mxu0 0
  %936 = vmatpush1.bf16.msra.mxu0 %v897
  %937 = vmatprep.subr.bf16.mxu0 0
  %938 = vmatpush1.bf16.msra.mxu0 %v898
  %939 = vmatprep.subr.bf16.mxu0 0
  %940 = vmatpush1.bf16.msra.mxu0 %v899
  %941 = vmatprep.subr.bf16.mxu0 0
  %942 = vmatpush1.bf16.msra.mxu0 %v900
  %943 = vmatprep.subr.bf16.mxu0 0
  %944 = vmatpush1.bf16.msra.mxu0 %v901
  %945 = vmatprep.subr.bf16.mxu0 0
  %946 = vmatpush1.bf16.msra.mxu0 %v902
  %947 = vmatprep.subr.bf16.mxu0 0
  %948 = vmatpush1.bf16.msra.mxu0 %v903
  %949 = vmatprep.subr.bf16.mxu0 0
  %950 = vmatpush1.bf16.msra.mxu0 %v904
  %951 = vmatprep.subr.bf16.mxu0 0
  %952 = vmatpush1.bf16.msra.mxu0 %v905
  %953 = vmatprep.subr.bf16.mxu0 0
  %954 = vmatpush1.bf16.msra.mxu0 %v906
  %955 = vmatprep.mubr.bf16.mxu0 %v572
  %956 = vmatmul.mubr.bf16.gmra.mrb[0].mxu0 %v571
  %v957 = vpop.f32.mrb[0].mxu0
  %v958 = vadd.f32 0.0, %v957
  %v959 = vpop.f32.mrb[0].mxu0
  %v960 = vpop.f32.mrb[0].mxu0
  %v961 = vadd.f32 0.0, %v960
  %v962 = vpop.f32.mrb[0].mxu0
  %963 = vmatprep.mubr.bf16.mxu0 %v574
  %964 = vmatmul.mubr.bf16.gmra.mrb[0].mxu0 %v573
  %v965 = vpop.f32.mrb[0].mxu0
  %v966 = vadd.f32 0.0, %v965
  %v967 = vpop.f32.mrb[0].mxu0
  %v968 = vpop.f32.mrb[0].mxu0
  %v969 = vadd.f32 0.0, %v968
  %v970 = vpop.f32.mrb[0].mxu0
  %971 = vmatprep.mubr.bf16.mxu0 %v576
  %972 = vmatmul.mubr.bf16.gmra.mrb[0].mxu0 %v575
  %v973 = vpop.f32.mrb[0].mxu0
  %v974 = vadd.f32 0.0, %v973
  %v975 = vpop.f32.mrb[0].mxu0
  %v976 = vpop.f32.mrb[0].mxu0
  %v977 = vadd.f32 0.0, %v976
  %v978 = vpop.f32.mrb[0].mxu0
  %979 = vmatprep.mubr.bf16.mxu0 %v578
  %980 = vmatmul.mubr.bf16.gmra.mrb[0].mxu0 %v577
  %v981 = vpop.f32.mrb[0].mxu0
  %v982 = vadd.f32 0.0, %v981
  %v983 = vpop.f32.mrb[0].mxu0
  %v984 = vpop.f32.mrb[0].mxu0
  %v985 = vadd.f32 0.0, %v984
  %v986 = vpop.f32.mrb[0].mxu0
  %987 = vmatprep.mubr.bf16.mxu0 %v580
  %988 = vmatmul.mubr.bf16.gmra.mrb[0].mxu0 %v579
  %v989 = vpop.f32.mrb[0].mxu0
  %v990 = vadd.f32 0.0, %v989
  %v991 = vpop.f32.mrb[0].mxu0
  %v992 = vpop.f32.mrb[0].mxu0
  %v993 = vadd.f32 0.0, %v992
  %v994 = vpop.f32.mrb[0].mxu0
  %995 = vmatprep.mubr.bf16.mxu0 %v582
  %996 = vmatmul.mubr.bf16.gmra.mrb[0].mxu0 %v581
  %v997 = vpop.f32.mrb[0].mxu0
  %v998 = vadd.f32 0.0, %v997
  %v999 = vpop.f32.mrb[0].mxu0
  %v1000 = vpop.f32.mrb[0].mxu0
  %v1001 = vadd.f32 0.0, %v1000
  %v1002 = vpop.f32.mrb[0].mxu0
  %1003 = vmatprep.mubr.bf16.mxu0 %v584
  %1004 = vmatmul.mubr.bf16.gmra.mrb[0].mxu0 %v583
  %v1005 = vpop.f32.mrb[0].mxu0
  %v1006 = vadd.f32 0.0, %v1005
  %v1007 = vpop.f32.mrb[0].mxu0
  %v1008 = vpop.f32.mrb[0].mxu0
  %v1009 = vadd.f32 0.0, %v1008
  %v1010 = vpop.f32.mrb[0].mxu0
  %1011 = vmatprep.mubr.bf16.mxu0 %v586
  %1012 = vmatmul.mubr.bf16.gmra.mrb[0].mxu0 %v585
  %v1013 = vpop.f32.mrb[0].mxu0
  %v1014 = vadd.f32 0.0, %v1013
  %v1015 = vpop.f32.mrb[0].mxu0
  %v1016 = vpop.f32.mrb[0].mxu0
  %v1017 = vadd.f32 0.0, %v1016
  %v1018 = vpop.f32.mrb[0].mxu0
  %1019 = vmatprep.mubr.bf16.mxu0 %v588
  %1020 = vmatmul.mubr.bf16.gmra.mrb[0].mxu0 %v587
  %v1021 = vpop.f32.mrb[0].mxu0
  %v1022 = vadd.f32 0.0, %v1021
  %v1023 = vpop.f32.mrb[0].mxu0
  %v1024 = vpop.f32.mrb[0].mxu0
  %v1025 = vadd.f32 0.0, %v1024
  %v1026 = vpop.f32.mrb[0].mxu0
  %1027 = vmatprep.mubr.bf16.mxu0 %v590
  %1028 = vmatmul.mubr.bf16.gmra.mrb[0].mxu0 %v589
  %v1029 = vpop.f32.mrb[0].mxu0
  %v1030 = vadd.f32 0.0, %v1029
  %v1031 = vpop.f32.mrb[0].mxu0
  %v1032 = vpop.f32.mrb[0].mxu0
  %v1033 = vadd.f32 0.0, %v1032
  %v1034 = vpop.f32.mrb[0].mxu0
  %1035 = vmatprep.mubr.bf16.mxu0 %v592
  %1036 = vmatmul.mubr.bf16.gmra.mrb[0].mxu0 %v591
  %v1037 = vpop.f32.mrb[0].mxu0
  %v1038 = vadd.f32 0.0, %v1037
  %v1039 = vpop.f32.mrb[0].mxu0
  %v1040 = vpop.f32.mrb[0].mxu0
  %v1041 = vadd.f32 0.0, %v1040
  %v1042 = vpop.f32.mrb[0].mxu0
  %1043 = vmatprep.mubr.bf16.mxu0 %v594
  %1044 = vmatmul.mubr.bf16.gmra.mrb[0].mxu0 %v593
  %v1045 = vpop.f32.mrb[0].mxu0
  %v1046 = vadd.f32 0.0, %v1045
  %v1047 = vpop.f32.mrb[0].mxu0
  %v1048 = vpop.f32.mrb[0].mxu0
  %v1049 = vadd.f32 0.0, %v1048
  %v1050 = vpop.f32.mrb[0].mxu0
  %1051 = vmatprep.mubr.bf16.mxu0 %v596
  %1052 = vmatmul.mubr.bf16.gmra.mrb[0].mxu0 %v595
  %v1053 = vpop.f32.mrb[0].mxu0
  %v1054 = vadd.f32 0.0, %v1053
  %v1055 = vpop.f32.mrb[0].mxu0
  %v1056 = vpop.f32.mrb[0].mxu0
  %v1057 = vadd.f32 0.0, %v1056
  %v1058 = vpop.f32.mrb[0].mxu0
  %1059 = vmatprep.mubr.bf16.mxu0 %v598
  %1060 = vmatmul.mubr.bf16.gmra.mrb[0].mxu0 %v597
  %v1061 = vpop.f32.mrb[0].mxu0
  %v1062 = vadd.f32 0.0, %v1061
  %v1063 = vpop.f32.mrb[0].mxu0
  %v1064 = vpop.f32.mrb[0].mxu0
  %v1065 = vadd.f32 0.0, %v1064
  %v1066 = vpop.f32.mrb[0].mxu0
  %1067 = vmatprep.mubr.bf16.mxu0 %v600
  %1068 = vmatmul.mubr.bf16.gmra.mrb[0].mxu0 %v599
  %v1069 = vpop.f32.mrb[0].mxu0
  %v1070 = vadd.f32 0.0, %v1069
  %v1071 = vpop.f32.mrb[0].mxu0
  %v1072 = vpop.f32.mrb[0].mxu0
  %v1073 = vadd.f32 0.0, %v1072
  %v1074 = vpop.f32.mrb[0].mxu0
  %1075 = vmatprep.mubr.bf16.mxu0 %v602
  %1076 = vmatmul.mubr.bf16.gmra.mrb[0].mxu0 %v601
  %v1077 = vpop.f32.mrb[0].mxu0
  %v1078 = vadd.f32 0.0, %v1077
  %v1079 = vpop.f32.mrb[0].mxu0
  %v1080 = vpop.f32.mrb[0].mxu0
  %v1081 = vadd.f32 0.0, %v1080
  %v1082 = vpop.f32.mrb[0].mxu0
  %1083 = vmatprep.mubr.bf16.mxu0 %v604
  %1084 = vmatmul.mubr.bf16.gmra.mrb[0].mxu0 %v603
  %v1085 = vpop.f32.mrb[0].mxu0
  %v1086 = vadd.f32 0.0, %v1085
  %v1087 = vpop.f32.mrb[0].mxu0
  %v1088 = vpop.f32.mrb[0].mxu0
  %v1089 = vadd.f32 0.0, %v1088
  %v1090 = vpop.f32.mrb[0].mxu0
  %1091 = vmatprep.mubr.bf16.mxu0 %v606
  %1092 = vmatmul.mubr.bf16.gmra.mrb[0].mxu0 %v605
  %v1093 = vpop.f32.mrb[0].mxu0
  %v1094 = vadd.f32 0.0, %v1093
  %v1095 = vpop.f32.mrb[0].mxu0
  %v1096 = vpop.f32.mrb[0].mxu0
  %v1097 = vadd.f32 0.0, %v1096
  %v1098 = vpop.f32.mrb[0].mxu0
  %1099 = vmatprep.mubr.bf16.mxu0 %v608
  %1100 = vmatmul.mubr.bf16.gmra.mrb[0].mxu0 %v607
  %v1101 = vpop.f32.mrb[0].mxu0
  %v1102 = vadd.f32 0.0, %v1101
  %v1103 = vpop.f32.mrb[0].mxu0
  %v1104 = vpop.f32.mrb[0].mxu0
  %v1105 = vadd.f32 0.0, %v1104
  %v1106 = vpop.f32.mrb[0].mxu0
  %1107 = vmatprep.mubr.bf16.mxu0 %v610
  %1108 = vmatmul.mubr.bf16.gmra.mrb[0].mxu0 %v609
  %v1109 = vpop.f32.mrb[0].mxu0
  %v1110 = vadd.f32 0.0, %v1109
  %v1111 = vpop.f32.mrb[0].mxu0
  %v1112 = vpop.f32.mrb[0].mxu0
  %v1113 = vadd.f32 0.0, %v1112
  %v1114 = vpop.f32.mrb[0].mxu0
  %1115 = vmatprep.mubr.bf16.mxu0 %v612
  %1116 = vmatmul.mubr.bf16.gmra.mrb[0].mxu0 %v611
  %v1117 = vpop.f32.mrb[0].mxu0
  %v1118 = vadd.f32 0.0, %v1117
  %v1119 = vpop.f32.mrb[0].mxu0
  %v1120 = vpop.f32.mrb[0].mxu0
  %v1121 = vadd.f32 0.0, %v1120
  %v1122 = vpop.f32.mrb[0].mxu0
  %1123 = vmatprep.mubr.bf16.mxu0 %v614
  %1124 = vmatmul.mubr.bf16.gmra.mrb[0].mxu0 %v613
  %v1125 = vpop.f32.mrb[0].mxu0
  %v1126 = vadd.f32 0.0, %v1125
  %v1127 = vpop.f32.mrb[0].mxu0
  %v1128 = vpop.f32.mrb[0].mxu0
  %v1129 = vadd.f32 0.0, %v1128
  %v1130 = vpop.f32.mrb[0].mxu0
  %1131 = vmatprep.mubr.bf16.mxu0 %v616
  %1132 = vmatmul.mubr.bf16.gmra.mrb[0].mxu0 %v615
  %v1133 = vpop.f32.mrb[0].mxu0
  %v1134 = vadd.f32 0.0, %v1133
  %v1135 = vpop.f32.mrb[0].mxu0
  %v1136 = vpop.f32.mrb[0].mxu0
  %v1137 = vadd.f32 0.0, %v1136
  %v1138 = vpop.f32.mrb[0].mxu0
  %1139 = vmatprep.mubr.bf16.mxu0 %v618
  %1140 = vmatmul.mubr.bf16.gmra.mrb[0].mxu0 %v617
  %v1141 = vpop.f32.mrb[0].mxu0
  %v1142 = vadd.f32 0.0, %v1141
  %v1143 = vpop.f32.mrb[0].mxu0
  %v1144 = vpop.f32.mrb[0].mxu0
  %v1145 = vadd.f32 0.0, %v1144
  %v1146 = vpop.f32.mrb[0].mxu0
  %1147 = vmatprep.mubr.bf16.mxu0 %v620
  %1148 = vmatmul.mubr.bf16.gmra.mrb[0].mxu0 %v619
  %v1149 = vpop.f32.mrb[0].mxu0
  %v1150 = vadd.f32 0.0, %v1149
  %v1151 = vpop.f32.mrb[0].mxu0
  %v1152 = vpop.f32.mrb[0].mxu0
  %v1153 = vadd.f32 0.0, %v1152
  %v1154 = vpop.f32.mrb[0].mxu0
  %1155 = vmatprep.mubr.bf16.mxu0 %v622
  %1156 = vmatmul.mubr.bf16.gmra.mrb[0].mxu0 %v621
  %v1157 = vpop.f32.mrb[0].mxu0
  %v1158 = vadd.f32 0.0, %v1157
  %v1159 = vpop.f32.mrb[0].mxu0
  %v1160 = vpop.f32.mrb[0].mxu0
  %v1161 = vadd.f32 0.0, %v1160
  %v1162 = vpop.f32.mrb[0].mxu0
  %1163 = vmatprep.mubr.bf16.mxu0 %v624
  %1164 = vmatmul.mubr.bf16.gmra.mrb[0].mxu0 %v623
  %v1165 = vpop.f32.mrb[0].mxu0
  %v1166 = vadd.f32 0.0, %v1165
  %v1167 = vpop.f32.mrb[0].mxu0
  %v1168 = vpop.f32.mrb[0].mxu0
  %v1169 = vadd.f32 0.0, %v1168
  %v1170 = vpop.f32.mrb[0].mxu0
  %1171 = vmatprep.mubr.bf16.mxu0 %v626
  %1172 = vmatmul.mubr.bf16.gmra.mrb[0].mxu0 %v625
  %v1173 = vpop.f32.mrb[0].mxu0
  %v1174 = vadd.f32 0.0, %v1173
  %v1175 = vpop.f32.mrb[0].mxu0
  %v1176 = vpop.f32.mrb[0].mxu0
  %v1177 = vadd.f32 0.0, %v1176
  %v1178 = vpop.f32.mrb[0].mxu0
  %1179 = vmatprep.mubr.bf16.mxu0 %v628
  %1180 = vmatmul.mubr.bf16.gmra.mrb[0].mxu0 %v627
  %v1181 = vpop.f32.mrb[0].mxu0
  %v1182 = vadd.f32 0.0, %v1181
  %v1183 = vpop.f32.mrb[0].mxu0
  %v1184 = vpop.f32.mrb[0].mxu0
  %v1185 = vadd.f32 0.0, %v1184
  %v1186 = vpop.f32.mrb[0].mxu0
  %1187 = vmatprep.mubr.bf16.mxu0 %v630
  %1188 = vmatmul.mubr.bf16.gmra.mrb[0].mxu0 %v629
  %v1189 = vpop.f32.mrb[0].mxu0
  %v1190 = vadd.f32 0.0, %v1189
  %v1191 = vpop.f32.mrb[0].mxu0
  %v1192 = vpop.f32.mrb[0].mxu0
  %v1193 = vadd.f32 0.0, %v1192
  %v1194 = vpop.f32.mrb[0].mxu0
  %1195 = vmatprep.mubr.bf16.mxu0 %v632
  %1196 = vmatmul.mubr.bf16.gmra.mrb[0].mxu0 %v631
  %v1197 = vpop.f32.mrb[0].mxu0
  %v1198 = vadd.f32 0.0, %v1197
  %v1199 = vpop.f32.mrb[0].mxu0
  %v1200 = vpop.f32.mrb[0].mxu0
  %v1201 = vadd.f32 0.0, %v1200
  %v1202 = vpop.f32.mrb[0].mxu0
  %1203 = vmatprep.mubr.bf16.mxu0 %v634
  %1204 = vmatmul.mubr.bf16.gmra.mrb[0].mxu0 %v633
  %v1205 = vpop.f32.mrb[0].mxu0
  %v1206 = vadd.f32 0.0, %v1205
  %v1207 = vpop.f32.mrb[0].mxu0
  %v1208 = vpop.f32.mrb[0].mxu0
  %v1209 = vadd.f32 0.0, %v1208
  %v1210 = vpop.f32.mrb[0].mxu0
  %1211 = vmatprep.mubr.bf16.mxu0 %v636
  %1212 = vmatmul.mubr.bf16.gmra.mrb[0].mxu0 %v635
  %v1213 = vpop.f32.mrb[0].mxu0
  %v1214 = vadd.f32 0.0, %v1213
  %v1215 = vpop.f32.mrb[0].mxu0
  %v1216 = vpop.f32.mrb[0].mxu0
  %v1217 = vadd.f32 0.0, %v1216
  %v1218 = vpop.f32.mrb[0].mxu0
  %1219 = vmatprep.mubr.bf16.mxu0 %v638
  %1220 = vmatmul.mubr.bf16.gmra.mrb[0].mxu0 %v637
  %v1221 = vpop.f32.mrb[0].mxu0
  %v1222 = vadd.f32 0.0, %v1221
  %v1223 = vpop.f32.mrb[0].mxu0
  %v1224 = vpop.f32.mrb[0].mxu0
  %v1225 = vadd.f32 0.0, %v1224
  %v1226 = vpop.f32.mrb[0].mxu0
  %1227 = vmatprep.mubr.bf16.mxu0 %v640
  %1228 = vmatmul.mubr.bf16.gmra.mrb[0].mxu0 %v639
  %v1229 = vpop.f32.mrb[0].mxu0
  %v1230 = vadd.f32 0.0, %v1229
  %v1231 = vpop.f32.mrb[0].mxu0
  %v1232 = vpop.f32.mrb[0].mxu0
  %v1233 = vadd.f32 0.0, %v1232
  %v1234 = vpop.f32.mrb[0].mxu0
  %1235 = vmatprep.mubr.bf16.mxu0 %v642
  %1236 = vmatmul.mubr.bf16.gmra.mrb[0].mxu0 %v641
  %v1237 = vpop.f32.mrb[0].mxu0
  %v1238 = vadd.f32 0.0, %v1237
  %v1239 = vpop.f32.mrb[0].mxu0
  %v1240 = vpop.f32.mrb[0].mxu0
  %v1241 = vadd.f32 0.0, %v1240
  %v1242 = vpop.f32.mrb[0].mxu0
  %1243 = vmatprep.mubr.bf16.mxu0 %v644
  %1244 = vmatmul.mubr.bf16.gmra.mrb[0].mxu0 %v643
  %v1245 = vpop.f32.mrb[0].mxu0
  %v1246 = vadd.f32 0.0, %v1245
  %v1247 = vpop.f32.mrb[0].mxu0
  %v1248 = vpop.f32.mrb[0].mxu0
  %v1249 = vadd.f32 0.0, %v1248
  %v1250 = vpop.f32.mrb[0].mxu0
  %1251 = vmatprep.mubr.bf16.mxu0 %v646
  %1252 = vmatmul.mubr.bf16.gmra.mrb[0].mxu0 %v645
  %v1253 = vpop.f32.mrb[0].mxu0
  %v1254 = vadd.f32 0.0, %v1253
  %v1255 = vpop.f32.mrb[0].mxu0
  %v1256 = vpop.f32.mrb[0].mxu0
  %v1257 = vadd.f32 0.0, %v1256
  %v1258 = vpop.f32.mrb[0].mxu0
  %1259 = vmatprep.mubr.bf16.mxu0 %v648
  %1260 = vmatmul.mubr.bf16.gmra.mrb[0].mxu0 %v647
  %v1261 = vpop.f32.mrb[0].mxu0
  %v1262 = vadd.f32 0.0, %v1261
  %v1263 = vpop.f32.mrb[0].mxu0
  %v1264 = vpop.f32.mrb[0].mxu0
  %v1265 = vadd.f32 0.0, %v1264
  %v1266 = vpop.f32.mrb[0].mxu0
  %1267 = vmatprep.mubr.bf16.mxu0 %v650
  %1268 = vmatmul.mubr.bf16.gmra.mrb[0].mxu0 %v649
  %v1269 = vpop.f32.mrb[0].mxu0
  %v1270 = vadd.f32 0.0, %v1269
  %v1271 = vpop.f32.mrb[0].mxu0
  %v1272 = vpop.f32.mrb[0].mxu0
  %v1273 = vadd.f32 0.0, %v1272
  %v1274 = vpop.f32.mrb[0].mxu0
  %1275 = vmatprep.mubr.bf16.mxu0 %v652
  %1276 = vmatmul.mubr.bf16.gmra.mrb[0].mxu0 %v651
  %v1277 = vpop.f32.mrb[0].mxu0
  %v1278 = vadd.f32 0.0, %v1277
  %v1279 = vpop.f32.mrb[0].mxu0
  %v1280 = vpop.f32.mrb[0].mxu0
  %v1281 = vadd.f32 0.0, %v1280
  %v1282 = vpop.f32.mrb[0].mxu0
  %1283 = vmatprep.mubr.bf16.mxu0 %v654
  %1284 = vmatmul.mubr.bf16.gmra.mrb[0].mxu0 %v653
  %v1285 = vpop.f32.mrb[0].mxu0
  %v1286 = vadd.f32 0.0, %v1285
  %v1287 = vpop.f32.mrb[0].mxu0
  %v1288 = vpop.f32.mrb[0].mxu0
  %v1289 = vadd.f32 0.0, %v1288
  %v1290 = vpop.f32.mrb[0].mxu0
  %1291 = vmatprep.mubr.bf16.mxu0 %v656
  %1292 = vmatmul.mubr.bf16.gmra.mrb[0].mxu0 %v655
  %v1293 = vpop.f32.mrb[0].mxu0
  %v1294 = vadd.f32 0.0, %v1293
  %v1295 = vpop.f32.mrb[0].mxu0
  %v1296 = vpop.f32.mrb[0].mxu0
  %v1297 = vadd.f32 0.0, %v1296
  %v1298 = vpop.f32.mrb[0].mxu0
  %1299 = vmatprep.mubr.bf16.mxu0 %v658
  %1300 = vmatmul.mubr.bf16.gmra.mrb[0].mxu0 %v657
  %v1301 = vpop.f32.mrb[0].mxu0
  %v1302 = vadd.f32 0.0, %v1301
  %v1303 = vpop.f32.mrb[0].mxu0
  %v1304 = vpop.f32.mrb[0].mxu0
  %v1305 = vadd.f32 0.0, %v1304
  %v1306 = vpop.f32.mrb[0].mxu0
  %1307 = vmatprep.mubr.bf16.mxu0 %v660
  %1308 = vmatmul.mubr.bf16.gmra.mrb[0].mxu0 %v659
  %v1309 = vpop.f32.mrb[0].mxu0
  %v1310 = vadd.f32 0.0, %v1309
  %v1311 = vpop.f32.mrb[0].mxu0
  %v1312 = vpop.f32.mrb[0].mxu0
  %v1313 = vadd.f32 0.0, %v1312
  %v1314 = vpop.f32.mrb[0].mxu0
  %1315 = vmatprep.mubr.bf16.mxu0 %v662
  %1316 = vmatmul.mubr.bf16.gmra.mrb[0].mxu0 %v661
  %v1317 = vpop.f32.mrb[0].mxu0
  %v1318 = vadd.f32 0.0, %v1317
  %v1319 = vpop.f32.mrb[0].mxu0
  %v1320 = vpop.f32.mrb[0].mxu0
  %v1321 = vadd.f32 0.0, %v1320
  %v1322 = vpop.f32.mrb[0].mxu0
  %1323 = vmatprep.mubr.bf16.mxu0 %v664
  %1324 = vmatmul.mubr.bf16.gmra.mrb[0].mxu0 %v663
  %v1325 = vpop.f32.mrb[0].mxu0
  %v1326 = vadd.f32 0.0, %v1325
  %v1327 = vpop.f32.mrb[0].mxu0
  %v1328 = vpop.f32.mrb[0].mxu0
  %v1329 = vadd.f32 0.0, %v1328
  %v1330 = vpop.f32.mrb[0].mxu0
  %1331 = vmatprep.mubr.bf16.mxu0 %v666
  %1332 = vmatmul.mubr.bf16.gmra.mrb[0].mxu0 %v665
  %v1333 = vpop.f32.mrb[0].mxu0
  %v1334 = vadd.f32 0.0, %v1333
  %v1335 = vpop.f32.mrb[0].mxu0
  %v1336 = vpop.f32.mrb[0].mxu0
  %v1337 = vadd.f32 0.0, %v1336
  %v1338 = vpop.f32.mrb[0].mxu0
  %1339 = vmatprep.mubr.bf16.mxu0 %v668
  %1340 = vmatmul.mubr.bf16.gmra.mrb[0].mxu0 %v667
  %v1341 = vpop.f32.mrb[0].mxu0
  %v1342 = vadd.f32 0.0, %v1341
  %v1343 = vpop.f32.mrb[0].mxu0
  %v1344 = vpop.f32.mrb[0].mxu0
  %v1345 = vadd.f32 0.0, %v1344
  %v1346 = vpop.f32.mrb[0].mxu0
  %1347 = vmatprep.mubr.bf16.mxu0 %v670
  %1348 = vmatmul.mubr.bf16.gmra.mrb[0].mxu0 %v669
  %v1349 = vpop.f32.mrb[0].mxu0
  %v1350 = vadd.f32 0.0, %v1349
  %v1351 = vpop.f32.mrb[0].mxu0
  %v1352 = vpop.f32.mrb[0].mxu0
  %v1353 = vadd.f32 0.0, %v1352
  %v1354 = vpop.f32.mrb[0].mxu0
  %1355 = vmatprep.mubr.bf16.mxu0 %v672
  %1356 = vmatmul.mubr.bf16.gmra.mrb[0].mxu0 %v671
  %v1357 = vpop.f32.mrb[0].mxu0
  %v1358 = vadd.f32 0.0, %v1357
  %v1359 = vpop.f32.mrb[0].mxu0
  %v1360 = vpop.f32.mrb[0].mxu0
  %v1361 = vadd.f32 0.0, %v1360
  %v1362 = vpop.f32.mrb[0].mxu0
  %1363 = vmatprep.mubr.bf16.mxu0 %v674
  %1364 = vmatmul.mubr.bf16.gmra.mrb[0].mxu0 %v673
  %v1365 = vpop.f32.mrb[0].mxu0
  %v1366 = vadd.f32 0.0, %v1365
  %v1367 = vpop.f32.mrb[0].mxu0
  %v1368 = vpop.f32.mrb[0].mxu0
  %v1369 = vadd.f32 0.0, %v1368
  %v1370 = vpop.f32.mrb[0].mxu0
  %1371 = vmatprep.mubr.bf16.mxu0 %v676
  %1372 = vmatmul.mubr.bf16.gmra.mrb[0].mxu0 %v675
  %v1373 = vpop.f32.mrb[0].mxu0
  %v1374 = vadd.f32 0.0, %v1373
  %v1375 = vpop.f32.mrb[0].mxu0
  %v1376 = vpop.f32.mrb[0].mxu0
  %v1377 = vadd.f32 0.0, %v1376
  %v1378 = vpop.f32.mrb[0].mxu0
  %1379 = vmatprep.mubr.bf16.mxu0 %v678
  %1380 = vmatmul.mubr.bf16.gmra.mrb[0].mxu0 %v677
  %v1381 = vpop.f32.mrb[0].mxu0
  %v1382 = vadd.f32 0.0, %v1381
  %v1383 = vpop.f32.mrb[0].mxu0
  %v1384 = vpop.f32.mrb[0].mxu0
  %v1385 = vadd.f32 0.0, %v1384
  %v1386 = vpop.f32.mrb[0].mxu0
  %1387 = vmatprep.mubr.bf16.mxu0 %v680
  %1388 = vmatmul.mubr.bf16.gmra.mrb[0].mxu0 %v679
  %v1389 = vpop.f32.mrb[0].mxu0
  %v1390 = vadd.f32 0.0, %v1389
  %v1391 = vpop.f32.mrb[0].mxu0
  %v1392 = vpop.f32.mrb[0].mxu0
  %v1393 = vadd.f32 0.0, %v1392
  %v1394 = vpop.f32.mrb[0].mxu0
  %1395 = vmatprep.mubr.bf16.mxu0 %v682
  %1396 = vmatmul.mubr.bf16.gmra.mrb[0].mxu0 %v681
  %v1397 = vpop.f32.mrb[0].mxu0
  %v1398 = vadd.f32 0.0, %v1397
  %v1399 = vpop.f32.mrb[0].mxu0
  %v1400 = vpop.f32.mrb[0].mxu0
  %v1401 = vadd.f32 0.0, %v1400
  %v1402 = vpop.f32.mrb[0].mxu0
  %1403 = vmatprep.mubr.bf16.mxu0 %v684
  %1404 = vmatmul.mubr.bf16.gmra.mrb[0].mxu0 %v683
  %v1405 = vpop.f32.mrb[0].mxu0
  %v1406 = vadd.f32 0.0, %v1405
  %v1407 = vpop.f32.mrb[0].mxu0
  %v1408 = vpop.f32.mrb[0].mxu0
  %v1409 = vadd.f32 0.0, %v1408
  %v1410 = vpop.f32.mrb[0].mxu0
  %1411 = vmatprep.mubr.bf16.mxu0 %v686
  %1412 = vmatmul.mubr.bf16.gmra.mrb[0].mxu0 %v685
  %v1413 = vpop.f32.mrb[0].mxu0
  %v1414 = vadd.f32 0.0, %v1413
  %v1415 = vpop.f32.mrb[0].mxu0
  %v1416 = vpop.f32.mrb[0].mxu0
  %v1417 = vadd.f32 0.0, %v1416
  %v1418 = vpop.f32.mrb[0].mxu0
  %1419 = vmatprep.mubr.bf16.mxu0 %v688
  %1420 = vmatmul.mubr.bf16.gmra.mrb[0].mxu0 %v687
  %v1421 = vpop.f32.mrb[0].mxu0
  %v1422 = vadd.f32 0.0, %v1421
  %v1423 = vpop.f32.mrb[0].mxu0
  %v1424 = vpop.f32.mrb[0].mxu0
  %v1425 = vadd.f32 0.0, %v1424
  %v1426 = vpop.f32.mrb[0].mxu0
  %1427 = vmatprep.mubr.bf16.mxu0 %v690
  %1428 = vmatmul.mubr.bf16.gmra.mrb[0].mxu0 %v689
  %v1429 = vpop.f32.mrb[0].mxu0
  %v1430 = vadd.f32 0.0, %v1429
  %v1431 = vpop.f32.mrb[0].mxu0
  %v1432 = vpop.f32.mrb[0].mxu0
  %v1433 = vadd.f32 0.0, %v1432
  %v1434 = vpop.f32.mrb[0].mxu0
  %1435 = vmatprep.mubr.bf16.mxu0 %v692
  %1436 = vmatmul.mubr.bf16.gmra.mrb[0].mxu0 %v691
  %v1437 = vpop.f32.mrb[0].mxu0
  %v1438 = vadd.f32 0.0, %v1437
  %v1439 = vpop.f32.mrb[0].mxu0
  %v1440 = vpop.f32.mrb[0].mxu0
  %v1441 = vadd.f32 0.0, %v1440
  %v1442 = vpop.f32.mrb[0].mxu0
  %1443 = vmatprep.mubr.bf16.mxu0 %v694
  %1444 = vmatmul.mubr.bf16.gmra.mrb[0].mxu0 %v693
  %v1445 = vpop.f32.mrb[0].mxu0
  %v1446 = vadd.f32 0.0, %v1445
  %v1447 = vpop.f32.mrb[0].mxu0
  %v1448 = vpop.f32.mrb[0].mxu0
  %v1449 = vadd.f32 0.0, %v1448
  %v1450 = vpop.f32.mrb[0].mxu0
  %1451 = vmatprep.mubr.bf16.mxu0 %v696
  %1452 = vmatmul.mubr.bf16.gmra.mrb[0].mxu0 %v695
  %v1453 = vpop.f32.mrb[0].mxu0
  %v1454 = vadd.f32 0.0, %v1453
  %v1455 = vpop.f32.mrb[0].mxu0
  %v1456 = vpop.f32.mrb[0].mxu0
  %v1457 = vadd.f32 0.0, %v1456
  %v1458 = vpop.f32.mrb[0].mxu0
  %1459 = vmatprep.mubr.bf16.mxu0 %v698
  %1460 = vmatmul.mubr.bf16.gmra.mrb[0].mxu0 %v697
  %v1461 = vpop.f32.mrb[0].mxu0
  %v1462 = vadd.f32 0.0, %v1461
  %v1463 = vpop.f32.mrb[0].mxu0
  %v1464 = vpop.f32.mrb[0].mxu0
  %v1465 = vadd.f32 0.0, %v1464
  %v1466 = vpop.f32.mrb[0].mxu0
  %1467 = vdwg.mxu0
  %vm1468 = vcmask 261120
  %v1469 = vsel %vm1468, %v958, -inf
  %v1470 = vsel %vm1468, %v1086, -inf
  %v1471 = vmax.f32 %v1469, %v1470
  %v1472 = vsel %vm1468, %v1214, -inf
  %v1473 = vmax.f32 %v1471, %v1472
  %v1474 = vsel %vm1468, %v1342, -inf
  %v1475 = vmax.f32 %v1473, %v1474
  %v1476 = vsel %vm1468, %v961, -inf
  %v1477 = vsel %vm1468, %v1089, -inf
  %v1478 = vmax.f32 %v1476, %v1477
  %v1479 = vsel %vm1468, %v1217, -inf
  %v1480 = vmax.f32 %v1478, %v1479
  %v1481 = vsel %vm1468, %v1345, -inf
  %v1482 = vmax.f32 %v1480, %v1481
  %v1483 = vsel %vm1468, %v966, -inf
  %v1484 = vsel %vm1468, %v1094, -inf
  %v1485 = vmax.f32 %v1483, %v1484
  %v1486 = vsel %vm1468, %v1222, -inf
  %v1487 = vmax.f32 %v1485, %v1486
  %v1488 = vsel %vm1468, %v1350, -inf
  %v1489 = vmax.f32 %v1487, %v1488
  %v1490 = vsel %vm1468, %v969, -inf
  %v1491 = vsel %vm1468, %v1097, -inf
  %v1492 = vmax.f32 %v1490, %v1491
  %v1493 = vsel %vm1468, %v1225, -inf
  %v1494 = vmax.f32 %v1492, %v1493
  %v1495 = vsel %vm1468, %v1353, -inf
  %v1496 = vmax.f32 %v1494, %v1495
  %v1497 = vsel %vm1468, %v974, -inf
  %v1498 = vsel %vm1468, %v1102, -inf
  %v1499 = vmax.f32 %v1497, %v1498
  %v1500 = vsel %vm1468, %v1230, -inf
  %v1501 = vmax.f32 %v1499, %v1500
  %v1502 = vsel %vm1468, %v1358, -inf
  %v1503 = vmax.f32 %v1501, %v1502
  %v1504 = vsel %vm1468, %v977, -inf
  %v1505 = vsel %vm1468, %v1105, -inf
  %v1506 = vmax.f32 %v1504, %v1505
  %v1507 = vsel %vm1468, %v1233, -inf
  %v1508 = vmax.f32 %v1506, %v1507
  %v1509 = vsel %vm1468, %v1361, -inf
  %v1510 = vmax.f32 %v1508, %v1509
  %v1511 = vsel %vm1468, %v982, -inf
  %v1512 = vsel %vm1468, %v1110, -inf
  %v1513 = vmax.f32 %v1511, %v1512
  %v1514 = vsel %vm1468, %v1238, -inf
  %v1515 = vmax.f32 %v1513, %v1514
  %v1516 = vsel %vm1468, %v1366, -inf
  %v1517 = vmax.f32 %v1515, %v1516
  %v1518 = vsel %vm1468, %v985, -inf
  %v1519 = vsel %vm1468, %v1113, -inf
  %v1520 = vmax.f32 %v1518, %v1519
  %v1521 = vsel %vm1468, %v1241, -inf
  %v1522 = vmax.f32 %v1520, %v1521
  %v1523 = vsel %vm1468, %v1369, -inf
  %v1524 = vmax.f32 %v1522, %v1523
  %v1525 = vsel %vm1468, %v990, -inf
  %v1526 = vsel %vm1468, %v1118, -inf
  %v1527 = vmax.f32 %v1525, %v1526
  %v1528 = vsel %vm1468, %v1246, -inf
  %v1529 = vmax.f32 %v1527, %v1528
  %v1530 = vsel %vm1468, %v1374, -inf
  %v1531 = vmax.f32 %v1529, %v1530
  %v1532 = vsel %vm1468, %v993, -inf
  %v1533 = vsel %vm1468, %v1121, -inf
  %v1534 = vmax.f32 %v1532, %v1533
  %v1535 = vsel %vm1468, %v1249, -inf
  %v1536 = vmax.f32 %v1534, %v1535
  %v1537 = vsel %vm1468, %v1377, -inf
  %v1538 = vmax.f32 %v1536, %v1537
  %v1539 = vsel %vm1468, %v998, -inf
  %v1540 = vsel %vm1468, %v1126, -inf
  %v1541 = vmax.f32 %v1539, %v1540
  %v1542 = vsel %vm1468, %v1254, -inf
  %v1543 = vmax.f32 %v1541, %v1542
  %v1544 = vsel %vm1468, %v1382, -inf
  %v1545 = vmax.f32 %v1543, %v1544
  %v1546 = vsel %vm1468, %v1001, -inf
  %v1547 = vsel %vm1468, %v1129, -inf
  %v1548 = vmax.f32 %v1546, %v1547
  %v1549 = vsel %vm1468, %v1257, -inf
  %v1550 = vmax.f32 %v1548, %v1549
  %v1551 = vsel %vm1468, %v1385, -inf
  %v1552 = vmax.f32 %v1550, %v1551
  %v1553 = vsel %vm1468, %v1006, -inf
  %v1554 = vsel %vm1468, %v1134, -inf
  %v1555 = vmax.f32 %v1553, %v1554
  %v1556 = vsel %vm1468, %v1262, -inf
  %v1557 = vmax.f32 %v1555, %v1556
  %v1558 = vsel %vm1468, %v1390, -inf
  %v1559 = vmax.f32 %v1557, %v1558
  %v1560 = vsel %vm1468, %v1009, -inf
  %v1561 = vsel %vm1468, %v1137, -inf
  %v1562 = vmax.f32 %v1560, %v1561
  %v1563 = vsel %vm1468, %v1265, -inf
  %v1564 = vmax.f32 %v1562, %v1563
  %v1565 = vsel %vm1468, %v1393, -inf
  %v1566 = vmax.f32 %v1564, %v1565
  %v1567 = vsel %vm1468, %v1014, -inf
  %v1568 = vsel %vm1468, %v1142, -inf
  %v1569 = vmax.f32 %v1567, %v1568
  %v1570 = vsel %vm1468, %v1270, -inf
  %v1571 = vmax.f32 %v1569, %v1570
  %v1572 = vsel %vm1468, %v1398, -inf
  %v1573 = vmax.f32 %v1571, %v1572
  %v1574 = vsel %vm1468, %v1017, -inf
  %v1575 = vsel %vm1468, %v1145, -inf
  %v1576 = vmax.f32 %v1574, %v1575
  %v1577 = vsel %vm1468, %v1273, -inf
  %v1578 = vmax.f32 %v1576, %v1577
  %v1579 = vsel %vm1468, %v1401, -inf
  %v1580 = vmax.f32 %v1578, %v1579
  %v1581 = vsel %vm1468, %v1022, -inf
  %v1582 = vsel %vm1468, %v1150, -inf
  %v1583 = vmax.f32 %v1581, %v1582
  %v1584 = vsel %vm1468, %v1278, -inf
  %v1585 = vmax.f32 %v1583, %v1584
  %v1586 = vsel %vm1468, %v1406, -inf
  %v1587 = vmax.f32 %v1585, %v1586
  %v1588 = vsel %vm1468, %v1025, -inf
  %v1589 = vsel %vm1468, %v1153, -inf
  %v1590 = vmax.f32 %v1588, %v1589
  %v1591 = vsel %vm1468, %v1281, -inf
  %v1592 = vmax.f32 %v1590, %v1591
  %v1593 = vsel %vm1468, %v1409, -inf
  %v1594 = vmax.f32 %v1592, %v1593
  %v1595 = vsel %vm1468, %v1030, -inf
  %v1596 = vsel %vm1468, %v1158, -inf
  %v1597 = vmax.f32 %v1595, %v1596
  %v1598 = vsel %vm1468, %v1286, -inf
  %v1599 = vmax.f32 %v1597, %v1598
  %v1600 = vsel %vm1468, %v1414, -inf
  %v1601 = vmax.f32 %v1599, %v1600
  %v1602 = vsel %vm1468, %v1033, -inf
  %v1603 = vsel %vm1468, %v1161, -inf
  %v1604 = vmax.f32 %v1602, %v1603
  %v1605 = vsel %vm1468, %v1289, -inf
  %v1606 = vmax.f32 %v1604, %v1605
  %v1607 = vsel %vm1468, %v1417, -inf
  %v1608 = vmax.f32 %v1606, %v1607
  %v1609 = vsel %vm1468, %v1038, -inf
  %v1610 = vsel %vm1468, %v1166, -inf
  %v1611 = vmax.f32 %v1609, %v1610
  %v1612 = vsel %vm1468, %v1294, -inf
  %v1613 = vmax.f32 %v1611, %v1612
  %v1614 = vsel %vm1468, %v1422, -inf
  %v1615 = vmax.f32 %v1613, %v1614
  %v1616 = vsel %vm1468, %v1041, -inf
  %v1617 = vsel %vm1468, %v1169, -inf
  %v1618 = vmax.f32 %v1616, %v1617
  %v1619 = vsel %vm1468, %v1297, -inf
  %v1620 = vmax.f32 %v1618, %v1619
  %v1621 = vsel %vm1468, %v1425, -inf
  %v1622 = vmax.f32 %v1620, %v1621
  %v1623 = vsel %vm1468, %v1046, -inf
  %v1624 = vsel %vm1468, %v1174, -inf
  %v1625 = vmax.f32 %v1623, %v1624
  %v1626 = vsel %vm1468, %v1302, -inf
  %v1627 = vmax.f32 %v1625, %v1626
  %v1628 = vsel %vm1468, %v1430, -inf
  %v1629 = vmax.f32 %v1627, %v1628
  %v1630 = vsel %vm1468, %v1049, -inf
  %v1631 = vsel %vm1468, %v1177, -inf
  %v1632 = vmax.f32 %v1630, %v1631
  %v1633 = vsel %vm1468, %v1305, -inf
  %v1634 = vmax.f32 %v1632, %v1633
  %v1635 = vsel %vm1468, %v1433, -inf
  %v1636 = vmax.f32 %v1634, %v1635
  %v1637 = vsel %vm1468, %v1054, -inf
  %v1638 = vsel %vm1468, %v1182, -inf
  %v1639 = vmax.f32 %v1637, %v1638
  %v1640 = vsel %vm1468, %v1310, -inf
  %v1641 = vmax.f32 %v1639, %v1640
  %v1642 = vsel %vm1468, %v1438, -inf
  %v1643 = vmax.f32 %v1641, %v1642
  %v1644 = vsel %vm1468, %v1057, -inf
  %v1645 = vsel %vm1468, %v1185, -inf
  %v1646 = vmax.f32 %v1644, %v1645
  %v1647 = vsel %vm1468, %v1313, -inf
  %v1648 = vmax.f32 %v1646, %v1647
  %v1649 = vsel %vm1468, %v1441, -inf
  %v1650 = vmax.f32 %v1648, %v1649
  %v1651 = vsel %vm1468, %v1062, -inf
  %v1652 = vsel %vm1468, %v1190, -inf
  %v1653 = vmax.f32 %v1651, %v1652
  %v1654 = vsel %vm1468, %v1318, -inf
  %v1655 = vmax.f32 %v1653, %v1654
  %v1656 = vsel %vm1468, %v1446, -inf
  %v1657 = vmax.f32 %v1655, %v1656
  %v1658 = vsel %vm1468, %v1065, -inf
  %v1659 = vsel %vm1468, %v1193, -inf
  %v1660 = vmax.f32 %v1658, %v1659
  %v1661 = vsel %vm1468, %v1321, -inf
  %v1662 = vmax.f32 %v1660, %v1661
  %v1663 = vsel %vm1468, %v1449, -inf
  %v1664 = vmax.f32 %v1662, %v1663
  %v1665 = vsel %vm1468, %v1070, -inf
  %v1666 = vsel %vm1468, %v1198, -inf
  %v1667 = vmax.f32 %v1665, %v1666
  %v1668 = vsel %vm1468, %v1326, -inf
  %v1669 = vmax.f32 %v1667, %v1668
  %v1670 = vsel %vm1468, %v1454, -inf
  %v1671 = vmax.f32 %v1669, %v1670
  %v1672 = vsel %vm1468, %v1073, -inf
  %v1673 = vsel %vm1468, %v1201, -inf
  %v1674 = vmax.f32 %v1672, %v1673
  %v1675 = vsel %vm1468, %v1329, -inf
  %v1676 = vmax.f32 %v1674, %v1675
  %v1677 = vsel %vm1468, %v1457, -inf
  %v1678 = vmax.f32 %v1676, %v1677
  %v1679 = vsel %vm1468, %v1078, -inf
  %v1680 = vsel %vm1468, %v1206, -inf
  %v1681 = vmax.f32 %v1679, %v1680
  %v1682 = vsel %vm1468, %v1334, -inf
  %v1683 = vmax.f32 %v1681, %v1682
  %v1684 = vsel %vm1468, %v1462, -inf
  %v1685 = vmax.f32 %v1683, %v1684
  %v1686 = vsel %vm1468, %v1081, -inf
  %v1687 = vsel %vm1468, %v1209, -inf
  %v1688 = vmax.f32 %v1686, %v1687
  %v1689 = vsel %vm1468, %v1337, -inf
  %v1690 = vmax.f32 %v1688, %v1689
  %v1691 = vsel %vm1468, %v1465, -inf
  %v1692 = vmax.f32 %v1690, %v1691
  %v1693 = vld [vmem:[%s2] sm:$0x1]
  %v1695 = vlaneseq
  %v1696 = vshrl.u32 %v1695, 7
  %v1697 = vsub.s32 0, %v1696
  %v1698 = vrot.slane %v1693, %v1697
  %v1700 = vadd.f32 %v1475, %v1698
  %v1701 = vadd.f32 %v1482, %v1698
  %v1702 = vadd.f32 %v1489, %v1698
  %v1703 = vadd.f32 %v1496, %v1698
  %v1704 = vadd.f32 %v1503, %v1698
  %v1705 = vadd.f32 %v1510, %v1698
  %v1706 = vadd.f32 %v1517, %v1698
  %v1707 = vadd.f32 %v1524, %v1698
  %v1708 = vadd.f32 %v1531, %v1698
  %v1709 = vadd.f32 %v1538, %v1698
  %v1710 = vadd.f32 %v1545, %v1698
  %v1711 = vadd.f32 %v1552, %v1698
  %v1712 = vadd.f32 %v1559, %v1698
  %v1713 = vadd.f32 %v1566, %v1698
  %v1714 = vadd.f32 %v1573, %v1698
  %v1715 = vadd.f32 %v1580, %v1698
  %v1716 = vadd.f32 %v1587, %v1698
  %v1717 = vadd.f32 %v1594, %v1698
  %v1718 = vadd.f32 %v1601, %v1698
  %v1719 = vadd.f32 %v1608, %v1698
  %v1720 = vadd.f32 %v1615, %v1698
  %v1721 = vadd.f32 %v1622, %v1698
  %v1722 = vadd.f32 %v1629, %v1698
  %v1723 = vadd.f32 %v1636, %v1698
  %v1724 = vadd.f32 %v1643, %v1698
  %v1725 = vadd.f32 %v1650, %v1698
  %v1726 = vadd.f32 %v1657, %v1698
  %v1727 = vadd.f32 %v1664, %v1698
  %v1728 = vadd.f32 %v1671, %v1698
  %v1729 = vadd.f32 %v1678, %v1698
  %v1730 = vadd.f32 %v1685, %v1698
  %v1731 = vadd.f32 %v1692, %v1698
  %v1732 = vmax.f32 %v1700, 0.0
  %v1733 = vmax.f32 %v1701, 0.0
  %v1734 = vmax.f32 %v1702, 0.0
  %v1735 = vmax.f32 %v1703, 0.0
  %v1736 = vmax.f32 %v1704, 0.0
  %v1737 = vmax.f32 %v1705, 0.0
  %v1738 = vmax.f32 %v1706, 0.0
  %v1739 = vmax.f32 %v1707, 0.0
  %v1740 = vmax.f32 %v1708, 0.0
  %v1741 = vmax.f32 %v1709, 0.0
  %v1742 = vmax.f32 %v1710, 0.0
  %v1743 = vmax.f32 %v1711, 0.0
  %v1744 = vmax.f32 %v1712, 0.0
  %v1745 = vmax.f32 %v1713, 0.0
  %v1746 = vmax.f32 %v1714, 0.0
  %v1747 = vmax.f32 %v1715, 0.0
  %v1748 = vmax.f32 %v1716, 0.0
  %v1749 = vmax.f32 %v1717, 0.0
  %v1750 = vmax.f32 %v1718, 0.0
  %v1751 = vmax.f32 %v1719, 0.0
  %v1752 = vmax.f32 %v1720, 0.0
  %v1753 = vmax.f32 %v1721, 0.0
  %v1754 = vmax.f32 %v1722, 0.0
  %v1755 = vmax.f32 %v1723, 0.0
  %v1756 = vmax.f32 %v1724, 0.0
  %v1757 = vmax.f32 %v1725, 0.0
  %v1758 = vmax.f32 %v1726, 0.0
  %v1759 = vmax.f32 %v1727, 0.0
  %v1760 = vmax.f32 %v1728, 0.0
  %v1761 = vmax.f32 %v1729, 0.0
  %v1762 = vmax.f32 %v1730, 0.0
  %v1763 = vmax.f32 %v1731, 0.0
  %v1764 = vpack.c.bf16 %v1733, %v1732
  %v1765 = vpack.c.bf16 %v1735, %v1734
  %v1766 = vpack.c.bf16 %v1737, %v1736
  %v1767 = vpack.c.bf16 %v1739, %v1738
  %v1768 = vpack.c.bf16 %v1741, %v1740
  %v1769 = vpack.c.bf16 %v1743, %v1742
  %v1770 = vpack.c.bf16 %v1745, %v1744
  %v1771 = vpack.c.bf16 %v1747, %v1746
  %v1772 = vpack.c.bf16 %v1749, %v1748
  %v1773 = vpack.c.bf16 %v1751, %v1750
  %v1774 = vpack.c.bf16 %v1753, %v1752
  %v1775 = vpack.c.bf16 %v1755, %v1754
  %v1776 = vpack.c.bf16 %v1757, %v1756
  %v1777 = vpack.c.bf16 %v1759, %v1758
  %v1778 = vpack.c.bf16 %v1761, %v1760
  %v1779 = vpack.c.bf16 %v1763, %v1762
  %v1780 = vld [vmem:[%s3] sm:$0xf]
  %v1781 = vld [vmem:[%s3 + $0x4] sm:$0xf]
  %v1782 = vld [vmem:[%s3 + $0x8] sm:$0xf]
  %v1783 = vld [vmem:[%s3 + $0xc] sm:$0xf]
  %v1784 = vld [vmem:[%s3 + $0x10] sm:$0xf]
  %v1785 = vld [vmem:[%s3 + $0x14] sm:$0xf]
  %v1786 = vld [vmem:[%s3 + $0x18] sm:$0xf]
  %v1787 = vld [vmem:[%s3 + $0x1c] sm:$0xf]
  %v1788 = vld [vmem:[%s3 + $0x20] sm:$0xf]
  %v1789 = vld [vmem:[%s3 + $0x24] sm:$0xf]
  %v1790 = vld [vmem:[%s3 + $0x28] sm:$0xf]
  %v1791 = vld [vmem:[%s3 + $0x2c] sm:$0xf]
  %v1792 = vld [vmem:[%s3 + $0x30] sm:$0xf]
  %v1793 = vld [vmem:[%s3 + $0x34] sm:$0xf]
  %v1794 = vld [vmem:[%s3 + $0x38] sm:$0xf]
  %v1795 = vld [vmem:[%s3 + $0x3c] sm:$0xf]
  %v1796 = vld [vmem:[%s3 + $0x40] sm:$0xf]
  %v1797 = vld [vmem:[%s3 + $0x44] sm:$0xf]
  %v1798 = vld [vmem:[%s3 + $0x48] sm:$0xf]
  %v1799 = vld [vmem:[%s3 + $0x4c] sm:$0xf]
  %v1800 = vld [vmem:[%s3 + $0x50] sm:$0xf]
  %v1801 = vld [vmem:[%s3 + $0x54] sm:$0xf]
  %v1802 = vld [vmem:[%s3 + $0x58] sm:$0xf]
  %v1803 = vld [vmem:[%s3 + $0x5c] sm:$0xf]
  %v1804 = vld [vmem:[%s3 + $0x60] sm:$0xf]
  %v1805 = vld [vmem:[%s3 + $0x64] sm:$0xf]
  %v1806 = vld [vmem:[%s3 + $0x68] sm:$0xf]
  %v1807 = vld [vmem:[%s3 + $0x6c] sm:$0xf]
  %v1808 = vld [vmem:[%s3 + $0x70] sm:$0xf]
  %v1809 = vld [vmem:[%s3 + $0x74] sm:$0xf]
  %v1810 = vld [vmem:[%s3 + $0x78] sm:$0xf]
  %v1811 = vld [vmem:[%s3 + $0x7c] sm:$0xf]
  %v1812 = vld [vmem:[%s3 + $0x80] sm:$0xf]
  %v1813 = vld [vmem:[%s3 + $0x84] sm:$0xf]
  %v1814 = vld [vmem:[%s3 + $0x88] sm:$0xf]
  %v1815 = vld [vmem:[%s3 + $0x8c] sm:$0xf]
  %v1816 = vld [vmem:[%s3 + $0x90] sm:$0xf]
  %v1817 = vld [vmem:[%s3 + $0x94] sm:$0xf]
  %v1818 = vld [vmem:[%s3 + $0x98] sm:$0xf]
  %v1819 = vld [vmem:[%s3 + $0x9c] sm:$0xf]
  %v1820 = vld [vmem:[%s3 + $0xa0] sm:$0xf]
  %v1821 = vld [vmem:[%s3 + $0xa4] sm:$0xf]
  %v1822 = vld [vmem:[%s3 + $0xa8] sm:$0xf]
  %v1823 = vld [vmem:[%s3 + $0xac] sm:$0xf]
  %v1824 = vld [vmem:[%s3 + $0xb0] sm:$0xf]
  %v1825 = vld [vmem:[%s3 + $0xb4] sm:$0xf]
  %v1826 = vld [vmem:[%s3 + $0xb8] sm:$0xf]
  %v1827 = vld [vmem:[%s3 + $0xbc] sm:$0xf]
  %v1828 = vld [vmem:[%s3 + $0xc0] sm:$0xf]
  %v1829 = vld [vmem:[%s3 + $0xc4] sm:$0xf]
  %v1830 = vld [vmem:[%s3 + $0xc8] sm:$0xf]
  %v1831 = vld [vmem:[%s3 + $0xcc] sm:$0xf]
  %v1832 = vld [vmem:[%s3 + $0xd0] sm:$0xf]
  %v1833 = vld [vmem:[%s3 + $0xd4] sm:$0xf]
  %v1834 = vld [vmem:[%s3 + $0xd8] sm:$0xf]
  %v1835 = vld [vmem:[%s3 + $0xdc] sm:$0xf]
  %v1836 = vld [vmem:[%s3 + $0xe0] sm:$0xf]
  %v1837 = vld [vmem:[%s3 + $0xe4] sm:$0xf]
  %v1838 = vld [vmem:[%s3 + $0xe8] sm:$0xf]
  %v1839 = vld [vmem:[%s3 + $0xec] sm:$0xf]
  %v1840 = vld [vmem:[%s3 + $0xf0] sm:$0xf]
  %v1841 = vld [vmem:[%s3 + $0xf4] sm:$0xf]
  %v1842 = vld [vmem:[%s3 + $0xf8] sm:$0xf]
  %v1843 = vld [vmem:[%s3 + $0xfc] sm:$0xf]
  %v1848 = vunpack.c.l.b16 %v1780
  %v1849 = vunpack.c.l.b16 %v1781
  %v1850 = vunpack.c.l.b16 %v1782
  %v1851 = vunpack.c.l.b16 %v1783
  %v1852 = vpack.c.b16 %v1849, %v1848
  %v1853 = vpack.c.b16 %v1851, %v1850
  %v1857 = vsel %vm1468, %v1764, 0
  %1859 = vmatprep.subr.bf16.mxu0 0
  %1860 = vmatpush1.bf16.msra.mxu0 %v1852
  %1861 = vmatprep.subr.bf16.mxu0 0
  %1862 = vmatpush1.bf16.msra.mxu0 %v1853
  %1863 = vmatprep.subr.bf16.mxu0 0
  %1864 = vmatpush1.bf16.msra.mxu0 0
  %1865 = vmatprep.subr.bf16.mxu0 0
  %1866 = vmatpush1.bf16.msra.mxu0 0
  %1867 = vmatprep.subr.bf16.mxu0 0
  %1868 = vmatpush1.bf16.msra.mxu0 0
  %1869 = vmatprep.subr.bf16.mxu0 0
  %1870 = vmatpush1.bf16.msra.mxu0 0
  %1871 = vmatprep.subr.bf16.mxu0 0
  %1872 = vmatpush1.bf16.msra.mxu0 0
  %1873 = vmatprep.subr.bf16.mxu0 0
  %1874 = vmatpush1.bf16.msra.mxu0 0
  %1875 = vmatprep.subr.bf16.mxu0 0
  %1876 = vmatpush1.bf16.msra.mxu0 0
  %1877 = vmatprep.subr.bf16.mxu0 0
  %1878 = vmatpush1.bf16.msra.mxu0 0
  %1879 = vmatprep.subr.bf16.mxu0 0
  %1880 = vmatpush1.bf16.msra.mxu0 0
  %1881 = vmatprep.subr.bf16.mxu0 0
  %1882 = vmatpush1.bf16.msra.mxu0 0
  %1883 = vmatprep.subr.bf16.mxu0 0
  %1884 = vmatpush1.bf16.msra.mxu0 0
  %1885 = vmatprep.subr.bf16.mxu0 0
  %1886 = vmatpush1.bf16.msra.mxu0 0
  %1887 = vmatprep.subr.bf16.mxu0 0
  %1888 = vmatpush1.bf16.msra.mxu0 0
  %1889 = vmatprep.subr.bf16.mxu0 0
  %1890 = vmatpush1.bf16.msra.mxu0 0
  %1891 = vmatprep.mubr.bf16.mxu0 0
  %1892 = vmatmul.mubr.bf16.gmra.mrb[0].mxu0 %v1857
  %v1893 = vpop.f32.mrb[0].mxu0
  %v1894 = vadd.f32 0.0, %v1893
  %v1895 = vpop.f32.mrb[0].mxu0
  %v1896 = vpop.f32.mrb[0].mxu0
  %v1897 = vadd.f32 0.0, %v1896
  %v1898 = vpop.f32.mrb[0].mxu0
  %1899 = vdwg.mxu0
  %v1904 = vunpack.c.l.b16 %v1784
  %v1905 = vunpack.c.l.b16 %v1785
  %v1906 = vunpack.c.l.b16 %v1786
  %v1907 = vunpack.c.l.b16 %v1787
  %v1908 = vpack.c.b16 %v1905, %v1904
  %v1909 = vpack.c.b16 %v1907, %v1906
  %v1913 = vsel %vm1468, %v1765, 0
  %1915 = vmatprep.subr.bf16.mxu0 0
  %1916 = vmatpush1.bf16.msra.mxu0 %v1908
  %1917 = vmatprep.subr.bf16.mxu0 0
  %1918 = vmatpush1.bf16.msra.mxu0 %v1909
  %1919 = vmatprep.subr.bf16.mxu0 0
  %1920 = vmatpush1.bf16.msra.mxu0 0
  %1921 = vmatprep.subr.bf16.mxu0 0
  %1922 = vmatpush1.bf16.msra.mxu0 0
  %1923 = vmatprep.subr.bf16.mxu0 0
  %1924 = vmatpush1.bf16.msra.mxu0 0
  %1925 = vmatprep.subr.bf16.mxu0 0
  %1926 = vmatpush1.bf16.msra.mxu0 0
  %1927 = vmatprep.subr.bf16.mxu0 0
  %1928 = vmatpush1.bf16.msra.mxu0 0
  %1929 = vmatprep.subr.bf16.mxu0 0
  %1930 = vmatpush1.bf16.msra.mxu0 0
  %1931 = vmatprep.subr.bf16.mxu0 0
  %1932 = vmatpush1.bf16.msra.mxu0 0
  %1933 = vmatprep.subr.bf16.mxu0 0
  %1934 = vmatpush1.bf16.msra.mxu0 0
  %1935 = vmatprep.subr.bf16.mxu0 0
  %1936 = vmatpush1.bf16.msra.mxu0 0
  %1937 = vmatprep.subr.bf16.mxu0 0
  %1938 = vmatpush1.bf16.msra.mxu0 0
  %1939 = vmatprep.subr.bf16.mxu0 0
  %1940 = vmatpush1.bf16.msra.mxu0 0
  %1941 = vmatprep.subr.bf16.mxu0 0
  %1942 = vmatpush1.bf16.msra.mxu0 0
  %1943 = vmatprep.subr.bf16.mxu0 0
  %1944 = vmatpush1.bf16.msra.mxu0 0
  %1945 = vmatprep.subr.bf16.mxu0 0
  %1946 = vmatpush1.bf16.msra.mxu0 0
  %1947 = vmatprep.mubr.bf16.mxu0 0
  %1948 = vmatmul.mubr.bf16.gmra.mrb[0].mxu0 %v1913
  %v1949 = vpop.f32.mrb[0].mxu0
  %v1950 = vadd.f32 0.0, %v1949
  %v1951 = vpop.f32.mrb[0].mxu0
  %v1952 = vpop.f32.mrb[0].mxu0
  %v1953 = vadd.f32 0.0, %v1952
  %v1954 = vpop.f32.mrb[0].mxu0
  %1955 = vdwg.mxu0
  %v1960 = vunpack.c.l.b16 %v1788
  %v1961 = vunpack.c.l.b16 %v1789
  %v1962 = vunpack.c.l.b16 %v1790
  %v1963 = vunpack.c.l.b16 %v1791
  %v1964 = vpack.c.b16 %v1961, %v1960
  %v1965 = vpack.c.b16 %v1963, %v1962
  %v1969 = vsel %vm1468, %v1766, 0
  %1971 = vmatprep.subr.bf16.mxu0 0
  %1972 = vmatpush1.bf16.msra.mxu0 %v1964
  %1973 = vmatprep.subr.bf16.mxu0 0
  %1974 = vmatpush1.bf16.msra.mxu0 %v1965
  %1975 = vmatprep.subr.bf16.mxu0 0
  %1976 = vmatpush1.bf16.msra.mxu0 0
  %1977 = vmatprep.subr.bf16.mxu0 0
  %1978 = vmatpush1.bf16.msra.mxu0 0
  %1979 = vmatprep.subr.bf16.mxu0 0
  %1980 = vmatpush1.bf16.msra.mxu0 0
  %1981 = vmatprep.subr.bf16.mxu0 0
  %1982 = vmatpush1.bf16.msra.mxu0 0
  %1983 = vmatprep.subr.bf16.mxu0 0
  %1984 = vmatpush1.bf16.msra.mxu0 0
  %1985 = vmatprep.subr.bf16.mxu0 0
  %1986 = vmatpush1.bf16.msra.mxu0 0
  %1987 = vmatprep.subr.bf16.mxu0 0
  %1988 = vmatpush1.bf16.msra.mxu0 0
  %1989 = vmatprep.subr.bf16.mxu0 0
  %1990 = vmatpush1.bf16.msra.mxu0 0
  %1991 = vmatprep.subr.bf16.mxu0 0
  %1992 = vmatpush1.bf16.msra.mxu0 0
  %1993 = vmatprep.subr.bf16.mxu0 0
  %1994 = vmatpush1.bf16.msra.mxu0 0
  %1995 = vmatprep.subr.bf16.mxu0 0
  %1996 = vmatpush1.bf16.msra.mxu0 0
  %1997 = vmatprep.subr.bf16.mxu0 0
  %1998 = vmatpush1.bf16.msra.mxu0 0
  %1999 = vmatprep.subr.bf16.mxu0 0
  %2000 = vmatpush1.bf16.msra.mxu0 0
  %2001 = vmatprep.subr.bf16.mxu0 0
  %2002 = vmatpush1.bf16.msra.mxu0 0
  %2003 = vmatprep.mubr.bf16.mxu0 0
  %2004 = vmatmul.mubr.bf16.gmra.mrb[0].mxu0 %v1969
  %v2005 = vpop.f32.mrb[0].mxu0
  %v2006 = vadd.f32 0.0, %v2005
  %v2007 = vpop.f32.mrb[0].mxu0
  %v2008 = vpop.f32.mrb[0].mxu0
  %v2009 = vadd.f32 0.0, %v2008
  %v2010 = vpop.f32.mrb[0].mxu0
  %2011 = vdwg.mxu0
  %v2016 = vunpack.c.l.b16 %v1792
  %v2017 = vunpack.c.l.b16 %v1793
  %v2018 = vunpack.c.l.b16 %v1794
  %v2019 = vunpack.c.l.b16 %v1795
  %v2020 = vpack.c.b16 %v2017, %v2016
  %v2021 = vpack.c.b16 %v2019, %v2018
  %v2025 = vsel %vm1468, %v1767, 0
  %2027 = vmatprep.subr.bf16.mxu0 0
  %2028 = vmatpush1.bf16.msra.mxu0 %v2020
  %2029 = vmatprep.subr.bf16.mxu0 0
  %2030 = vmatpush1.bf16.msra.mxu0 %v2021
  %2031 = vmatprep.subr.bf16.mxu0 0
  %2032 = vmatpush1.bf16.msra.mxu0 0
  %2033 = vmatprep.subr.bf16.mxu0 0
  %2034 = vmatpush1.bf16.msra.mxu0 0
  %2035 = vmatprep.subr.bf16.mxu0 0
  %2036 = vmatpush1.bf16.msra.mxu0 0
  %2037 = vmatprep.subr.bf16.mxu0 0
  %2038 = vmatpush1.bf16.msra.mxu0 0
  %2039 = vmatprep.subr.bf16.mxu0 0
  %2040 = vmatpush1.bf16.msra.mxu0 0
  %2041 = vmatprep.subr.bf16.mxu0 0
  %2042 = vmatpush1.bf16.msra.mxu0 0
  %2043 = vmatprep.subr.bf16.mxu0 0
  %2044 = vmatpush1.bf16.msra.mxu0 0
  %2045 = vmatprep.subr.bf16.mxu0 0
  %2046 = vmatpush1.bf16.msra.mxu0 0
  %2047 = vmatprep.subr.bf16.mxu0 0
  %2048 = vmatpush1.bf16.msra.mxu0 0
  %2049 = vmatprep.subr.bf16.mxu0 0
  %2050 = vmatpush1.bf16.msra.mxu0 0
  %2051 = vmatprep.subr.bf16.mxu0 0
  %2052 = vmatpush1.bf16.msra.mxu0 0
  %2053 = vmatprep.subr.bf16.mxu0 0
  %2054 = vmatpush1.bf16.msra.mxu0 0
  %2055 = vmatprep.subr.bf16.mxu0 0
  %2056 = vmatpush1.bf16.msra.mxu0 0
  %2057 = vmatprep.subr.bf16.mxu0 0
  %2058 = vmatpush1.bf16.msra.mxu0 0
  %2059 = vmatprep.mubr.bf16.mxu0 0
  %2060 = vmatmul.mubr.bf16.gmra.mrb[0].mxu0 %v2025
  %v2061 = vpop.f32.mrb[0].mxu0
  %v2062 = vadd.f32 0.0, %v2061
  %v2063 = vpop.f32.mrb[0].mxu0
  %v2064 = vpop.f32.mrb[0].mxu0
  %v2065 = vadd.f32 0.0, %v2064
  %v2066 = vpop.f32.mrb[0].mxu0
  %2067 = vdwg.mxu0
  %v2072 = vunpack.c.l.b16 %v1796
  %v2073 = vunpack.c.l.b16 %v1797
  %v2074 = vunpack.c.l.b16 %v1798
  %v2075 = vunpack.c.l.b16 %v1799
  %v2076 = vpack.c.b16 %v2073, %v2072
  %v2077 = vpack.c.b16 %v2075, %v2074
  %v2081 = vsel %vm1468, %v1768, 0
  %2083 = vmatprep.subr.bf16.mxu0 0
  %2084 = vmatpush1.bf16.msra.mxu0 %v2076
  %2085 = vmatprep.subr.bf16.mxu0 0
  %2086 = vmatpush1.bf16.msra.mxu0 %v2077
  %2087 = vmatprep.subr.bf16.mxu0 0
  %2088 = vmatpush1.bf16.msra.mxu0 0
  %2089 = vmatprep.subr.bf16.mxu0 0
  %2090 = vmatpush1.bf16.msra.mxu0 0
  %2091 = vmatprep.subr.bf16.mxu0 0
  %2092 = vmatpush1.bf16.msra.mxu0 0
  %2093 = vmatprep.subr.bf16.mxu0 0
  %2094 = vmatpush1.bf16.msra.mxu0 0
  %2095 = vmatprep.subr.bf16.mxu0 0
  %2096 = vmatpush1.bf16.msra.mxu0 0
  %2097 = vmatprep.subr.bf16.mxu0 0
  %2098 = vmatpush1.bf16.msra.mxu0 0
  %2099 = vmatprep.subr.bf16.mxu0 0
  %2100 = vmatpush1.bf16.msra.mxu0 0
  %2101 = vmatprep.subr.bf16.mxu0 0
  %2102 = vmatpush1.bf16.msra.mxu0 0
  %2103 = vmatprep.subr.bf16.mxu0 0
  %2104 = vmatpush1.bf16.msra.mxu0 0
  %2105 = vmatprep.subr.bf16.mxu0 0
  %2106 = vmatpush1.bf16.msra.mxu0 0
  %2107 = vmatprep.subr.bf16.mxu0 0
  %2108 = vmatpush1.bf16.msra.mxu0 0
  %2109 = vmatprep.subr.bf16.mxu0 0
  %2110 = vmatpush1.bf16.msra.mxu0 0
  %2111 = vmatprep.subr.bf16.mxu0 0
  %2112 = vmatpush1.bf16.msra.mxu0 0
  %2113 = vmatprep.subr.bf16.mxu0 0
  %2114 = vmatpush1.bf16.msra.mxu0 0
  %2115 = vmatprep.mubr.bf16.mxu0 0
  %2116 = vmatmul.mubr.bf16.gmra.mrb[0].mxu0 %v2081
  %v2117 = vpop.f32.mrb[0].mxu0
  %v2118 = vadd.f32 0.0, %v2117
  %v2119 = vpop.f32.mrb[0].mxu0
  %v2120 = vpop.f32.mrb[0].mxu0
  %v2121 = vadd.f32 0.0, %v2120
  %v2122 = vpop.f32.mrb[0].mxu0
  %2123 = vdwg.mxu0
  %v2128 = vunpack.c.l.b16 %v1800
  %v2129 = vunpack.c.l.b16 %v1801
  %v2130 = vunpack.c.l.b16 %v1802
  %v2131 = vunpack.c.l.b16 %v1803
  %v2132 = vpack.c.b16 %v2129, %v2128
  %v2133 = vpack.c.b16 %v2131, %v2130
  %v2137 = vsel %vm1468, %v1769, 0
  %2139 = vmatprep.subr.bf16.mxu0 0
  %2140 = vmatpush1.bf16.msra.mxu0 %v2132
  %2141 = vmatprep.subr.bf16.mxu0 0
  %2142 = vmatpush1.bf16.msra.mxu0 %v2133
  %2143 = vmatprep.subr.bf16.mxu0 0
  %2144 = vmatpush1.bf16.msra.mxu0 0
  %2145 = vmatprep.subr.bf16.mxu0 0
  %2146 = vmatpush1.bf16.msra.mxu0 0
  %2147 = vmatprep.subr.bf16.mxu0 0
  %2148 = vmatpush1.bf16.msra.mxu0 0
  %2149 = vmatprep.subr.bf16.mxu0 0
  %2150 = vmatpush1.bf16.msra.mxu0 0
  %2151 = vmatprep.subr.bf16.mxu0 0
  %2152 = vmatpush1.bf16.msra.mxu0 0
  %2153 = vmatprep.subr.bf16.mxu0 0
  %2154 = vmatpush1.bf16.msra.mxu0 0
  %2155 = vmatprep.subr.bf16.mxu0 0
  %2156 = vmatpush1.bf16.msra.mxu0 0
  %2157 = vmatprep.subr.bf16.mxu0 0
  %2158 = vmatpush1.bf16.msra.mxu0 0
  %2159 = vmatprep.subr.bf16.mxu0 0
  %2160 = vmatpush1.bf16.msra.mxu0 0
  %2161 = vmatprep.subr.bf16.mxu0 0
  %2162 = vmatpush1.bf16.msra.mxu0 0
  %2163 = vmatprep.subr.bf16.mxu0 0
  %2164 = vmatpush1.bf16.msra.mxu0 0
  %2165 = vmatprep.subr.bf16.mxu0 0
  %2166 = vmatpush1.bf16.msra.mxu0 0
  %2167 = vmatprep.subr.bf16.mxu0 0
  %2168 = vmatpush1.bf16.msra.mxu0 0
  %2169 = vmatprep.subr.bf16.mxu0 0
  %2170 = vmatpush1.bf16.msra.mxu0 0
  %2171 = vmatprep.mubr.bf16.mxu0 0
  %2172 = vmatmul.mubr.bf16.gmra.mrb[0].mxu0 %v2137
  %v2173 = vpop.f32.mrb[0].mxu0
  %v2174 = vadd.f32 0.0, %v2173
  %v2175 = vpop.f32.mrb[0].mxu0
  %v2176 = vpop.f32.mrb[0].mxu0
  %v2177 = vadd.f32 0.0, %v2176
  %v2178 = vpop.f32.mrb[0].mxu0
  %2179 = vdwg.mxu0
  %v2184 = vunpack.c.l.b16 %v1804
  %v2185 = vunpack.c.l.b16 %v1805
  %v2186 = vunpack.c.l.b16 %v1806
  %v2187 = vunpack.c.l.b16 %v1807
  %v2188 = vpack.c.b16 %v2185, %v2184
  %v2189 = vpack.c.b16 %v2187, %v2186
  %v2193 = vsel %vm1468, %v1770, 0
  %2195 = vmatprep.subr.bf16.mxu0 0
  %2196 = vmatpush1.bf16.msra.mxu0 %v2188
  %2197 = vmatprep.subr.bf16.mxu0 0
  %2198 = vmatpush1.bf16.msra.mxu0 %v2189
  %2199 = vmatprep.subr.bf16.mxu0 0
  %2200 = vmatpush1.bf16.msra.mxu0 0
  %2201 = vmatprep.subr.bf16.mxu0 0
  %2202 = vmatpush1.bf16.msra.mxu0 0
  %2203 = vmatprep.subr.bf16.mxu0 0
  %2204 = vmatpush1.bf16.msra.mxu0 0
  %2205 = vmatprep.subr.bf16.mxu0 0
  %2206 = vmatpush1.bf16.msra.mxu0 0
  %2207 = vmatprep.subr.bf16.mxu0 0
  %2208 = vmatpush1.bf16.msra.mxu0 0
  %2209 = vmatprep.subr.bf16.mxu0 0
  %2210 = vmatpush1.bf16.msra.mxu0 0
  %2211 = vmatprep.subr.bf16.mxu0 0
  %2212 = vmatpush1.bf16.msra.mxu0 0
  %2213 = vmatprep.subr.bf16.mxu0 0
  %2214 = vmatpush1.bf16.msra.mxu0 0
  %2215 = vmatprep.subr.bf16.mxu0 0
  %2216 = vmatpush1.bf16.msra.mxu0 0
  %2217 = vmatprep.subr.bf16.mxu0 0
  %2218 = vmatpush1.bf16.msra.mxu0 0
  %2219 = vmatprep.subr.bf16.mxu0 0
  %2220 = vmatpush1.bf16.msra.mxu0 0
  %2221 = vmatprep.subr.bf16.mxu0 0
  %2222 = vmatpush1.bf16.msra.mxu0 0
  %2223 = vmatprep.subr.bf16.mxu0 0
  %2224 = vmatpush1.bf16.msra.mxu0 0
  %2225 = vmatprep.subr.bf16.mxu0 0
  %2226 = vmatpush1.bf16.msra.mxu0 0
  %2227 = vmatprep.mubr.bf16.mxu0 0
  %2228 = vmatmul.mubr.bf16.gmra.mrb[0].mxu0 %v2193
  %v2229 = vpop.f32.mrb[0].mxu0
  %v2230 = vadd.f32 0.0, %v2229
  %v2231 = vpop.f32.mrb[0].mxu0
  %v2232 = vpop.f32.mrb[0].mxu0
  %v2233 = vadd.f32 0.0, %v2232
  %v2234 = vpop.f32.mrb[0].mxu0
  %2235 = vdwg.mxu0
  %v2240 = vunpack.c.l.b16 %v1808
  %v2241 = vunpack.c.l.b16 %v1809
  %v2242 = vunpack.c.l.b16 %v1810
  %v2243 = vunpack.c.l.b16 %v1811
  %v2244 = vpack.c.b16 %v2241, %v2240
  %v2245 = vpack.c.b16 %v2243, %v2242
  %v2249 = vsel %vm1468, %v1771, 0
  %2251 = vmatprep.subr.bf16.mxu0 0
  %2252 = vmatpush1.bf16.msra.mxu0 %v2244
  %2253 = vmatprep.subr.bf16.mxu0 0
  %2254 = vmatpush1.bf16.msra.mxu0 %v2245
  %2255 = vmatprep.subr.bf16.mxu0 0
  %2256 = vmatpush1.bf16.msra.mxu0 0
  %2257 = vmatprep.subr.bf16.mxu0 0
  %2258 = vmatpush1.bf16.msra.mxu0 0
  %2259 = vmatprep.subr.bf16.mxu0 0
  %2260 = vmatpush1.bf16.msra.mxu0 0
  %2261 = vmatprep.subr.bf16.mxu0 0
  %2262 = vmatpush1.bf16.msra.mxu0 0
  %2263 = vmatprep.subr.bf16.mxu0 0
  %2264 = vmatpush1.bf16.msra.mxu0 0
  %2265 = vmatprep.subr.bf16.mxu0 0
  %2266 = vmatpush1.bf16.msra.mxu0 0
  %2267 = vmatprep.subr.bf16.mxu0 0
  %2268 = vmatpush1.bf16.msra.mxu0 0
  %2269 = vmatprep.subr.bf16.mxu0 0
  %2270 = vmatpush1.bf16.msra.mxu0 0
  %2271 = vmatprep.subr.bf16.mxu0 0
  %2272 = vmatpush1.bf16.msra.mxu0 0
  %2273 = vmatprep.subr.bf16.mxu0 0
  %2274 = vmatpush1.bf16.msra.mxu0 0
  %2275 = vmatprep.subr.bf16.mxu0 0
  %2276 = vmatpush1.bf16.msra.mxu0 0
  %2277 = vmatprep.subr.bf16.mxu0 0
  %2278 = vmatpush1.bf16.msra.mxu0 0
  %2279 = vmatprep.subr.bf16.mxu0 0
  %2280 = vmatpush1.bf16.msra.mxu0 0
  %2281 = vmatprep.subr.bf16.mxu0 0
  %2282 = vmatpush1.bf16.msra.mxu0 0
  %2283 = vmatprep.mubr.bf16.mxu0 0
  %2284 = vmatmul.mubr.bf16.gmra.mrb[0].mxu0 %v2249
  %v2285 = vpop.f32.mrb[0].mxu0
  %v2286 = vadd.f32 0.0, %v2285
  %v2287 = vpop.f32.mrb[0].mxu0
  %v2288 = vpop.f32.mrb[0].mxu0
  %v2289 = vadd.f32 0.0, %v2288
  %v2290 = vpop.f32.mrb[0].mxu0
  %2291 = vdwg.mxu0
  %v2296 = vunpack.c.l.b16 %v1812
  %v2297 = vunpack.c.l.b16 %v1813
  %v2298 = vunpack.c.l.b16 %v1814
  %v2299 = vunpack.c.l.b16 %v1815
  %v2300 = vpack.c.b16 %v2297, %v2296
  %v2301 = vpack.c.b16 %v2299, %v2298
  %v2305 = vsel %vm1468, %v1772, 0
  %2307 = vmatprep.subr.bf16.mxu0 0
  %2308 = vmatpush1.bf16.msra.mxu0 %v2300
  %2309 = vmatprep.subr.bf16.mxu0 0
  %2310 = vmatpush1.bf16.msra.mxu0 %v2301
  %2311 = vmatprep.subr.bf16.mxu0 0
  %2312 = vmatpush1.bf16.msra.mxu0 0
  %2313 = vmatprep.subr.bf16.mxu0 0
  %2314 = vmatpush1.bf16.msra.mxu0 0
  %2315 = vmatprep.subr.bf16.mxu0 0
  %2316 = vmatpush1.bf16.msra.mxu0 0
  %2317 = vmatprep.subr.bf16.mxu0 0
  %2318 = vmatpush1.bf16.msra.mxu0 0
  %2319 = vmatprep.subr.bf16.mxu0 0
  %2320 = vmatpush1.bf16.msra.mxu0 0
  %2321 = vmatprep.subr.bf16.mxu0 0
  %2322 = vmatpush1.bf16.msra.mxu0 0
  %2323 = vmatprep.subr.bf16.mxu0 0
  %2324 = vmatpush1.bf16.msra.mxu0 0
  %2325 = vmatprep.subr.bf16.mxu0 0
  %2326 = vmatpush1.bf16.msra.mxu0 0
  %2327 = vmatprep.subr.bf16.mxu0 0
  %2328 = vmatpush1.bf16.msra.mxu0 0
  %2329 = vmatprep.subr.bf16.mxu0 0
  %2330 = vmatpush1.bf16.msra.mxu0 0
  %2331 = vmatprep.subr.bf16.mxu0 0
  %2332 = vmatpush1.bf16.msra.mxu0 0
  %2333 = vmatprep.subr.bf16.mxu0 0
  %2334 = vmatpush1.bf16.msra.mxu0 0
  %2335 = vmatprep.subr.bf16.mxu0 0
  %2336 = vmatpush1.bf16.msra.mxu0 0
  %2337 = vmatprep.subr.bf16.mxu0 0
  %2338 = vmatpush1.bf16.msra.mxu0 0
  %2339 = vmatprep.mubr.bf16.mxu0 0
  %2340 = vmatmul.mubr.bf16.gmra.mrb[0].mxu0 %v2305
  %v2341 = vpop.f32.mrb[0].mxu0
  %v2342 = vadd.f32 0.0, %v2341
  %v2343 = vpop.f32.mrb[0].mxu0
  %v2344 = vpop.f32.mrb[0].mxu0
  %v2345 = vadd.f32 0.0, %v2344
  %v2346 = vpop.f32.mrb[0].mxu0
  %2347 = vdwg.mxu0
  %v2352 = vunpack.c.l.b16 %v1816
  %v2353 = vunpack.c.l.b16 %v1817
  %v2354 = vunpack.c.l.b16 %v1818
  %v2355 = vunpack.c.l.b16 %v1819
  %v2356 = vpack.c.b16 %v2353, %v2352
  %v2357 = vpack.c.b16 %v2355, %v2354
  %v2361 = vsel %vm1468, %v1773, 0
  %2363 = vmatprep.subr.bf16.mxu0 0
  %2364 = vmatpush1.bf16.msra.mxu0 %v2356
  %2365 = vmatprep.subr.bf16.mxu0 0
  %2366 = vmatpush1.bf16.msra.mxu0 %v2357
  %2367 = vmatprep.subr.bf16.mxu0 0
  %2368 = vmatpush1.bf16.msra.mxu0 0
  %2369 = vmatprep.subr.bf16.mxu0 0
  %2370 = vmatpush1.bf16.msra.mxu0 0
  %2371 = vmatprep.subr.bf16.mxu0 0
  %2372 = vmatpush1.bf16.msra.mxu0 0
  %2373 = vmatprep.subr.bf16.mxu0 0
  %2374 = vmatpush1.bf16.msra.mxu0 0
  %2375 = vmatprep.subr.bf16.mxu0 0
  %2376 = vmatpush1.bf16.msra.mxu0 0
  %2377 = vmatprep.subr.bf16.mxu0 0
  %2378 = vmatpush1.bf16.msra.mxu0 0
  %2379 = vmatprep.subr.bf16.mxu0 0
  %2380 = vmatpush1.bf16.msra.mxu0 0
  %2381 = vmatprep.subr.bf16.mxu0 0
  %2382 = vmatpush1.bf16.msra.mxu0 0
  %2383 = vmatprep.subr.bf16.mxu0 0
  %2384 = vmatpush1.bf16.msra.mxu0 0
  %2385 = vmatprep.subr.bf16.mxu0 0
  %2386 = vmatpush1.bf16.msra.mxu0 0
  %2387 = vmatprep.subr.bf16.mxu0 0
  %2388 = vmatpush1.bf16.msra.mxu0 0
  %2389 = vmatprep.subr.bf16.mxu0 0
  %2390 = vmatpush1.bf16.msra.mxu0 0
  %2391 = vmatprep.subr.bf16.mxu0 0
  %2392 = vmatpush1.bf16.msra.mxu0 0
  %2393 = vmatprep.subr.bf16.mxu0 0
  %2394 = vmatpush1.bf16.msra.mxu0 0
  %2395 = vmatprep.mubr.bf16.mxu0 0
  %2396 = vmatmul.mubr.bf16.gmra.mrb[0].mxu0 %v2361
  %v2397 = vpop.f32.mrb[0].mxu0
  %v2398 = vadd.f32 0.0, %v2397
  %v2399 = vpop.f32.mrb[0].mxu0
  %v2400 = vpop.f32.mrb[0].mxu0
  %v2401 = vadd.f32 0.0, %v2400
  %v2402 = vpop.f32.mrb[0].mxu0
  %2403 = vdwg.mxu0
  %v2408 = vunpack.c.l.b16 %v1820
  %v2409 = vunpack.c.l.b16 %v1821
  %v2410 = vunpack.c.l.b16 %v1822
  %v2411 = vunpack.c.l.b16 %v1823
  %v2412 = vpack.c.b16 %v2409, %v2408
  %v2413 = vpack.c.b16 %v2411, %v2410
  %v2417 = vsel %vm1468, %v1774, 0
  %2419 = vmatprep.subr.bf16.mxu0 0
  %2420 = vmatpush1.bf16.msra.mxu0 %v2412
  %2421 = vmatprep.subr.bf16.mxu0 0
  %2422 = vmatpush1.bf16.msra.mxu0 %v2413
  %2423 = vmatprep.subr.bf16.mxu0 0
  %2424 = vmatpush1.bf16.msra.mxu0 0
  %2425 = vmatprep.subr.bf16.mxu0 0
  %2426 = vmatpush1.bf16.msra.mxu0 0
  %2427 = vmatprep.subr.bf16.mxu0 0
  %2428 = vmatpush1.bf16.msra.mxu0 0
  %2429 = vmatprep.subr.bf16.mxu0 0
  %2430 = vmatpush1.bf16.msra.mxu0 0
  %2431 = vmatprep.subr.bf16.mxu0 0
  %2432 = vmatpush1.bf16.msra.mxu0 0
  %2433 = vmatprep.subr.bf16.mxu0 0
  %2434 = vmatpush1.bf16.msra.mxu0 0
  %2435 = vmatprep.subr.bf16.mxu0 0
  %2436 = vmatpush1.bf16.msra.mxu0 0
  %2437 = vmatprep.subr.bf16.mxu0 0
  %2438 = vmatpush1.bf16.msra.mxu0 0
  %2439 = vmatprep.subr.bf16.mxu0 0
  %2440 = vmatpush1.bf16.msra.mxu0 0
  %2441 = vmatprep.subr.bf16.mxu0 0
  %2442 = vmatpush1.bf16.msra.mxu0 0
  %2443 = vmatprep.subr.bf16.mxu0 0
  %2444 = vmatpush1.bf16.msra.mxu0 0
  %2445 = vmatprep.subr.bf16.mxu0 0
  %2446 = vmatpush1.bf16.msra.mxu0 0
  %2447 = vmatprep.subr.bf16.mxu0 0
  %2448 = vmatpush1.bf16.msra.mxu0 0
  %2449 = vmatprep.subr.bf16.mxu0 0
  %2450 = vmatpush1.bf16.msra.mxu0 0
  %2451 = vmatprep.mubr.bf16.mxu0 0
  %2452 = vmatmul.mubr.bf16.gmra.mrb[0].mxu0 %v2417
  %v2453 = vpop.f32.mrb[0].mxu0
  %v2454 = vadd.f32 0.0, %v2453
  %v2455 = vpop.f32.mrb[0].mxu0
  %v2456 = vpop.f32.mrb[0].mxu0
  %v2457 = vadd.f32 0.0, %v2456
  %v2458 = vpop.f32.mrb[0].mxu0
  %2459 = vdwg.mxu0
  %v2464 = vunpack.c.l.b16 %v1824
  %v2465 = vunpack.c.l.b16 %v1825
  %v2466 = vunpack.c.l.b16 %v1826
  %v2467 = vunpack.c.l.b16 %v1827
  %v2468 = vpack.c.b16 %v2465, %v2464
  %v2469 = vpack.c.b16 %v2467, %v2466
  %v2473 = vsel %vm1468, %v1775, 0
  %2475 = vmatprep.subr.bf16.mxu0 0
  %2476 = vmatpush1.bf16.msra.mxu0 %v2468
  %2477 = vmatprep.subr.bf16.mxu0 0
  %2478 = vmatpush1.bf16.msra.mxu0 %v2469
  %2479 = vmatprep.subr.bf16.mxu0 0
  %2480 = vmatpush1.bf16.msra.mxu0 0
  %2481 = vmatprep.subr.bf16.mxu0 0
  %2482 = vmatpush1.bf16.msra.mxu0 0
  %2483 = vmatprep.subr.bf16.mxu0 0
  %2484 = vmatpush1.bf16.msra.mxu0 0
  %2485 = vmatprep.subr.bf16.mxu0 0
  %2486 = vmatpush1.bf16.msra.mxu0 0
  %2487 = vmatprep.subr.bf16.mxu0 0
  %2488 = vmatpush1.bf16.msra.mxu0 0
  %2489 = vmatprep.subr.bf16.mxu0 0
  %2490 = vmatpush1.bf16.msra.mxu0 0
  %2491 = vmatprep.subr.bf16.mxu0 0
  %2492 = vmatpush1.bf16.msra.mxu0 0
  %2493 = vmatprep.subr.bf16.mxu0 0
  %2494 = vmatpush1.bf16.msra.mxu0 0
  %2495 = vmatprep.subr.bf16.mxu0 0
  %2496 = vmatpush1.bf16.msra.mxu0 0
  %2497 = vmatprep.subr.bf16.mxu0 0
  %2498 = vmatpush1.bf16.msra.mxu0 0
  %2499 = vmatprep.subr.bf16.mxu0 0
  %2500 = vmatpush1.bf16.msra.mxu0 0
  %2501 = vmatprep.subr.bf16.mxu0 0
  %2502 = vmatpush1.bf16.msra.mxu0 0
  %2503 = vmatprep.subr.bf16.mxu0 0
  %2504 = vmatpush1.bf16.msra.mxu0 0
  %2505 = vmatprep.subr.bf16.mxu0 0
  %2506 = vmatpush1.bf16.msra.mxu0 0
  %2507 = vmatprep.mubr.bf16.mxu0 0
  %2508 = vmatmul.mubr.bf16.gmra.mrb[0].mxu0 %v2473
  %v2509 = vpop.f32.mrb[0].mxu0
  %v2510 = vadd.f32 0.0, %v2509
  %v2511 = vpop.f32.mrb[0].mxu0
  %v2512 = vpop.f32.mrb[0].mxu0
  %v2513 = vadd.f32 0.0, %v2512
  %v2514 = vpop.f32.mrb[0].mxu0
  %2515 = vdwg.mxu0
  %v2520 = vunpack.c.l.b16 %v1828
  %v2521 = vunpack.c.l.b16 %v1829
  %v2522 = vunpack.c.l.b16 %v1830
  %v2523 = vunpack.c.l.b16 %v1831
  %v2524 = vpack.c.b16 %v2521, %v2520
  %v2525 = vpack.c.b16 %v2523, %v2522
  %v2529 = vsel %vm1468, %v1776, 0
  %2531 = vmatprep.subr.bf16.mxu0 0
  %2532 = vmatpush1.bf16.msra.mxu0 %v2524
  %2533 = vmatprep.subr.bf16.mxu0 0
  %2534 = vmatpush1.bf16.msra.mxu0 %v2525
  %2535 = vmatprep.subr.bf16.mxu0 0
  %2536 = vmatpush1.bf16.msra.mxu0 0
  %2537 = vmatprep.subr.bf16.mxu0 0
  %2538 = vmatpush1.bf16.msra.mxu0 0
  %2539 = vmatprep.subr.bf16.mxu0 0
  %2540 = vmatpush1.bf16.msra.mxu0 0
  %2541 = vmatprep.subr.bf16.mxu0 0
  %2542 = vmatpush1.bf16.msra.mxu0 0
  %2543 = vmatprep.subr.bf16.mxu0 0
  %2544 = vmatpush1.bf16.msra.mxu0 0
  %2545 = vmatprep.subr.bf16.mxu0 0
  %2546 = vmatpush1.bf16.msra.mxu0 0
  %2547 = vmatprep.subr.bf16.mxu0 0
  %2548 = vmatpush1.bf16.msra.mxu0 0
  %2549 = vmatprep.subr.bf16.mxu0 0
  %2550 = vmatpush1.bf16.msra.mxu0 0
  %2551 = vmatprep.subr.bf16.mxu0 0
  %2552 = vmatpush1.bf16.msra.mxu0 0
  %2553 = vmatprep.subr.bf16.mxu0 0
  %2554 = vmatpush1.bf16.msra.mxu0 0
  %2555 = vmatprep.subr.bf16.mxu0 0
  %2556 = vmatpush1.bf16.msra.mxu0 0
  %2557 = vmatprep.subr.bf16.mxu0 0
  %2558 = vmatpush1.bf16.msra.mxu0 0
  %2559 = vmatprep.subr.bf16.mxu0 0
  %2560 = vmatpush1.bf16.msra.mxu0 0
  %2561 = vmatprep.subr.bf16.mxu0 0
  %2562 = vmatpush1.bf16.msra.mxu0 0
  %2563 = vmatprep.mubr.bf16.mxu0 0
  %2564 = vmatmul.mubr.bf16.gmra.mrb[0].mxu0 %v2529
  %v2565 = vpop.f32.mrb[0].mxu0
  %v2566 = vadd.f32 0.0, %v2565
  %v2567 = vpop.f32.mrb[0].mxu0
  %v2568 = vpop.f32.mrb[0].mxu0
  %v2569 = vadd.f32 0.0, %v2568
  %v2570 = vpop.f32.mrb[0].mxu0
  %2571 = vdwg.mxu0
  %v2576 = vunpack.c.l.b16 %v1832
  %v2577 = vunpack.c.l.b16 %v1833
  %v2578 = vunpack.c.l.b16 %v1834
  %v2579 = vunpack.c.l.b16 %v1835
  %v2580 = vpack.c.b16 %v2577, %v2576
  %v2581 = vpack.c.b16 %v2579, %v2578
  %v2585 = vsel %vm1468, %v1777, 0
  %2587 = vmatprep.subr.bf16.mxu0 0
  %2588 = vmatpush1.bf16.msra.mxu0 %v2580
  %2589 = vmatprep.subr.bf16.mxu0 0
  %2590 = vmatpush1.bf16.msra.mxu0 %v2581
  %2591 = vmatprep.subr.bf16.mxu0 0
  %2592 = vmatpush1.bf16.msra.mxu0 0
  %2593 = vmatprep.subr.bf16.mxu0 0
  %2594 = vmatpush1.bf16.msra.mxu0 0
  %2595 = vmatprep.subr.bf16.mxu0 0
  %2596 = vmatpush1.bf16.msra.mxu0 0
  %2597 = vmatprep.subr.bf16.mxu0 0
  %2598 = vmatpush1.bf16.msra.mxu0 0
  %2599 = vmatprep.subr.bf16.mxu0 0
  %2600 = vmatpush1.bf16.msra.mxu0 0
  %2601 = vmatprep.subr.bf16.mxu0 0
  %2602 = vmatpush1.bf16.msra.mxu0 0
  %2603 = vmatprep.subr.bf16.mxu0 0
  %2604 = vmatpush1.bf16.msra.mxu0 0
  %2605 = vmatprep.subr.bf16.mxu0 0
  %2606 = vmatpush1.bf16.msra.mxu0 0
  %2607 = vmatprep.subr.bf16.mxu0 0
  %2608 = vmatpush1.bf16.msra.mxu0 0
  %2609 = vmatprep.subr.bf16.mxu0 0
  %2610 = vmatpush1.bf16.msra.mxu0 0
  %2611 = vmatprep.subr.bf16.mxu0 0
  %2612 = vmatpush1.bf16.msra.mxu0 0
  %2613 = vmatprep.subr.bf16.mxu0 0
  %2614 = vmatpush1.bf16.msra.mxu0 0
  %2615 = vmatprep.subr.bf16.mxu0 0
  %2616 = vmatpush1.bf16.msra.mxu0 0
  %2617 = vmatprep.subr.bf16.mxu0 0
  %2618 = vmatpush1.bf16.msra.mxu0 0
  %2619 = vmatprep.mubr.bf16.mxu0 0
  %2620 = vmatmul.mubr.bf16.gmra.mrb[0].mxu0 %v2585
  %v2621 = vpop.f32.mrb[0].mxu0
  %v2622 = vadd.f32 0.0, %v2621
  %v2623 = vpop.f32.mrb[0].mxu0
  %v2624 = vpop.f32.mrb[0].mxu0
  %v2625 = vadd.f32 0.0, %v2624
  %v2626 = vpop.f32.mrb[0].mxu0
  %2627 = vdwg.mxu0
  %v2632 = vunpack.c.l.b16 %v1836
  %v2633 = vunpack.c.l.b16 %v1837
  %v2634 = vunpack.c.l.b16 %v1838
  %v2635 = vunpack.c.l.b16 %v1839
  %v2636 = vpack.c.b16 %v2633, %v2632
  %v2637 = vpack.c.b16 %v2635, %v2634
  %v2641 = vsel %vm1468, %v1778, 0
  %2643 = vmatprep.subr.bf16.mxu0 0
  %2644 = vmatpush1.bf16.msra.mxu0 %v2636
  %2645 = vmatprep.subr.bf16.mxu0 0
  %2646 = vmatpush1.bf16.msra.mxu0 %v2637
  %2647 = vmatprep.subr.bf16.mxu0 0
  %2648 = vmatpush1.bf16.msra.mxu0 0
  %2649 = vmatprep.subr.bf16.mxu0 0
  %2650 = vmatpush1.bf16.msra.mxu0 0
  %2651 = vmatprep.subr.bf16.mxu0 0
  %2652 = vmatpush1.bf16.msra.mxu0 0
  %2653 = vmatprep.subr.bf16.mxu0 0
  %2654 = vmatpush1.bf16.msra.mxu0 0
  %2655 = vmatprep.subr.bf16.mxu0 0
  %2656 = vmatpush1.bf16.msra.mxu0 0
  %2657 = vmatprep.subr.bf16.mxu0 0
  %2658 = vmatpush1.bf16.msra.mxu0 0
  %2659 = vmatprep.subr.bf16.mxu0 0
  %2660 = vmatpush1.bf16.msra.mxu0 0
  %2661 = vmatprep.subr.bf16.mxu0 0
  %2662 = vmatpush1.bf16.msra.mxu0 0
  %2663 = vmatprep.subr.bf16.mxu0 0
  %2664 = vmatpush1.bf16.msra.mxu0 0
  %2665 = vmatprep.subr.bf16.mxu0 0
  %2666 = vmatpush1.bf16.msra.mxu0 0
  %2667 = vmatprep.subr.bf16.mxu0 0
  %2668 = vmatpush1.bf16.msra.mxu0 0
  %2669 = vmatprep.subr.bf16.mxu0 0
  %2670 = vmatpush1.bf16.msra.mxu0 0
  %2671 = vmatprep.subr.bf16.mxu0 0
  %2672 = vmatpush1.bf16.msra.mxu0 0
  %2673 = vmatprep.subr.bf16.mxu0 0
  %2674 = vmatpush1.bf16.msra.mxu0 0
  %2675 = vmatprep.mubr.bf16.mxu0 0
  %2676 = vmatmul.mubr.bf16.gmra.mrb[0].mxu0 %v2641
  %v2677 = vpop.f32.mrb[0].mxu0
  %v2678 = vadd.f32 0.0, %v2677
  %v2679 = vpop.f32.mrb[0].mxu0
  %v2680 = vpop.f32.mrb[0].mxu0
  %v2681 = vadd.f32 0.0, %v2680
  %v2682 = vpop.f32.mrb[0].mxu0
  %2683 = vdwg.mxu0
  %v2688 = vunpack.c.l.b16 %v1840
  %v2689 = vunpack.c.l.b16 %v1841
  %v2690 = vunpack.c.l.b16 %v1842
  %v2691 = vunpack.c.l.b16 %v1843
  %v2692 = vpack.c.b16 %v2689, %v2688
  %v2693 = vpack.c.b16 %v2691, %v2690
  %v2697 = vsel %vm1468, %v1779, 0
  %2699 = vmatprep.subr.bf16.mxu0 0
  %2700 = vmatpush1.bf16.msra.mxu0 %v2692
  %2701 = vmatprep.subr.bf16.mxu0 0
  %2702 = vmatpush1.bf16.msra.mxu0 %v2693
  %2703 = vmatprep.subr.bf16.mxu0 0
  %2704 = vmatpush1.bf16.msra.mxu0 0
  %2705 = vmatprep.subr.bf16.mxu0 0
  %2706 = vmatpush1.bf16.msra.mxu0 0
  %2707 = vmatprep.subr.bf16.mxu0 0
  %2708 = vmatpush1.bf16.msra.mxu0 0
  %2709 = vmatprep.subr.bf16.mxu0 0
  %2710 = vmatpush1.bf16.msra.mxu0 0
  %2711 = vmatprep.subr.bf16.mxu0 0
  %2712 = vmatpush1.bf16.msra.mxu0 0
  %2713 = vmatprep.subr.bf16.mxu0 0
  %2714 = vmatpush1.bf16.msra.mxu0 0
  %2715 = vmatprep.subr.bf16.mxu0 0
  %2716 = vmatpush1.bf16.msra.mxu0 0
  %2717 = vmatprep.subr.bf16.mxu0 0
  %2718 = vmatpush1.bf16.msra.mxu0 0
  %2719 = vmatprep.subr.bf16.mxu0 0
  %2720 = vmatpush1.bf16.msra.mxu0 0
  %2721 = vmatprep.subr.bf16.mxu0 0
  %2722 = vmatpush1.bf16.msra.mxu0 0
  %2723 = vmatprep.subr.bf16.mxu0 0
  %2724 = vmatpush1.bf16.msra.mxu0 0
  %2725 = vmatprep.subr.bf16.mxu0 0
  %2726 = vmatpush1.bf16.msra.mxu0 0
  %2727 = vmatprep.subr.bf16.mxu0 0
  %2728 = vmatpush1.bf16.msra.mxu0 0
  %2729 = vmatprep.subr.bf16.mxu0 0
  %2730 = vmatpush1.bf16.msra.mxu0 0
  %2731 = vmatprep.mubr.bf16.mxu0 0
  %2732 = vmatmul.mubr.bf16.gmra.mrb[0].mxu0 %v2697
  %v2733 = vpop.f32.mrb[0].mxu0
  %v2734 = vadd.f32 0.0, %v2733
  %v2735 = vpop.f32.mrb[0].mxu0
  %v2736 = vpop.f32.mrb[0].mxu0
  %v2737 = vadd.f32 0.0, %v2736
  %v2738 = vpop.f32.mrb[0].mxu0
  %2739 = vdwg.mxu0
  %v2740 = vadd.f32 %v1894, %v1950
  %v2741 = vadd.f32 %v2740, %v2006
  %v2742 = vadd.f32 %v2741, %v2062
  %v2743 = vadd.f32 %v2742, %v2118
  %v2744 = vadd.f32 %v2743, %v2174
  %v2745 = vadd.f32 %v2744, %v2230
  %v2746 = vadd.f32 %v2745, %v2286
  %v2747 = vadd.f32 %v2746, %v2342
  %v2748 = vadd.f32 %v2747, %v2398
  %v2749 = vadd.f32 %v2748, %v2454
  %v2750 = vadd.f32 %v2749, %v2510
  %v2751 = vadd.f32 %v2750, %v2566
  %v2752 = vadd.f32 %v2751, %v2622
  %v2753 = vadd.f32 %v2752, %v2678
  %v2754 = vadd.f32 %v2753, %v2734
  %v2755 = vadd.f32 %v1897, %v1953
  %v2756 = vadd.f32 %v2755, %v2009
  %v2757 = vadd.f32 %v2756, %v2065
  %v2758 = vadd.f32 %v2757, %v2121
  %v2759 = vadd.f32 %v2758, %v2177
  %v2760 = vadd.f32 %v2759, %v2233
  %v2761 = vadd.f32 %v2760, %v2289
  %v2762 = vadd.f32 %v2761, %v2345
  %v2763 = vadd.f32 %v2762, %v2401
  %v2764 = vadd.f32 %v2763, %v2457
  %v2765 = vadd.f32 %v2764, %v2513
  %v2766 = vadd.f32 %v2765, %v2569
  %v2767 = vadd.f32 %v2766, %v2625
  %v2768 = vadd.f32 %v2767, %v2681
  %v2769 = vadd.f32 %v2768, %v2737
  %v2770 = vld [vmem:[%s4] sm:$0x1]
  %v2772 = vlaneseq
  %v2773 = vshrl.u32 %v2772, 7
  %v2774 = vsub.s32 0, %v2773
  %v2775 = vrot.slane %v2770, %v2774
  %v2777 = vadd.f32 %v2754, %v2775
  %v2778 = vadd.f32 %v2769, %v2775
  %v2779 = vmax.f32 %v2777, 0.0
  %v2780 = vmax.f32 %v2778, 0.0
  %v2781 = vpack.c.bf16 %v2780, %v2779
  %v2782 = vld [vmem:[%s5] sm:$0xf]
  %v2783 = vld [vmem:[%s5 + $0x4] sm:$0xf]
  %v2784 = vld [vmem:[%s5 + $0x8] sm:$0xf]
  %v2785 = vld [vmem:[%s5 + $0xc] sm:$0xf]
  %v2786 = vld [vmem:[%s5 + $0x10] sm:$0xf]
  %v2787 = vld [vmem:[%s5 + $0x14] sm:$0xf]
  %v2788 = vld [vmem:[%s5 + $0x18] sm:$0xf]
  %v2789 = vld [vmem:[%s5 + $0x1c] sm:$0xf]
  %v2790 = vld [vmem:[%s5 + $0x20] sm:$0xf]
  %v2791 = vld [vmem:[%s5 + $0x24] sm:$0xf]
  %v2792 = vld [vmem:[%s5 + $0x28] sm:$0xf]
  %v2793 = vld [vmem:[%s5 + $0x2c] sm:$0xf]
  %v2794 = vld [vmem:[%s5 + $0x30] sm:$0xf]
  %v2795 = vld [vmem:[%s5 + $0x34] sm:$0xf]
  %v2796 = vld [vmem:[%s5 + $0x38] sm:$0xf]
  %v2797 = vld [vmem:[%s5 + $0x3c] sm:$0xf]
  %v2798 = vld [vmem:[%s6] sm:$0x1]
  %v2800 = vlaneseq
  %v2801 = vshrl.u32 %v2800, 7
  %v2802 = vsub.s32 0, %v2801
  %v2803 = vrot.slane %v2798, %v2802
  %v2821 = vunpack.c.l.b16 %v2782
  %v2822 = vunpack.c.l.b16 %v2783
  %v2823 = vunpack.c.l.b16 %v2784
  %v2824 = vunpack.c.l.b16 %v2785
  %v2825 = vunpack.c.l.b16 %v2786
  %v2826 = vunpack.c.l.b16 %v2787
  %v2827 = vunpack.c.l.b16 %v2788
  %v2828 = vunpack.c.l.b16 %v2789
  %v2829 = vunpack.c.l.b16 %v2790
  %v2830 = vunpack.c.l.b16 %v2791
  %v2831 = vunpack.c.l.b16 %v2792
  %v2832 = vunpack.c.l.b16 %v2793
  %v2833 = vunpack.c.l.b16 %v2794
  %v2834 = vunpack.c.l.b16 %v2795
  %v2835 = vunpack.c.l.b16 %v2796
  %v2836 = vunpack.c.l.b16 %v2797
  %v2837 = vpack.c.b16 %v2822, %v2821
  %v2838 = vpack.c.b16 %v2824, %v2823
  %v2839 = vpack.c.b16 %v2826, %v2825
  %v2840 = vpack.c.b16 %v2828, %v2827
  %v2841 = vpack.c.b16 %v2830, %v2829
  %v2842 = vpack.c.b16 %v2832, %v2831
  %v2843 = vpack.c.b16 %v2834, %v2833
  %v2844 = vpack.c.b16 %v2836, %v2835
  %2853 = vmatprep.subr.bf16.mxu0 0
  %2854 = vmatpush1.bf16.msra.mxu0 %v2837
  %2855 = vmatprep.subr.bf16.mxu0 0
  %2856 = vmatpush1.bf16.msra.mxu0 %v2838
  %2857 = vmatprep.subr.bf16.mxu0 0
  %2858 = vmatpush1.bf16.msra.mxu0 %v2839
  %2859 = vmatprep.subr.bf16.mxu0 0
  %2860 = vmatpush1.bf16.msra.mxu0 %v2840
  %2861 = vmatprep.subr.bf16.mxu0 0
  %2862 = vmatpush1.bf16.msra.mxu0 %v2841
  %2863 = vmatprep.subr.bf16.mxu0 0
  %2864 = vmatpush1.bf16.msra.mxu0 %v2842
  %2865 = vmatprep.subr.bf16.mxu0 0
  %2866 = vmatpush1.bf16.msra.mxu0 %v2843
  %2867 = vmatprep.subr.bf16.mxu0 0
  %2868 = vmatpush1.bf16.msra.mxu0 %v2844
  %2869 = vmatprep.subr.bf16.mxu0 0
  %2870 = vmatpush1.bf16.msra.mxu0 0
  %2871 = vmatprep.subr.bf16.mxu0 0
  %2872 = vmatpush1.bf16.msra.mxu0 0
  %2873 = vmatprep.subr.bf16.mxu0 0
  %2874 = vmatpush1.bf16.msra.mxu0 0
  %2875 = vmatprep.subr.bf16.mxu0 0
  %2876 = vmatpush1.bf16.msra.mxu0 0
  %2877 = vmatprep.subr.bf16.mxu0 0
  %2878 = vmatpush1.bf16.msra.mxu0 0
  %2879 = vmatprep.subr.bf16.mxu0 0
  %2880 = vmatpush1.bf16.msra.mxu0 0
  %2881 = vmatprep.subr.bf16.mxu0 0
  %2882 = vmatpush1.bf16.msra.mxu0 0
  %2883 = vmatprep.subr.bf16.mxu0 0
  %2884 = vmatpush1.bf16.msra.mxu0 0
  %2885 = vmatprep.mubr.bf16.mxu0 0
  %2886 = vmatmul.mubr.bf16.gmra.mrb[0].mxu0 %v2781
  %v2887 = vpop.f32.mrb[0].mxu0
  %v2888 = vadd.f32 %v2803, %v2887
  %v2889 = vpop.f32.mrb[0].mxu0
  %v2890 = vpop.f32.mrb[0].mxu0
  %v2891 = vadd.f32 %v2803, %v2890
  %v2892 = vpop.f32.mrb[0].mxu0
  %2893 = vdwg.mxu0
  %2894 = vst [vmem:[%s7] sm:$0xff] %v2888
  %2895 = vst [vmem:[%s7 + $0x8] sm:$0xff] %v2891
  // Predicated region
  $region30: #{mnist_lenet_forward.3} parent=0 // pred_check
    _
  $region31: #{mnist_lenet_forward.3} parent=0 // pred_check_branch
    %2897 = sbr.rel (0) target = $region33
  $region32: #{mnist_lenet_forward.3} parent=0 // pred_region
    _
  $region33: #{mnist_lenet_forward.3} parent=0 // pred_fallthru
    _
  // Predicated region
  $region34: #{mnist_lenet_forward.3} parent=0 // pred_check
    _
  $region35: #{mnist_lenet_forward.3} parent=0 // pred_check_branch
    %2899 = sbr.rel (0) target = $region37
  $region36: #{mnist_lenet_forward.3} parent=0 // pred_region
    _
  $region37: #{mnist_lenet_forward.3} parent=0 // pred_fallthru
    _

</llo_original>
